<compile_context>
chip_gen: v7x
topology: tpu7x:2x2x1
jax: 0.10.0
libtpu: 0.0.40
codegen_flags: <defaults>
</compile_context>

<pallas_src>
import math
import jax
import jax.numpy as jnp
from jax import lax
from jax.experimental import pallas as pl
from jax.experimental.pallas import tpu as pltpu


_INV_SQRT2 = 1.0 / math.sqrt(2.0)

# Abramowitz & Stegun 7.1.26 rational approximation of erf, |error| < 1.5e-7.
_ERF_P = 0.3275911
_ERF_A = (0.254829592, -0.284496736, 1.421413741, -1.453152027, 1.061405429)


def _erf_approx(x):
    a1, a2, a3, a4, a5 = _ERF_A
    ax = jnp.abs(x)
    t = 1.0 / (1.0 + _ERF_P * ax)
    poly = t * (a1 + t * (a2 + t * (a3 + t * (a4 + t * a5))))
    e = 1.0 - poly * jnp.exp(-ax * ax)
    return jnp.where(x >= 0, e, -e)


def _gelu_erf(x):
    # PyTorch nn.GELU() default: 0.5 * x * (1 + erf(x / sqrt(2)))  (exact, not tanh approx)
    return 0.5 * x * (1.0 + _erf_approx(x * _INV_SQRT2))


def _gelu_exact_ref(x):
    # Reference path (outside the kernel) uses the true erf primitive.
    return 0.5 * x * (1.0 + lax.erf(x * _INV_SQRT2))


# ----------------------------- kernel A: MLP + normalize ---------------------------------

def _mlp_norm_kernel(x_ref, w1_ref, b1_ref, w2_ref, b2_ref, w3_ref, b3_ref, z_ref):
    cd = x_ref.dtype  # matmul operand dtype (bf16 by default); accumulation is f32
    h = jnp.dot(x_ref[...], w1_ref[...], preferred_element_type=jnp.float32) + b1_ref[...]
    h = _gelu_erf(h).astype(cd)
    h = jnp.dot(h, w2_ref[...], preferred_element_type=jnp.float32) + b2_ref[...]
    h = _gelu_erf(h).astype(cd)
    z = jnp.dot(h, w3_ref[...], preferred_element_type=jnp.float32) + b3_ref[...]
    # F.normalize(z, dim=-1, p=2): z / max(||z||, 1e-12) == z * rsqrt(max(sumsq, 1e-24)).
    # Padded batch rows give sumsq = 0 -> clamped, no NaNs.
    z = z * lax.rsqrt(jnp.maximum(jnp.sum(z * z, axis=-1, keepdims=True), 1e-24))
    z_ref[...] = z.astype(z_ref.dtype)


# ----------------------- kernel B: streamed weight-normed last layer ----------------------

def _last_layer_kernel(z_ref, wl_ref, o_ref):
    o_ref[...] = jnp.dot(z_ref[...], wl_ref[...],
                         preferred_element_type=jnp.float32).astype(o_ref.dtype)


# ----------------------------------- wrapper ---------------------------------------------

def _round_up(x, m):
    return -(-x // m) * m


def _vmem_limit(bytes_needed):
    try:
        phys = pltpu.get_tpu_info().vmem_capacity_bytes
    except Exception:
        phys = 64 << 20            # v7x floor if the query is unavailable
    cap = phys - (2 << 20)         # leave headroom below the physical ceiling
    return int(max(16 << 20, min(cap, bytes_needed)))


def _mlp_call(Bp, in_dim, hid, bot, block_b, cd, vmem_limit, single_buffer_weights):
    if single_buffer_weights:
        # Grid-invariant weights: one DMA total, one VMEM buffer (halves resident footprint).
        w_spec = lambda s: pl.BlockSpec(s, lambda i: (0, 0), pipeline_mode=pl.Buffered(1))
    else:
        w_spec = lambda s: pl.BlockSpec(s, lambda i: (0, 0))
    return pl.pallas_call(
        _mlp_norm_kernel,
        out_shape=jax.ShapeDtypeStruct((Bp, bot), cd),
        grid_spec=pltpu.PrefetchScalarGridSpec(
            num_scalar_prefetch=0,
            grid=(Bp // block_b,),
            in_specs=[
                pl.BlockSpec((block_b, in_dim), lambda i: (i, 0)),   # x batch tile
                w_spec((in_dim, hid)), w_spec((1, hid)),             # layer 1 (resident)
                w_spec((hid, hid)),    w_spec((1, hid)),             # layer 2 (resident)
                w_spec((hid, bot)),    w_spec((1, bot)),             # layer 3 (resident)
            ],
            out_specs=pl.BlockSpec((block_b, bot), lambda i: (i, 0)),
        ),
        compiler_params=pltpu.CompilerParams(
            dimension_semantics=("parallel",),      # batch tiles shard across TensorCores
            vmem_limit_bytes=vmem_limit,
        ),
    )


def _last_layer_call(Bp, bot, out_p, block_b, block_n, out_dtype, vmem_limit):
    return pl.pallas_call(
        _last_layer_kernel,
        out_shape=jax.ShapeDtypeStruct((Bp, out_p), out_dtype),
        grid_spec=pltpu.PrefetchScalarGridSpec(
            num_scalar_prefetch=0,
            # out_dim OUTER / batch INNER: each w_last column tile is fetched exactly once.
            grid=(out_p // block_n, Bp // block_b),
            in_specs=[
                pl.BlockSpec((block_b, bot), lambda j, i: (i, 0)),   # z tile (small, re-streamed)
                pl.BlockSpec((bot, block_n), lambda j, i: (0, j)),   # w_last columns (single pass)
            ],
            out_specs=pl.BlockSpec((block_b, block_n), lambda j, i: (i, j)),
        ),
        compiler_params=pltpu.CompilerParams(
            # Core-shard the out_dim axis (keeps w_last single-pass per core); batch stays
            # "arbitrary" so it is never chosen as the sharded axis.
            dimension_semantics=("parallel", "arbitrary"),
            vmem_limit_bytes=vmem_limit,
        ),
    )


def dino_head_forward(x, params, *, block_b=512, block_n=2048,
                      compute_dtype=jnp.bfloat16, out_dtype=jnp.bfloat16):
    """x: (B, in_dim); params: dict of transposed weights / biases (see make_params)."""
    B, in_dim = x.shape
    w1, b1 = params["w1"], params["b1"]          # (in,  hid), (1, hid)
    w2, b2 = params["w2"], params["b2"]          # (hid, hid), (1, hid)
    w3, b3 = params["w3"], params["b3"]          # (hid, bot), (1, bot)
    v, g = params["v"], params["g"]              # (bot, out), (1, out)
    hid = w1.shape[1]
    bot = w3.shape[1]
    out_dim = v.shape[1]

    # weight_norm hoisted out of the kernel (one-time XLA op).  V is stored transposed as
    # (bot, out); normalizing over the bot axis == PyTorch weight_norm(dim=0) applied to the
    # (out, bot) weight.  g = 1 because norm_last_layer=True freezes weight_g at 1.
    v32 = v.astype(jnp.float32)
    col_inv = lax.rsqrt(jnp.maximum(jnp.sum(v32 * v32, axis=0, keepdims=True), 1e-24))
    w_last = v32 * (g.astype(jnp.float32) * col_inv)

    # --- tile sizing (128-aligned, lane-dense); pad instead of asserting divisibility ---
    b128 = _round_up(B, 128)
    block_b = int(min(block_b, b128))
    if b128 >= 256:                                   # keep >= 2 batch tiles for v7x megacore
        block_b = int(min(block_b, _round_up(b128 // 2, 128)))
    block_n = int(min(block_n, _round_up(out_dim, 128)))
    Bp = _round_up(B, block_b)
    out_p = _round_up(out_dim, block_n)

    xp = x if Bp == B else jnp.pad(x, ((0, Bp - B), (0, 0)))
    if out_p != out_dim:
        w_last = jnp.pad(w_last, ((0, 0), (0, out_p - out_dim)))   # padded cols are zero -> sliced off

    cd = compute_dtype
    isz = jnp.dtype(cd).itemsize
    osz = jnp.dtype(out_dtype).itemsize
    xp = xp.astype(cd)
    w1c, w2c, w3c, wlc = w1.astype(cd), w2.astype(cd), w3.astype(cd), w_last.astype(cd)
    b1f, b2f, b3f = b1.astype(jnp.float32), b2.astype(jnp.float32), b3.astype(jnp.float32)

    # --- VMEM budgets (resident weights + double-buffered streamed tiles + f32 temporaries) ---
    resident = (in_dim * hid + hid * hid + hid * bot) * isz + (2 * hid + bot) * 4
    streamed_a = 2 * (block_b * in_dim + block_b * bot) * isz
    interm_a = 3 * block_b * hid * 4 + 2 * block_b * bot * 4
    lim_a_sb = _vmem_limit(1 * resident + streamed_a + interm_a + (4 << 20))
    lim_a_db = _vmem_limit(2 * resident + streamed_a + interm_a + (4 << 20))
    lim_b = _vmem_limit(2 * (block_b * bot * isz + bot * block_n * isz
                             + block_b * block_n * osz) + (4 << 20))

    mlp_args = (xp, w1c, b1f, w2c, b2f, w3c, b3f)
    try:
        z = _mlp_call(Bp, in_dim, hid, bot, block_b, cd, lim_a_sb, True)(*mlp_args)
    except Exception:
        # pipeline_mode=pl.Buffered(1) not supported by this JAX build -> default 2x buffering.
        z = _mlp_call(Bp, in_dim, hid, bot, block_b, cd, lim_a_db, False)(*mlp_args)

    out_padded = _last_layer_call(Bp, bot, out_p, block_b, block_n, out_dtype, lim_b)(z, wlc)
    return out_padded[:B, :out_dim]


# ------------------------------- params / reference --------------------------------------

def _trunc_normal(key, shape, std=0.02, a=-2.0, b=2.0):
    # matches trunc_normal_(std=0.02): truncation bounds in std units, then scaled by std
    return std * jax.random.truncated_normal(key, a, b, shape, dtype=jnp.float32)


def make_params(key, in_dim, out_dim, hidden_dim, bottleneck_dim):
    k1, k2, k3, k4 = jax.random.split(key, 4)
    bound = 1.0 / math.sqrt(bottleneck_dim)
    return {
        # Linear weights stored transposed: (in_features, out_features); biases zero.
        "w1": _trunc_normal(k1, (in_dim, hidden_dim)),
        "b1": jnp.zeros((1, hidden_dim), jnp.float32),
        "w2": _trunc_normal(k2, (hidden_dim, hidden_dim)),
        "b2": jnp.zeros((1, hidden_dim), jnp.float32),
        "w3": _trunc_normal(k3, (hidden_dim, bottleneck_dim)),
        "b3": jnp.zeros((1, bottleneck_dim), jnp.float32),
        # weight_norm last layer: direction V (default nn.Linear uniform init), gain g = 1.
        "v": jax.random.uniform(k4, (bottleneck_dim, out_dim), jnp.float32, -bound, bound),
        "g": jnp.ones((1, out_dim), jnp.float32),
    }


def _reference(x, p, compute_dtype=jnp.bfloat16, out_dtype=jnp.bfloat16):
    """Pure-JAX reference mirroring the kernel's bf16-operand / f32-accumulation math.
    NOTE: bf16 operands introduce ~1e-2 relative error vs the f32 PyTorch module; acceptable
    for DINO, and the self-test compares against the same bf16 math."""
    cd = compute_dtype
    xc = x.astype(cd)
    h = _gelu_exact_ref(jnp.dot(xc, p["w1"].astype(cd),
                                preferred_element_type=jnp.float32) + p["b1"]).astype(cd)
    h = _gelu_exact_ref(jnp.dot(h, p["w2"].astype(cd),
                                preferred_element_type=jnp.float32) + p["b2"]).astype(cd)
    z = jnp.dot(h, p["w3"].astype(cd), preferred_element_type=jnp.float32) + p["b3"]
    z = z * lax.rsqrt(jnp.maximum(jnp.sum(z * z, axis=-1, keepdims=True), 1e-24))
    v = p["v"].astype(jnp.float32)
    w_last = v * (p["g"] * lax.rsqrt(jnp.maximum(jnp.sum(v * v, axis=0, keepdims=True), 1e-24)))
    y = jnp.dot(z.astype(cd), w_last.astype(cd), preferred_element_type=jnp.float32)
    return y.astype(out_dtype)


if __name__ == "__main__":
    # Small, module-consistent shapes (scaled-down hidden/bottleneck/out).  B=192 and
    # out_dim=384 deliberately exercise the wrapper-side batch / out_dim padding, and the
    # small explicit tiles exercise the (out, batch) streaming grid of kernel B.
    B, in_dim, hidden_dim, bottleneck_dim, out_dim = 192, 128, 256, 128, 384

    key = jax.random.PRNGKey(0)
    kx, kp = jax.random.split(key)
    x = jax.random.normal(kx, (B, in_dim), dtype=jnp.float32)
    params = make_params(kp, in_dim, out_dim, hidden_dim, bottleneck_dim)

    # Production call would use the defaults (block_b=512, block_n=2048).
    out = dino_head_forward(x, params, block_b=128, block_n=256)
    out = jax.block_until_ready(out)

    ref = _reference(x, params)
    assert out.shape == (B, out_dim)
    assert out.dtype == jnp.bfloat16
    o32, r32 = out.astype(jnp.float32), ref.astype(jnp.float32)
    max_err = jnp.max(jnp.abs(o32 - r32))
    assert jnp.allclose(o32, r32, atol=2e-2, rtol=2e-2), f"mismatch vs reference (max abs err {max_err})"

    print("KERNEL_OK")
</pallas_src>

<mosaic_0001>
module attributes {stable_mosaic.version = 11 : i64} {
  func.func @_mlp_norm_kernel(%arg0: i32, %arg1: memref<128x128xbf16, #tpu.memory_space<vmem>>, %arg2: memref<128x256xbf16, #tpu.memory_space<vmem>>, %arg3: memref<1x256xf32, #tpu.memory_space<vmem>>, %arg4: memref<256x256xbf16, #tpu.memory_space<vmem>>, %arg5: memref<1x256xf32, #tpu.memory_space<vmem>>, %arg6: memref<256x128xbf16, #tpu.memory_space<vmem>>, %arg7: memref<1x128xf32, #tpu.memory_space<vmem>>, %arg8: memref<128x128xbf16, #tpu.memory_space<vmem>>) attributes {dimension_semantics = [#tpu.dimension_semantics<parallel>], iteration_bounds = array<i64: 2>, scalar_prefetch = 0 : i64, scratch_operands = 0 : i64, tpu.core_type = #tpu.core_type<tc>, window_params = [{transform_indices = @transform_0, window_bounds = array<i64: 128, 128>}, {pipeline_mode = #tpu.pipeline_mode<synchronous>, transform_indices = @transform_1, window_bounds = array<i64: 128, 256>}, {pipeline_mode = #tpu.pipeline_mode<synchronous>, transform_indices = @transform_2, window_bounds = array<i64: 1, 256>}, {pipeline_mode = #tpu.pipeline_mode<synchronous>, transform_indices = @transform_3, window_bounds = array<i64: 256, 256>}, {pipeline_mode = #tpu.pipeline_mode<synchronous>, transform_indices = @transform_4, window_bounds = array<i64: 1, 256>}, {pipeline_mode = #tpu.pipeline_mode<synchronous>, transform_indices = @transform_5, window_bounds = array<i64: 256, 128>}, {pipeline_mode = #tpu.pipeline_mode<synchronous>, transform_indices = @transform_6, window_bounds = array<i64: 1, 128>}, {transform_indices = @transform_7, window_bounds = array<i64: 128, 128>}]} {
    %c0 = arith.constant 0 : index
    %c0_0 = arith.constant 0 : index
    %0 = vector.load %arg1[%c0, %c0_0] : memref<128x128xbf16, #tpu.memory_space<vmem>>, vector<128x128xbf16>
    %c0_1 = arith.constant 0 : index
    %c0_2 = arith.constant 0 : index
    %1 = vector.load %arg2[%c0_1, %c0_2] : memref<128x256xbf16, #tpu.memory_space<vmem>>, vector<128x256xbf16>
    %cst = arith.constant dense<0.000000e+00> : vector<128x256xf32>
    %2 = tpu.matmul %0, %1, %cst {dimension_numbers = #tpu.dot_dimension_numbers<[1], [0], [0], [1], [0, 0, 1, 1], [], []>} : vector<128x128xbf16>, vector<128x256xbf16>, vector<128x256xf32> -> vector<128x256xf32>
    %c0_3 = arith.constant 0 : index
    %c0_4 = arith.constant 0 : index
    %3 = vector.load %arg3[%c0_3, %c0_4] : memref<1x256xf32, #tpu.memory_space<vmem>>, vector<1x256xf32>
    %4 = vector.broadcast %3 : vector<1x256xf32> to vector<128x256xf32>
    %5 = arith.addf %2, %4 : vector<128x256xf32>
    %cst_5 = arith.constant 5.000000e-01 : f32
    %6 = vector.broadcast %cst_5 : f32 to vector<128x256xf32>
    %7 = arith.mulf %6, %5 : vector<128x256xf32>
    %cst_6 = arith.constant 0.707106769 : f32
    %8 = vector.broadcast %cst_6 : f32 to vector<128x256xf32>
    %9 = arith.mulf %5, %8 : vector<128x256xf32>
    %10 = math.absf %9 : vector<128x256xf32>
    %cst_7 = arith.constant 0.327591091 : f32
    %11 = vector.broadcast %cst_7 : f32 to vector<128x256xf32>
    %12 = arith.mulf %11, %10 : vector<128x256xf32>
    %cst_8 = arith.constant 1.000000e+00 : f32
    %13 = vector.broadcast %cst_8 : f32 to vector<128x256xf32>
    %14 = arith.addf %13, %12 : vector<128x256xf32>
    %cst_9 = arith.constant 1.000000e+00 : f32
    %15 = vector.broadcast %cst_9 : f32 to vector<128x256xf32>
    %16 = arith.divf %15, %14 : vector<128x256xf32>
    %cst_10 = arith.constant 1.06140542 : f32
    %17 = vector.broadcast %cst_10 : f32 to vector<128x256xf32>
    %18 = arith.mulf %16, %17 : vector<128x256xf32>
    %cst_11 = arith.constant -1.45315206 : f32
    %19 = vector.broadcast %cst_11 : f32 to vector<128x256xf32>
    %20 = arith.addf %19, %18 : vector<128x256xf32>
    %21 = arith.mulf %16, %20 : vector<128x256xf32>
    %cst_12 = arith.constant 1.42141378 : f32
    %22 = vector.broadcast %cst_12 : f32 to vector<128x256xf32>
    %23 = arith.addf %22, %21 : vector<128x256xf32>
    %24 = arith.mulf %16, %23 : vector<128x256xf32>
    %cst_13 = arith.constant -0.284496725 : f32
    %25 = vector.broadcast %cst_13 : f32 to vector<128x256xf32>
    %26 = arith.addf %25, %24 : vector<128x256xf32>
    %27 = arith.mulf %16, %26 : vector<128x256xf32>
    %cst_14 = arith.constant 0.254829586 : f32
    %28 = vector.broadcast %cst_14 : f32 to vector<128x256xf32>
    %29 = arith.addf %28, %27 : vector<128x256xf32>
    %30 = arith.mulf %16, %29 : vector<128x256xf32>
    %cst_15 = arith.constant 0.000000e+00 : f32
    %31 = vector.broadcast %cst_15 : f32 to vector<128x256xf32>
    %32 = arith.subf %31, %10 : vector<128x256xf32>
    %33 = arith.mulf %32, %10 : vector<128x256xf32>
    %34 = math.exp %33 : vector<128x256xf32>
    %35 = arith.mulf %30, %34 : vector<128x256xf32>
    %cst_16 = arith.constant 1.000000e+00 : f32
    %36 = vector.broadcast %cst_16 : f32 to vector<128x256xf32>
    %37 = arith.subf %36, %35 : vector<128x256xf32>
    %cst_17 = arith.constant 0.000000e+00 : f32
    %38 = vector.broadcast %cst_17 : f32 to vector<128x256xf32>
    %39 = arith.cmpf oge, %9, %38 : vector<128x256xf32>
    %cst_18 = arith.constant 0.000000e+00 : f32
    %40 = vector.broadcast %cst_18 : f32 to vector<128x256xf32>
    %41 = arith.subf %40, %37 : vector<128x256xf32>
    %42 = arith.select %39, %37, %41 : vector<128x256xi1>, vector<128x256xf32>
    %cst_19 = arith.constant 1.000000e+00 : f32
    %43 = vector.broadcast %cst_19 : f32 to vector<128x256xf32>
    %44 = arith.addf %43, %42 : vector<128x256xf32>
    %45 = arith.mulf %7, %44 : vector<128x256xf32>
    %46 = arith.truncf %45 : vector<128x256xf32> to vector<128x256xbf16>
    %c0_20 = arith.constant 0 : index
    %c0_21 = arith.constant 0 : index
    %47 = vector.load %arg4[%c0_20, %c0_21] : memref<256x256xbf16, #tpu.memory_space<vmem>>, vector<256x256xbf16>
    %cst_22 = arith.constant dense<0.000000e+00> : vector<128x256xf32>
    %48 = tpu.matmul %46, %47, %cst_22 {dimension_numbers = #tpu.dot_dimension_numbers<[1], [0], [0], [1], [0, 0, 1, 1], [], []>} : vector<128x256xbf16>, vector<256x256xbf16>, vector<128x256xf32> -> vector<128x256xf32>
    %c0_23 = arith.constant 0 : index
    %c0_24 = arith.constant 0 : index
    %49 = vector.load %arg5[%c0_23, %c0_24] : memref<1x256xf32, #tpu.memory_space<vmem>>, vector<1x256xf32>
    %50 = vector.broadcast %49 : vector<1x256xf32> to vector<128x256xf32>
    %51 = arith.addf %48, %50 : vector<128x256xf32>
    %cst_25 = arith.constant 5.000000e-01 : f32
    %52 = vector.broadcast %cst_25 : f32 to vector<128x256xf32>
    %53 = arith.mulf %52, %51 : vector<128x256xf32>
    %cst_26 = arith.constant 0.707106769 : f32
    %54 = vector.broadcast %cst_26 : f32 to vector<128x256xf32>
    %55 = arith.mulf %51, %54 : vector<128x256xf32>
    %56 = math.absf %55 : vector<128x256xf32>
    %cst_27 = arith.constant 0.327591091 : f32
    %57 = vector.broadcast %cst_27 : f32 to vector<128x256xf32>
    %58 = arith.mulf %57, %56 : vector<128x256xf32>
    %cst_28 = arith.constant 1.000000e+00 : f32
    %59 = vector.broadcast %cst_28 : f32 to vector<128x256xf32>
    %60 = arith.addf %59, %58 : vector<128x256xf32>
    %cst_29 = arith.constant 1.000000e+00 : f32
    %61 = vector.broadcast %cst_29 : f32 to vector<128x256xf32>
    %62 = arith.divf %61, %60 : vector<128x256xf32>
    %cst_30 = arith.constant 1.06140542 : f32
    %63 = vector.broadcast %cst_30 : f32 to vector<128x256xf32>
    %64 = arith.mulf %62, %63 : vector<128x256xf32>
    %cst_31 = arith.constant -1.45315206 : f32
    %65 = vector.broadcast %cst_31 : f32 to vector<128x256xf32>
    %66 = arith.addf %65, %64 : vector<128x256xf32>
    %67 = arith.mulf %62, %66 : vector<128x256xf32>
    %cst_32 = arith.constant 1.42141378 : f32
    %68 = vector.broadcast %cst_32 : f32 to vector<128x256xf32>
    %69 = arith.addf %68, %67 : vector<128x256xf32>
    %70 = arith.mulf %62, %69 : vector<128x256xf32>
    %cst_33 = arith.constant -0.284496725 : f32
    %71 = vector.broadcast %cst_33 : f32 to vector<128x256xf32>
    %72 = arith.addf %71, %70 : vector<128x256xf32>
    %73 = arith.mulf %62, %72 : vector<128x256xf32>
    %cst_34 = arith.constant 0.254829586 : f32
    %74 = vector.broadcast %cst_34 : f32 to vector<128x256xf32>
    %75 = arith.addf %74, %73 : vector<128x256xf32>
    %76 = arith.mulf %62, %75 : vector<128x256xf32>
    %cst_35 = arith.constant 0.000000e+00 : f32
    %77 = vector.broadcast %cst_35 : f32 to vector<128x256xf32>
    %78 = arith.subf %77, %56 : vector<128x256xf32>
    %79 = arith.mulf %78, %56 : vector<128x256xf32>
    %80 = math.exp %79 : vector<128x256xf32>
    %81 = arith.mulf %76, %80 : vector<128x256xf32>
    %cst_36 = arith.constant 1.000000e+00 : f32
    %82 = vector.broadcast %cst_36 : f32 to vector<128x256xf32>
    %83 = arith.subf %82, %81 : vector<128x256xf32>
    %cst_37 = arith.constant 0.000000e+00 : f32
    %84 = vector.broadcast %cst_37 : f32 to vector<128x256xf32>
    %85 = arith.cmpf oge, %55, %84 : vector<128x256xf32>
    %cst_38 = arith.constant 0.000000e+00 : f32
    %86 = vector.broadcast %cst_38 : f32 to vector<128x256xf32>
    %87 = arith.subf %86, %83 : vector<128x256xf32>
    %88 = arith.select %85, %83, %87 : vector<128x256xi1>, vector<128x256xf32>
    %cst_39 = arith.constant 1.000000e+00 : f32
    %89 = vector.broadcast %cst_39 : f32 to vector<128x256xf32>
    %90 = arith.addf %89, %88 : vector<128x256xf32>
    %91 = arith.mulf %53, %90 : vector<128x256xf32>
    %92 = arith.truncf %91 : vector<128x256xf32> to vector<128x256xbf16>
    %c0_40 = arith.constant 0 : index
    %c0_41 = arith.constant 0 : index
    %93 = vector.load %arg6[%c0_40, %c0_41] : memref<256x128xbf16, #tpu.memory_space<vmem>>, vector<256x128xbf16>
    %cst_42 = arith.constant dense<0.000000e+00> : vector<128x128xf32>
    %94 = tpu.matmul %92, %93, %cst_42 {dimension_numbers = #tpu.dot_dimension_numbers<[1], [0], [0], [1], [0, 0, 1, 1], [], []>} : vector<128x256xbf16>, vector<256x128xbf16>, vector<128x128xf32> -> vector<128x128xf32>
    %c0_43 = arith.constant 0 : index
    %c0_44 = arith.constant 0 : index
    %95 = vector.load %arg7[%c0_43, %c0_44] : memref<1x128xf32, #tpu.memory_space<vmem>>, vector<1x128xf32>
    %96 = vector.broadcast %95 : vector<1x128xf32> to vector<128x128xf32>
    %97 = arith.addf %94, %96 : vector<128x128xf32>
    %98 = arith.mulf %97, %97 : vector<128x128xf32>
    %cst_45 = arith.constant dense<0.000000e+00> : vector<128xf32>
    %99 = vector.multi_reduction <add>, %98, %cst_45 [1] : vector<128x128xf32> to vector<128xf32>
    %100 = vector.shape_cast %99 : vector<128xf32> to vector<128x1xf32>
    %cst_46 = arith.constant 1.000000e-24 : f32
    %101 = vector.broadcast %cst_46 : f32 to vector<128x1xf32>
    %102 = arith.maximumf %100, %101 : vector<128x1xf32>
    %103 = math.rsqrt %102 : vector<128x1xf32>
    %104 = vector.broadcast %103 : vector<128x1xf32> to vector<128x128xf32>
    %105 = arith.mulf %97, %104 : vector<128x128xf32>
    %106 = arith.truncf %105 : vector<128x128xf32> to vector<128x128xbf16>
    %c0_47 = arith.constant 0 : index
    %c0_48 = arith.constant 0 : index
    %107 = vector.load %arg8[%c0_47, %c0_48] : memref<128x128xbf16, #tpu.memory_space<vmem>>, vector<128x128xbf16>
    tpu.vector_store %arg8[%c0_47, %c0_48], %106 {strides = array<i32>} : memref<128x128xbf16, #tpu.memory_space<vmem>>, vector<128x128xbf16>,
    return
  }
  func.func @transform_0(%arg0: i32) -> (i32, i32) {
    %c0_i32 = arith.constant 0 : i32
    %c0_i32_0 = arith.constant 0 : i32
    return %arg0, %c0_i32 : i32, i32
  }
  func.func @transform_1(%arg0: i32) -> (i32, i32) {
    %c0_i32 = arith.constant 0 : i32
    %c0_i32_0 = arith.constant 0 : i32
    %c0_i32_1 = arith.constant 0 : i32
    return %c0_i32, %c0_i32_0 : i32, i32
  }
  func.func @transform_2(%arg0: i32) -> (i32, i32) {
    %c0_i32 = arith.constant 0 : i32
    %c0_i32_0 = arith.constant 0 : i32
    %c0_i32_1 = arith.constant 0 : i32
    return %c0_i32, %c0_i32_0 : i32, i32
  }
  func.func @transform_3(%arg0: i32) -> (i32, i32) {
    %c0_i32 = arith.constant 0 : i32
    %c0_i32_0 = arith.constant 0 : i32
    %c0_i32_1 = arith.constant 0 : i32
    return %c0_i32, %c0_i32_0 : i32, i32
  }
  func.func @transform_4(%arg0: i32) -> (i32, i32) {
    %c0_i32 = arith.constant 0 : i32
    %c0_i32_0 = arith.constant 0 : i32
    %c0_i32_1 = arith.constant 0 : i32
    return %c0_i32, %c0_i32_0 : i32, i32
  }
  func.func @transform_5(%arg0: i32) -> (i32, i32) {
    %c0_i32 = arith.constant 0 : i32
    %c0_i32_0 = arith.constant 0 : i32
    %c0_i32_1 = arith.constant 0 : i32
    return %c0_i32, %c0_i32_0 : i32, i32
  }
  func.func @transform_6(%arg0: i32) -> (i32, i32) {
    %c0_i32 = arith.constant 0 : i32
    %c0_i32_0 = arith.constant 0 : i32
    %c0_i32_1 = arith.constant 0 : i32
    return %c0_i32, %c0_i32_0 : i32, i32
  }
  func.func @transform_7(%arg0: i32) -> (i32, i32) {
    %c0_i32 = arith.constant 0 : i32
    %c0_i32_0 = arith.constant 0 : i32
    return %arg0, %c0_i32 : i32, i32
  }
}

module attributes {stable_mosaic.version = 11 : i64} {
  func.func @_mlp_norm_kernel(%arg0: i32, %arg1: memref<128x128xbf16, #tpu.memory_space<vmem>>, %arg2: memref<128x256xbf16, #tpu.memory_space<vmem>>, %arg3: memref<1x256xf32, #tpu.memory_space<vmem>>, %arg4: memref<256x256xbf16, #tpu.memory_space<vmem>>, %arg5: memref<1x256xf32, #tpu.memory_space<vmem>>, %arg6: memref<256x128xbf16, #tpu.memory_space<vmem>>, %arg7: memref<1x128xf32, #tpu.memory_space<vmem>>, %arg8: memref<128x128xbf16, #tpu.memory_space<vmem>>) attributes {dimension_semantics = [#tpu.dimension_semantics<parallel>], iteration_bounds = array<i64: 2>, scalar_prefetch = 0 : i64, scratch_operands = 0 : i64, tpu.core_type = #tpu.core_type<tc>, window_params = [{transform_indices = @transform_0, window_bounds = array<i64: 128, 128>}, {pipeline_mode = #tpu.pipeline_mode<synchronous>, transform_indices = @transform_1, window_bounds = array<i64: 128, 256>}, {pipeline_mode = #tpu.pipeline_mode<synchronous>, transform_indices = @transform_2, window_bounds = array<i64: 1, 256>}, {pipeline_mode = #tpu.pipeline_mode<synchronous>, transform_indices = @transform_3, window_bounds = array<i64: 256, 256>}, {pipeline_mode = #tpu.pipeline_mode<synchronous>, transform_indices = @transform_4, window_bounds = array<i64: 1, 256>}, {pipeline_mode = #tpu.pipeline_mode<synchronous>, transform_indices = @transform_5, window_bounds = array<i64: 256, 128>}, {pipeline_mode = #tpu.pipeline_mode<synchronous>, transform_indices = @transform_6, window_bounds = array<i64: 1, 128>}, {transform_indices = @transform_7, window_bounds = array<i64: 128, 128>}]} {
    %c0 = arith.constant 0 : index
    %c0_0 = arith.constant 0 : index
    %0 = vector.load %arg1[%c0, %c0_0] : memref<128x128xbf16, #tpu.memory_space<vmem>>, vector<128x128xbf16>
    %c0_1 = arith.constant 0 : index
    %c0_2 = arith.constant 0 : index
    %1 = vector.load %arg2[%c0_1, %c0_2] : memref<128x256xbf16, #tpu.memory_space<vmem>>, vector<128x256xbf16>
    %cst = arith.constant dense<0.000000e+00> : vector<128x256xf32>
    %2 = tpu.matmul %0, %1, %cst {dimension_numbers = #tpu.dot_dimension_numbers<[1], [0], [0], [1], [0, 0, 1, 1], [], []>} : vector<128x128xbf16>, vector<128x256xbf16>, vector<128x256xf32> -> vector<128x256xf32>
    %c0_3 = arith.constant 0 : index
    %c0_4 = arith.constant 0 : index
    %3 = vector.load %arg3[%c0_3, %c0_4] : memref<1x256xf32, #tpu.memory_space<vmem>>, vector<1x256xf32>
    %4 = vector.broadcast %3 : vector<1x256xf32> to vector<128x256xf32>
    %5 = arith.addf %2, %4 : vector<128x256xf32>
    %cst_5 = arith.constant 5.000000e-01 : f32
    %6 = vector.broadcast %cst_5 : f32 to vector<128x256xf32>
    %7 = arith.mulf %6, %5 : vector<128x256xf32>
    %cst_6 = arith.constant 0.707106769 : f32
    %8 = vector.broadcast %cst_6 : f32 to vector<128x256xf32>
    %9 = arith.mulf %5, %8 : vector<128x256xf32>
    %10 = math.absf %9 : vector<128x256xf32>
    %cst_7 = arith.constant 0.327591091 : f32
    %11 = vector.broadcast %cst_7 : f32 to vector<128x256xf32>
    %12 = arith.mulf %11, %10 : vector<128x256xf32>
    %cst_8 = arith.constant 1.000000e+00 : f32
    %13 = vector.broadcast %cst_8 : f32 to vector<128x256xf32>
    %14 = arith.addf %13, %12 : vector<128x256xf32>
    %cst_9 = arith.constant 1.000000e+00 : f32
    %15 = vector.broadcast %cst_9 : f32 to vector<128x256xf32>
    %16 = arith.divf %15, %14 : vector<128x256xf32>
    %cst_10 = arith.constant 1.06140542 : f32
    %17 = vector.broadcast %cst_10 : f32 to vector<128x256xf32>
    %18 = arith.mulf %16, %17 : vector<128x256xf32>
    %cst_11 = arith.constant -1.45315206 : f32
    %19 = vector.broadcast %cst_11 : f32 to vector<128x256xf32>
    %20 = arith.addf %19, %18 : vector<128x256xf32>
    %21 = arith.mulf %16, %20 : vector<128x256xf32>
    %cst_12 = arith.constant 1.42141378 : f32
    %22 = vector.broadcast %cst_12 : f32 to vector<128x256xf32>
    %23 = arith.addf %22, %21 : vector<128x256xf32>
    %24 = arith.mulf %16, %23 : vector<128x256xf32>
    %cst_13 = arith.constant -0.284496725 : f32
    %25 = vector.broadcast %cst_13 : f32 to vector<128x256xf32>
    %26 = arith.addf %25, %24 : vector<128x256xf32>
    %27 = arith.mulf %16, %26 : vector<128x256xf32>
    %cst_14 = arith.constant 0.254829586 : f32
    %28 = vector.broadcast %cst_14 : f32 to vector<128x256xf32>
    %29 = arith.addf %28, %27 : vector<128x256xf32>
    %30 = arith.mulf %16, %29 : vector<128x256xf32>
    %cst_15 = arith.constant 0.000000e+00 : f32
    %31 = vector.broadcast %cst_15 : f32 to vector<128x256xf32>
    %32 = arith.subf %31, %10 : vector<128x256xf32>
    %33 = arith.mulf %32, %10 : vector<128x256xf32>
    %34 = math.exp %33 : vector<128x256xf32>
    %35 = arith.mulf %30, %34 : vector<128x256xf32>
    %cst_16 = arith.constant 1.000000e+00 : f32
    %36 = vector.broadcast %cst_16 : f32 to vector<128x256xf32>
    %37 = arith.subf %36, %35 : vector<128x256xf32>
    %cst_17 = arith.constant 0.000000e+00 : f32
    %38 = vector.broadcast %cst_17 : f32 to vector<128x256xf32>
    %39 = arith.cmpf oge, %9, %38 : vector<128x256xf32>
    %cst_18 = arith.constant 0.000000e+00 : f32
    %40 = vector.broadcast %cst_18 : f32 to vector<128x256xf32>
    %41 = arith.subf %40, %37 : vector<128x256xf32>
    %42 = arith.select %39, %37, %41 : vector<128x256xi1>, vector<128x256xf32>
    %cst_19 = arith.constant 1.000000e+00 : f32
    %43 = vector.broadcast %cst_19 : f32 to vector<128x256xf32>
    %44 = arith.addf %43, %42 : vector<128x256xf32>
    %45 = arith.mulf %7, %44 : vector<128x256xf32>
    %46 = arith.truncf %45 : vector<128x256xf32> to vector<128x256xbf16>
    %c0_20 = arith.constant 0 : index
    %c0_21 = arith.constant 0 : index
    %47 = vector.load %arg4[%c0_20, %c0_21] : memref<256x256xbf16, #tpu.memory_space<vmem>>, vector<256x256xbf16>
    %cst_22 = arith.constant dense<0.000000e+00> : vector<128x256xf32>
    %48 = tpu.matmul %46, %47, %cst_22 {dimension_numbers = #tpu.dot_dimension_numbers<[1], [0], [0], [1], [0, 0, 1, 1], [], []>} : vector<128x256xbf16>, vector<256x256xbf16>, vector<128x256xf32> -> vector<128x256xf32>
    %c0_23 = arith.constant 0 : index
    %c0_24 = arith.constant 0 : index
    %49 = vector.load %arg5[%c0_23, %c0_24] : memref<1x256xf32, #tpu.memory_space<vmem>>, vector<1x256xf32>
    %50 = vector.broadcast %49 : vector<1x256xf32> to vector<128x256xf32>
    %51 = arith.addf %48, %50 : vector<128x256xf32>
    %cst_25 = arith.constant 5.000000e-01 : f32
    %52 = vector.broadcast %cst_25 : f32 to vector<128x256xf32>
    %53 = arith.mulf %52, %51 : vector<128x256xf32>
    %cst_26 = arith.constant 0.707106769 : f32
    %54 = vector.broadcast %cst_26 : f32 to vector<128x256xf32>
    %55 = arith.mulf %51, %54 : vector<128x256xf32>
    %56 = math.absf %55 : vector<128x256xf32>
    %cst_27 = arith.constant 0.327591091 : f32
    %57 = vector.broadcast %cst_27 : f32 to vector<128x256xf32>
    %58 = arith.mulf %57, %56 : vector<128x256xf32>
    %cst_28 = arith.constant 1.000000e+00 : f32
    %59 = vector.broadcast %cst_28 : f32 to vector<128x256xf32>
    %60 = arith.addf %59, %58 : vector<128x256xf32>
    %cst_29 = arith.constant 1.000000e+00 : f32
    %61 = vector.broadcast %cst_29 : f32 to vector<128x256xf32>
    %62 = arith.divf %61, %60 : vector<128x256xf32>
    %cst_30 = arith.constant 1.06140542 : f32
    %63 = vector.broadcast %cst_30 : f32 to vector<128x256xf32>
    %64 = arith.mulf %62, %63 : vector<128x256xf32>
    %cst_31 = arith.constant -1.45315206 : f32
    %65 = vector.broadcast %cst_31 : f32 to vector<128x256xf32>
    %66 = arith.addf %65, %64 : vector<128x256xf32>
    %67 = arith.mulf %62, %66 : vector<128x256xf32>
    %cst_32 = arith.constant 1.42141378 : f32
    %68 = vector.broadcast %cst_32 : f32 to vector<128x256xf32>
    %69 = arith.addf %68, %67 : vector<128x256xf32>
    %70 = arith.mulf %62, %69 : vector<128x256xf32>
    %cst_33 = arith.constant -0.284496725 : f32
    %71 = vector.broadcast %cst_33 : f32 to vector<128x256xf32>
    %72 = arith.addf %71, %70 : vector<128x256xf32>
    %73 = arith.mulf %62, %72 : vector<128x256xf32>
    %cst_34 = arith.constant 0.254829586 : f32
    %74 = vector.broadcast %cst_34 : f32 to vector<128x256xf32>
    %75 = arith.addf %74, %73 : vector<128x256xf32>
    %76 = arith.mulf %62, %75 : vector<128x256xf32>
    %cst_35 = arith.constant 0.000000e+00 : f32
    %77 = vector.broadcast %cst_35 : f32 to vector<128x256xf32>
    %78 = arith.subf %77, %56 : vector<128x256xf32>
    %79 = arith.mulf %78, %56 : vector<128x256xf32>
    %80 = math.exp %79 : vector<128x256xf32>
    %81 = arith.mulf %76, %80 : vector<128x256xf32>
    %cst_36 = arith.constant 1.000000e+00 : f32
    %82 = vector.broadcast %cst_36 : f32 to vector<128x256xf32>
    %83 = arith.subf %82, %81 : vector<128x256xf32>
    %cst_37 = arith.constant 0.000000e+00 : f32
    %84 = vector.broadcast %cst_37 : f32 to vector<128x256xf32>
    %85 = arith.cmpf oge, %55, %84 : vector<128x256xf32>
    %cst_38 = arith.constant 0.000000e+00 : f32
    %86 = vector.broadcast %cst_38 : f32 to vector<128x256xf32>
    %87 = arith.subf %86, %83 : vector<128x256xf32>
    %88 = arith.select %85, %83, %87 : vector<128x256xi1>, vector<128x256xf32>
    %cst_39 = arith.constant 1.000000e+00 : f32
    %89 = vector.broadcast %cst_39 : f32 to vector<128x256xf32>
    %90 = arith.addf %89, %88 : vector<128x256xf32>
    %91 = arith.mulf %53, %90 : vector<128x256xf32>
    %92 = arith.truncf %91 : vector<128x256xf32> to vector<128x256xbf16>
    %c0_40 = arith.constant 0 : index
    %c0_41 = arith.constant 0 : index
    %93 = vector.load %arg6[%c0_40, %c0_41] : memref<256x128xbf16, #tpu.memory_space<vmem>>, vector<256x128xbf16>
    %cst_42 = arith.constant dense<0.000000e+00> : vector<128x128xf32>
    %94 = tpu.matmul %92, %93, %cst_42 {dimension_numbers = #tpu.dot_dimension_numbers<[1], [0], [0], [1], [0, 0, 1, 1], [], []>} : vector<128x256xbf16>, vector<256x128xbf16>, vector<128x128xf32> -> vector<128x128xf32>
    %c0_43 = arith.constant 0 : index
    %c0_44 = arith.constant 0 : index
    %95 = vector.load %arg7[%c0_43, %c0_44] : memref<1x128xf32, #tpu.memory_space<vmem>>, vector<1x128xf32>
    %96 = vector.broadcast %95 : vector<1x128xf32> to vector<128x128xf32>
    %97 = arith.addf %94, %96 : vector<128x128xf32>
    %98 = arith.mulf %97, %97 : vector<128x128xf32>
    %cst_45 = arith.constant dense<0.000000e+00> : vector<128xf32>
    %99 = vector.multi_reduction <add>, %98, %cst_45 [1] : vector<128x128xf32> to vector<128xf32>
    %100 = vector.shape_cast %99 : vector<128xf32> to vector<128x1xf32>
    %cst_46 = arith.constant 1.000000e-24 : f32
    %101 = vector.broadcast %cst_46 : f32 to vector<128x1xf32>
    %102 = arith.maximumf %100, %101 : vector<128x1xf32>
    %103 = math.rsqrt %102 : vector<128x1xf32>
    %104 = vector.broadcast %103 : vector<128x1xf32> to vector<128x128xf32>
    %105 = arith.mulf %97, %104 : vector<128x128xf32>
    %106 = arith.truncf %105 : vector<128x128xf32> to vector<128x128xbf16>
    %c0_47 = arith.constant 0 : index
    %c0_48 = arith.constant 0 : index
    %107 = vector.load %arg8[%c0_47, %c0_48] : memref<128x128xbf16, #tpu.memory_space<vmem>>, vector<128x128xbf16>
    tpu.vector_store %arg8[%c0_47, %c0_48], %106 {strides = array<i32>} : memref<128x128xbf16, #tpu.memory_space<vmem>>, vector<128x128xbf16>,
    return
  }
  func.func @transform_0(%arg0: i32) -> (i32, i32) {
    %c0_i32 = arith.constant 0 : i32
    %c0_i32_0 = arith.constant 0 : i32
    return %arg0, %c0_i32 : i32, i32
  }
  func.func @transform_1(%arg0: i32) -> (i32, i32) {
    %c0_i32 = arith.constant 0 : i32
    %c0_i32_0 = arith.constant 0 : i32
    %c0_i32_1 = arith.constant 0 : i32
    return %c0_i32, %c0_i32_0 : i32, i32
  }
  func.func @transform_2(%arg0: i32) -> (i32, i32) {
    %c0_i32 = arith.constant 0 : i32
    %c0_i32_0 = arith.constant 0 : i32
    %c0_i32_1 = arith.constant 0 : i32
    return %c0_i32, %c0_i32_0 : i32, i32
  }
  func.func @transform_3(%arg0: i32) -> (i32, i32) {
    %c0_i32 = arith.constant 0 : i32
    %c0_i32_0 = arith.constant 0 : i32
    %c0_i32_1 = arith.constant 0 : i32
    return %c0_i32, %c0_i32_0 : i32, i32
  }
  func.func @transform_4(%arg0: i32) -> (i32, i32) {
    %c0_i32 = arith.constant 0 : i32
    %c0_i32_0 = arith.constant 0 : i32
    %c0_i32_1 = arith.constant 0 : i32
    return %c0_i32, %c0_i32_0 : i32, i32
  }
  func.func @transform_5(%arg0: i32) -> (i32, i32) {
    %c0_i32 = arith.constant 0 : i32
    %c0_i32_0 = arith.constant 0 : i32
    %c0_i32_1 = arith.constant 0 : i32
    return %c0_i32, %c0_i32_0 : i32, i32
  }
  func.func @transform_6(%arg0: i32) -> (i32, i32) {
    %c0_i32 = arith.constant 0 : i32
    %c0_i32_0 = arith.constant 0 : i32
    %c0_i32_1 = arith.constant 0 : i32
    return %c0_i32, %c0_i32_0 : i32, i32
  }
  func.func @transform_7(%arg0: i32) -> (i32, i32) {
    %c0_i32 = arith.constant 0 : i32
    %c0_i32_0 = arith.constant 0 : i32
    return %arg0, %c0_i32 : i32, i32
  }
}

</mosaic_0001>

<llo_original>
// kernel: tpu_custom_call.1
$region0: #{tpu_custom_call.1}
  #allocation0 [shape = 'u32[]', space=smem, size = 0x4, offset = 0x4, fixed_abs, tag = 'smem constant byte address 0x4 - core index']
  #allocation1 [shape = 'u32[144,128]{1,0:T(1,128)}', space=vmem, size = 0x12000, scoped, tag = 'internal scratch']
  %s0 = inlined_call_operand.hbm [shape: bf16[256,128], index: 0, kind: input, shape index: {}]
  %s1 = inlined_call_operand.hbm [shape: bf16[128,256], index: 1, kind: input, shape index: {}]
  %s2 = inlined_call_operand.vmem [shape: f32[1,256], index: 2, kind: input, shape index: {}]
  %s3 = inlined_call_operand.hbm [shape: bf16[256,256], index: 3, kind: input, shape index: {}]
  %s4 = inlined_call_operand.vmem [shape: f32[1,256], index: 4, kind: input, shape index: {}]
  %s5 = inlined_call_operand.hbm [shape: bf16[256,128], index: 5, kind: input, shape index: {}]
  %s6 = inlined_call_operand.vmem [shape: f32[1,128], index: 6, kind: input, shape index: {}]
  %s7 = inlined_call_operand.hbm [shape: bf16[256,128], index: 7, kind: output, shape index: {}]
  %s8 = sld [smem:[#allocation0]]
  $region77: #{tpu_custom_call.1} parent=0
    _
  %s10 = ssub.s32 1, %s8
  %s11 = scalar_select 0, %s10, %s8
  $region1: #{tpu_custom_call.1} parent=0
    #allocation2 [shape = 'u8[65536]{0}', space=vmem, size = 0x10000, scoped, tag = 'input window, operand 0']
    #allocation3 [shape = 's32[2]{0}', space=sflag, size = 0x8, scoped, tag = 'scoped memory for tpu_custom_call.1']
    #allocation4 [shape = 's32[2]{0}', space=sflag, size = 0x8, scoped, tag = 'scoped memory for tpu_custom_call.1']
    #allocation5 [shape = 'u8[65536]{0}', space=vmem, size = 0x10000, scoped, tag = 'input window, operand 1, single buffered']
    #allocation6 [shape = 's32[1]{0}', space=sflag, size = 0x4, scoped, tag = 'scoped memory for tpu_custom_call.1']
    #allocation7 [shape = 'u8[131072]{0}', space=vmem, size = 0x20000, scoped, tag = 'input window, operand 3, single buffered']
    #allocation8 [shape = 'u8[65536]{0}', space=vmem, size = 0x10000, scoped, tag = 'input window, operand 5, single buffered']
    #allocation9 [shape = 's32[1]{0}', space=sflag, size = 0x4, scoped, tag = 'scoped memory for tpu_custom_call.1']
    #allocation10 [shape = 'u8[65536]{0}', space=vmem, size = 0x10000, scoped, tag = 'output window, operand 0']
    %12 = vsyncpa [#allocation3], 0
    %s13 = scalar_lea.sflag [#allocation3], 1
    %14 = vsyncpa %s13, 0
    %15 = vsyncpa [#allocation6], 0
    %16 = vsyncpa [#allocation9], 0
    %17 = vsyncpa [#allocation4], 0
    %s18 = scalar_lea.sflag [#allocation4], 1
    %19 = vsyncpa %s18, 0
    loop: start=0, step=1, limit=4
    $region2: #{tpu_custom_call.1} parent=1 // loop_pre_header
      _
    $region3: #{tpu_custom_call.1} parent=1 // loop_header
      %s21 = sphi 0, %s25
      %p22 = scmp.ge.s32.totalorder %s21, 4
      %s31 = sphi 0, %s33
      %s34 = sphi 0, %s31
      %s35 = sphi 0, %s34
      %s51 = sphi 0, %s35
      %s55 = sphi 0, %s55
      %s57 = sphi 0, %s55
      %s58 = sphi 0, %s57
      %s72 = sphi 0, %s58
      %s76 = sphi 0, %s76
      %s78 = sphi 0, %s76
      %s79 = sphi 0, %s78
      %s93 = sphi 0, %s79
      %s97 = sphi 0, %s97
      %s99 = sphi 0, %s97
      %s100 = sphi 0, %s99
      %s114 = sphi 0, %s100
      %s118 = sphi 0, %s118
      %s120 = sphi 0, %s118
      %s121 = sphi 0, %s120
      %s135 = sphi 0, %s121
      %s139 = sphi 0, %s139
      %s141 = sphi 0, %s139
      %s142 = sphi 0, %s141
      %s156 = sphi 0, %s142
      %s160 = sphi 0, %s160
      %s162 = sphi 0, %s160
      %s163 = sphi 0, %s162
      %s177 = sphi 0, %s163
      %s183 = sphi 0, %s185
      %s186 = sphi 0, %s183
      %s187 = sphi 0, %s186
      %s203 = sphi 0, %s187
    $region4: #{tpu_custom_call.1} parent=1 // loop_header_branch
      %24 = sbr.rel (%p22) target = $region8
    $region5: #{tpu_custom_call.1} parent=1 // loop_body
      %s26 = ssub.s32 %s21, 1
      %s27 = ssub.s32 %s21, 2
      %s28 = sadd.s32 %s21, 1
      %s29 = ssub.s32 %s21, %s28
      %p30 = scmp.eq.s32.totalorder %s29, 0
      %s32 = sadd.s32 %s31, 1
      %s33 = scalar_select %p30, %s31, %s32
      %p36 = pneg %p30
      %p37 = scmp.eq.s32.totalorder %s21, 1
      %p38 = por %p36, %p37
      %p39 = scmp.ne.s32.totalorder %s31, %s34
      %p40 = scmp.eq.s32.totalorder %s21, 0
      %p41 = por %p39, %p40
      %p42 = scmp.ne.s32.totalorder %s31, %s34
      %p43 = scmp.eq.s32.totalorder %s26, 1
      %p44 = por %p42, %p43
      %p45 = scmp.ne.s32.totalorder %s34, %s35
      %p46 = scmp.eq.s32.totalorder %s26, 0
      %p47 = por %p45, %p46
      %p48 = scmp.ne.s32.totalorder %s34, %s35
      %p49 = scmp.eq.s32.totalorder %s27, 1
      %p50 = por %p48, %p49
      %p52 = scmp.ne.s32.totalorder %s35, %s51
      %p53 = scmp.eq.s32.totalorder %s27, 0
      %p54 = por %p52, %p53
      %s56 = sadd.s32 %s55, 1
      %p59 = scmp.eq.s32.totalorder %s21, 1
      %p60 = scmp.ne.s32.totalorder %s55, %s57
      %p61 = scmp.eq.s32.totalorder %s21, 0
      %p62 = por %p60, %p61
      %p63 = scmp.ne.s32.totalorder %s55, %s57
      %p64 = scmp.eq.s32.totalorder %s26, 1
      %p65 = por %p63, %p64
      %p66 = scmp.ne.s32.totalorder %s57, %s58
      %p67 = scmp.eq.s32.totalorder %s26, 0
      %p68 = por %p66, %p67
      %p69 = scmp.ne.s32.totalorder %s57, %s58
      %p70 = scmp.eq.s32.totalorder %s27, 1
      %p71 = por %p69, %p70
      %p73 = scmp.ne.s32.totalorder %s58, %s72
      %p74 = scmp.eq.s32.totalorder %s27, 0
      %p75 = por %p73, %p74
      %s77 = sadd.s32 %s76, 1
      %p80 = scmp.eq.s32.totalorder %s21, 1
      %p81 = scmp.ne.s32.totalorder %s76, %s78
      %p82 = scmp.eq.s32.totalorder %s21, 0
      %p83 = por %p81, %p82
      %p84 = scmp.ne.s32.totalorder %s76, %s78
      %p85 = scmp.eq.s32.totalorder %s26, 1
      %p86 = por %p84, %p85
      %p87 = scmp.ne.s32.totalorder %s78, %s79
      %p88 = scmp.eq.s32.totalorder %s26, 0
      %p89 = por %p87, %p88
      %p90 = scmp.ne.s32.totalorder %s78, %s79
      %p91 = scmp.eq.s32.totalorder %s27, 1
      %p92 = por %p90, %p91
      %p94 = scmp.ne.s32.totalorder %s79, %s93
      %p95 = scmp.eq.s32.totalorder %s27, 0
      %p96 = por %p94, %p95
      %s98 = sadd.s32 %s97, 1
      %p101 = scmp.eq.s32.totalorder %s21, 1
      %p102 = scmp.ne.s32.totalorder %s97, %s99
      %p103 = scmp.eq.s32.totalorder %s21, 0
      %p104 = por %p102, %p103
      %p105 = scmp.ne.s32.totalorder %s97, %s99
      %p106 = scmp.eq.s32.totalorder %s26, 1
      %p107 = por %p105, %p106
      %p108 = scmp.ne.s32.totalorder %s99, %s100
      %p109 = scmp.eq.s32.totalorder %s26, 0
      %p110 = por %p108, %p109
      %p111 = scmp.ne.s32.totalorder %s99, %s100
      %p112 = scmp.eq.s32.totalorder %s27, 1
      %p113 = por %p111, %p112
      %p115 = scmp.ne.s32.totalorder %s100, %s114
      %p116 = scmp.eq.s32.totalorder %s27, 0
      %p117 = por %p115, %p116
      %s119 = sadd.s32 %s118, 1
      %p122 = scmp.eq.s32.totalorder %s21, 1
      %p123 = scmp.ne.s32.totalorder %s118, %s120
      %p124 = scmp.eq.s32.totalorder %s21, 0
      %p125 = por %p123, %p124
      %p126 = scmp.ne.s32.totalorder %s118, %s120
      %p127 = scmp.eq.s32.totalorder %s26, 1
      %p128 = por %p126, %p127
      %p129 = scmp.ne.s32.totalorder %s120, %s121
      %p130 = scmp.eq.s32.totalorder %s26, 0
      %p131 = por %p129, %p130
      %p132 = scmp.ne.s32.totalorder %s120, %s121
      %p133 = scmp.eq.s32.totalorder %s27, 1
      %p134 = por %p132, %p133
      %p136 = scmp.ne.s32.totalorder %s121, %s135
      %p137 = scmp.eq.s32.totalorder %s27, 0
      %p138 = por %p136, %p137
      %s140 = sadd.s32 %s139, 1
      %p143 = scmp.eq.s32.totalorder %s21, 1
      %p144 = scmp.ne.s32.totalorder %s139, %s141
      %p145 = scmp.eq.s32.totalorder %s21, 0
      %p146 = por %p144, %p145
      %p147 = scmp.ne.s32.totalorder %s139, %s141
      %p148 = scmp.eq.s32.totalorder %s26, 1
      %p149 = por %p147, %p148
      %p150 = scmp.ne.s32.totalorder %s141, %s142
      %p151 = scmp.eq.s32.totalorder %s26, 0
      %p152 = por %p150, %p151
      %p153 = scmp.ne.s32.totalorder %s141, %s142
      %p154 = scmp.eq.s32.totalorder %s27, 1
      %p155 = por %p153, %p154
      %p157 = scmp.ne.s32.totalorder %s142, %s156
      %p158 = scmp.eq.s32.totalorder %s27, 0
      %p159 = por %p157, %p158
      %s161 = sadd.s32 %s160, 1
      %p164 = scmp.eq.s32.totalorder %s21, 1
      %p165 = scmp.ne.s32.totalorder %s160, %s162
      %p166 = scmp.eq.s32.totalorder %s21, 0
      %p167 = por %p165, %p166
      %p168 = scmp.ne.s32.totalorder %s160, %s162
      %p169 = scmp.eq.s32.totalorder %s26, 1
      %p170 = por %p168, %p169
      %p171 = scmp.ne.s32.totalorder %s162, %s163
      %p172 = scmp.eq.s32.totalorder %s26, 0
      %p173 = por %p171, %p172
      %p174 = scmp.ne.s32.totalorder %s162, %s163
      %p175 = scmp.eq.s32.totalorder %s27, 1
      %p176 = por %p174, %p175
      %p178 = scmp.ne.s32.totalorder %s163, %s177
      %p179 = scmp.eq.s32.totalorder %s27, 0
      %p180 = por %p178, %p179
      %s181 = ssub.s32 %s21, %s28
      %p182 = scmp.eq.s32.totalorder %s181, 0
      %s184 = sadd.s32 %s183, 1
      %s185 = scalar_select %p182, %s183, %s184
      %p188 = pneg %p182
      %p189 = scmp.eq.s32.totalorder %s21, 1
      %p190 = por %p188, %p189
      %p191 = scmp.ne.s32.totalorder %s183, %s186
      %p192 = scmp.eq.s32.totalorder %s21, 0
      %p193 = por %p191, %p192
      %p194 = scmp.ne.s32.totalorder %s183, %s186
      %p195 = scmp.eq.s32.totalorder %s26, 1
      %p196 = por %p194, %p195
      %p197 = scmp.ne.s32.totalorder %s186, %s187
      %p198 = scmp.eq.s32.totalorder %s26, 0
      %p199 = por %p197, %p198
      %p200 = scmp.ne.s32.totalorder %s186, %s187
      %p201 = scmp.eq.s32.totalorder %s27, 1
      %p202 = por %p200, %p201
      %p204 = scmp.ne.s32.totalorder %s187, %s203
      %p205 = scmp.eq.s32.totalorder %s27, 0
      %p206 = por %p204, %p205
      %p207 = scmp.le.s32.totalorder 1, %s21
      %p208 = scmp.lt.s32.totalorder %s21, 3
      %p209 = pnand %p207, %p208
      %p210 = pneg %p209
      // Predicated region
      $region9: #{tpu_custom_call.1} parent=5 // pred_check
        _
      $region10: #{tpu_custom_call.1} parent=5 // pred_check_branch
        %212 = sbr.rel (%p209) target = $region12
      $region11: #{tpu_custom_call.1} parent=5 // pred_region
        %s213 = ssub.s32 %s21, 1
        // Predicated region
        $region13: #{tpu_custom_call.1} parent=11 // pred_check
          %p214 = pneg %p68
        $region14: #{tpu_custom_call.1} parent=11 // pred_check_branch
          %216 = sbr.rel (%p214) target = $region16
        $region15: #{tpu_custom_call.1} parent=11 // pred_region
          %s218 = ssub.s32 2048, 2048
          %219 = vsyncadd [#allocation6], %s218
          %s220 = sshll.u32 [#allocation5], 4
          %s221 = int_to_ptr.vmem [resolvable:$true] %s220
          %226 = dma.hbm_to_vmem [thread:$0]  %s1, 2048, %s221, [#allocation6], 128, 128, 8
        $region16: #{tpu_custom_call.1} parent=11 // pred_fallthru
          _
        // Predicated region
        $region17: #{tpu_custom_call.1} parent=11 // pred_check
          %p227 = pneg %p89
        $region18: #{tpu_custom_call.1} parent=11 // pred_check_branch
          %229 = sbr.rel (%p227) target = $region20
        $region19: #{tpu_custom_call.1} parent=11 // pred_region
          _
        $region20: #{tpu_custom_call.1} parent=11 // pred_fallthru
          _
        // Predicated region
        $region21: #{tpu_custom_call.1} parent=11 // pred_check
          %p230 = pneg %p110
        $region22: #{tpu_custom_call.1} parent=11 // pred_check_branch
          %232 = sbr.rel (%p230) target = $region24
        $region23: #{tpu_custom_call.1} parent=11 // pred_region
          %s234 = ssub.s32 4096, 4096
          %235 = vsyncadd [#allocation6], %s234
          %s236 = sshll.u32 [#allocation7], 4
          %s237 = int_to_ptr.vmem [resolvable:$true] %s236
          %242 = dma.hbm_to_vmem [thread:$0]  %s3, 4096, %s237, [#allocation6], 128, 128, 8
        $region24: #{tpu_custom_call.1} parent=11 // pred_fallthru
          _
        // Predicated region
        $region25: #{tpu_custom_call.1} parent=11 // pred_check
          %p243 = pneg %p131
        $region26: #{tpu_custom_call.1} parent=11 // pred_check_branch
          %245 = sbr.rel (%p243) target = $region28
        $region27: #{tpu_custom_call.1} parent=11 // pred_region
          _
        $region28: #{tpu_custom_call.1} parent=11 // pred_fallthru
          _
        // Predicated region
        $region29: #{tpu_custom_call.1} parent=11 // pred_check
          %p246 = pneg %p152
        $region30: #{tpu_custom_call.1} parent=11 // pred_check_branch
          %248 = sbr.rel (%p246) target = $region32
        $region31: #{tpu_custom_call.1} parent=11 // pred_region
          %s250 = ssub.s32 2048, 2048
          %251 = vsyncadd [#allocation9], %s250
          %s252 = sshll.u32 [#allocation8], 4
          %s253 = int_to_ptr.vmem [resolvable:$true] %s252
          %258 = dma.hbm_to_vmem [thread:$0]  %s5, 2048, %s253, [#allocation9], 64, 64, 4
        $region32: #{tpu_custom_call.1} parent=11 // pred_fallthru
          _
        // Predicated region
        $region33: #{tpu_custom_call.1} parent=11 // pred_check
          %p259 = pneg %p173
        $region34: #{tpu_custom_call.1} parent=11 // pred_check_branch
          %261 = sbr.rel (%p259) target = $region36
        $region35: #{tpu_custom_call.1} parent=11 // pred_region
          _
        $region36: #{tpu_custom_call.1} parent=11 // pred_fallthru
          _
      $region12: #{tpu_custom_call.1} parent=5 // pred_fallthru
        _
      %p262 = scmp.lt.s32.totalorder %s21, 2
      // Predicated region
      $region37: #{tpu_custom_call.1} parent=5 // pred_check
        %p263 = pneg %p262
      $region38: #{tpu_custom_call.1} parent=5 // pred_check_branch
        %265 = sbr.rel (%p263) target = $region40
      $region39: #{tpu_custom_call.1} parent=5 // pred_region
        // Predicated region
        $region41: #{tpu_custom_call.1} parent=39 // pred_check
          %p266 = pneg %p41
        $region42: #{tpu_custom_call.1} parent=39 // pred_check_branch
          %268 = sbr.rel (%p266) target = $region44
        $region43: #{tpu_custom_call.1} parent=39 // pred_region
          %s269 = sand.u32 %s31, 1
          %s270 = scalar_lea.sflag [#allocation3], %s269
          %s271 = sand.u32 %s31, 1
          %s272 = smul.addr %s271, 64
          %s273 = scalar_lea.vmem [#allocation2], %s272
          %s274 = smul.u32 16, %s21
          %s276 = ssub.s32 1024, 1024
          %277 = vsyncadd %s270, %s276
          %s278 = smul.addr %s274, 64
          %s279 = scalar_lea.hbm %s0, %s278
          %s280 = sshll.u32 %s273, 4
          %s281 = int_to_ptr.vmem [resolvable:$true] %s280
          %286 = dma.hbm_to_vmem [thread:$0]  %s279, 1024, %s281, %s270, 64, 64, 4
        $region44: #{tpu_custom_call.1} parent=39 // pred_fallthru
          _
      $region40: #{tpu_custom_call.1} parent=5 // pred_fallthru
        _
      %p287 = scmp.le.s32.totalorder 1, %s21
      %p288 = scmp.lt.s32.totalorder %s21, 3
      %p289 = pnand %p287, %p288
      %p290 = pneg %p289
      // Predicated region
      $region45: #{tpu_custom_call.1} parent=5 // pred_check
        _
      $region46: #{tpu_custom_call.1} parent=5 // pred_check_branch
        %292 = sbr.rel (%p289) target = $region48
      $region47: #{tpu_custom_call.1} parent=5 // pred_region
        %s293 = ssub.s32 %s21, 1
        %s294 = sand.u32 %s34, 1
        %s295 = scalar_lea.sflag [#allocation3], %s294
        %s296 = sand.u32 %s34, 1
        %s297 = smul.addr %s296, 64
        %s298 = scalar_lea.vmem [#allocation2], %s297
        // Predicated region
        $region49: #{tpu_custom_call.1} parent=47 // pred_check
          %p299 = pneg %p47
        $region50: #{tpu_custom_call.1} parent=47 // pred_check_branch
          %301 = sbr.rel (%p299) target = $region52
        $region51: #{tpu_custom_call.1} parent=47 // pred_region
          %302 = dma.done %s295, 1024
        $region52: #{tpu_custom_call.1} parent=47 // pred_fallthru
          _
        // Predicated region
        $region53: #{tpu_custom_call.1} parent=47 // pred_check
          %p303 = pneg %p68
        $region54: #{tpu_custom_call.1} parent=47 // pred_check_branch
          %305 = sbr.rel (%p303) target = $region56
        $region55: #{tpu_custom_call.1} parent=47 // pred_region
          %306 = dma.done [#allocation6], 2048
        $region56: #{tpu_custom_call.1} parent=47 // pred_fallthru
          _
        // Predicated region
        $region57: #{tpu_custom_call.1} parent=47 // pred_check
          %p307 = pneg %p110
        $region58: #{tpu_custom_call.1} parent=47 // pred_check_branch
          %309 = sbr.rel (%p307) target = $region60
        $region59: #{tpu_custom_call.1} parent=47 // pred_region
          %310 = dma.done [#allocation6], 4096
        $region60: #{tpu_custom_call.1} parent=47 // pred_fallthru
          _
        // Predicated region
        $region61: #{tpu_custom_call.1} parent=47 // pred_check
          %p311 = pneg %p152
        $region62: #{tpu_custom_call.1} parent=47 // pred_check_branch
          %313 = sbr.rel (%p311) target = $region64
        $region63: #{tpu_custom_call.1} parent=47 // pred_region
          %314 = dma.done [#allocation9], 2048
        $region64: #{tpu_custom_call.1} parent=47 // pred_fallthru
          _
        %s315 = sand.u32 %s34, 1
        %s316 = scalar_lea.sflag [#allocation3], %s315
        %s317 = sand.u32 %s34, 1
        %s318 = smul.addr %s317, 64
        %s319 = scalar_lea.vmem [#allocation2], %s318
        %p320 = pneg %p47
        %p321 = pneg %p44
        %p322 = pneg %p68
        %p323 = pneg %p65
        %p324 = pneg %p89
        %p325 = pneg %p86
        %p326 = pneg %p110
        %p327 = pneg %p107
        %p328 = pneg %p131
        %p329 = pneg %p128
        %p330 = pneg %p152
        %p331 = pneg %p149
        %p332 = pneg %p173
        %p333 = pneg %p170
        %p334 = pneg %p199
        %p335 = pneg %p196
        %s336 = sand.u32 %s186, 1
        %s337 = scalar_lea.sflag [#allocation4], %s336
        %s338 = sand.u32 %s186, 1
        %s339 = smul.addr %s338, 64
        %s340 = scalar_lea.vmem [#allocation10], %s339
        %s341 = smul.u32 16, %s26
        %s342 = smul.u32 16, %s26
        %v344 = vld [vmem:[%s298] sm:$0xf]
        %v345 = vld [vmem:[%s298 + $0x4] sm:$0xf]
        %v346 = vld [vmem:[%s298 + $0x8] sm:$0xf]
        %v347 = vld [vmem:[%s298 + $0xc] sm:$0xf]
        %v348 = vld [vmem:[%s298 + $0x10] sm:$0xf]
        %v349 = vld [vmem:[%s298 + $0x14] sm:$0xf]
        %v350 = vld [vmem:[%s298 + $0x18] sm:$0xf]
        %v351 = vld [vmem:[%s298 + $0x1c] sm:$0xf]
        %v352 = vld [vmem:[%s298 + $0x20] sm:$0xf]
        %v353 = vld [vmem:[%s298 + $0x24] sm:$0xf]
        %v354 = vld [vmem:[%s298 + $0x28] sm:$0xf]
        %v355 = vld [vmem:[%s298 + $0x2c] sm:$0xf]
        %v356 = vld [vmem:[%s298 + $0x30] sm:$0xf]
        %v357 = vld [vmem:[%s298 + $0x34] sm:$0xf]
        %v358 = vld [vmem:[%s298 + $0x38] sm:$0xf]
        %v359 = vld [vmem:[%s298 + $0x3c] sm:$0xf]
        %v360 = vld [vmem:[#allocation5] sm:$0xff]
        %v361 = vld [vmem:[#allocation5 + $0x8] sm:$0xff]
        %v362 = vld [vmem:[#allocation5 + $0x10] sm:$0xff]
        %v363 = vld [vmem:[#allocation5 + $0x18] sm:$0xff]
        %v364 = vld [vmem:[#allocation5 + $0x20] sm:$0xff]
        %v365 = vld [vmem:[#allocation5 + $0x28] sm:$0xff]
        %v366 = vld [vmem:[#allocation5 + $0x30] sm:$0xff]
        %v367 = vld [vmem:[#allocation5 + $0x38] sm:$0xff]
        %v368 = vld [vmem:[#allocation5 + $0x40] sm:$0xff]
        %v369 = vld [vmem:[#allocation5 + $0x48] sm:$0xff]
        %v370 = vld [vmem:[#allocation5 + $0x50] sm:$0xff]
        %v371 = vld [vmem:[#allocation5 + $0x58] sm:$0xff]
        %v372 = vld [vmem:[#allocation5 + $0x60] sm:$0xff]
        %v373 = vld [vmem:[#allocation5 + $0x68] sm:$0xff]
        %v374 = vld [vmem:[#allocation5 + $0x70] sm:$0xff]
        %v375 = vld [vmem:[#allocation5 + $0x78] sm:$0xff]
        %v376 = vld [vmem:[%s2] sm:$0x3]
        %v378 = vlaneseq
        %v379 = vshrl.u32 %v378, 7
        %v380 = vsub.s32 0, %v379
        %v381 = vrot.slane %v376, %v380
        %v382 = vlaneseq
        %v383 = vshrl.u32 %v382, 7
        %v384 = vsub.s32 1, %v383
        %v385 = vrot.slane %v376, %v384
        %v404 = vunpack.c.l.b16 %v344
        %v405 = vunpack.c.l.b16 %v345
        %v406 = vunpack.c.l.b16 %v346
        %v407 = vunpack.c.l.b16 %v347
        %v408 = vunpack.c.l.b16 %v348
        %v409 = vunpack.c.l.b16 %v349
        %v410 = vunpack.c.l.b16 %v350
        %v411 = vunpack.c.l.b16 %v351
        %v412 = vunpack.c.l.b16 %v352
        %v413 = vunpack.c.l.b16 %v353
        %v414 = vunpack.c.l.b16 %v354
        %v415 = vunpack.c.l.b16 %v355
        %v416 = vunpack.c.l.b16 %v356
        %v417 = vunpack.c.l.b16 %v357
        %v418 = vunpack.c.l.b16 %v358
        %v419 = vunpack.c.l.b16 %v359
        %v420 = vpack.c.b16 %v405, %v404
        %v421 = vpack.c.b16 %v407, %v406
        %v422 = vpack.c.b16 %v409, %v408
        %v423 = vpack.c.b16 %v411, %v410
        %v424 = vpack.c.b16 %v413, %v412
        %v425 = vpack.c.b16 %v415, %v414
        %v426 = vpack.c.b16 %v417, %v416
        %v427 = vpack.c.b16 %v419, %v418
        %v452 = vunpack.c.l.b16 %v360
        %v453 = vunpack.c.h.b16 %v360
        %v454 = vunpack.c.l.b16 %v361
        %v455 = vunpack.c.h.b16 %v361
        %v456 = vunpack.c.l.b16 %v362
        %v457 = vunpack.c.h.b16 %v362
        %v458 = vunpack.c.l.b16 %v363
        %v459 = vunpack.c.h.b16 %v363
        %v460 = vunpack.c.l.b16 %v364
        %v461 = vunpack.c.h.b16 %v364
        %v462 = vunpack.c.l.b16 %v365
        %v463 = vunpack.c.h.b16 %v365
        %v464 = vunpack.c.l.b16 %v366
        %v465 = vunpack.c.h.b16 %v366
        %v466 = vunpack.c.l.b16 %v367
        %v467 = vunpack.c.h.b16 %v367
        %v468 = vunpack.c.l.b16 %v368
        %v469 = vunpack.c.h.b16 %v368
        %v470 = vunpack.c.l.b16 %v369
        %v471 = vunpack.c.h.b16 %v369
        %v472 = vunpack.c.l.b16 %v370
        %v473 = vunpack.c.h.b16 %v370
        %v474 = vunpack.c.l.b16 %v371
        %v475 = vunpack.c.h.b16 %v371
        %v476 = vunpack.c.l.b16 %v372
        %v477 = vunpack.c.h.b16 %v372
        %v478 = vunpack.c.l.b16 %v373
        %v479 = vunpack.c.h.b16 %v373
        %v480 = vunpack.c.l.b16 %v374
        %v481 = vunpack.c.h.b16 %v374
        %v482 = vunpack.c.l.b16 %v375
        %v483 = vunpack.c.h.b16 %v375
        %v484 = vpack.c.b16 %v454, %v452
        %v485 = vpack.c.b16 %v455, %v453
        %v486 = vpack.c.b16 %v458, %v456
        %v487 = vpack.c.b16 %v459, %v457
        %v488 = vpack.c.b16 %v462, %v460
        %v489 = vpack.c.b16 %v463, %v461
        %v490 = vpack.c.b16 %v466, %v464
        %v491 = vpack.c.b16 %v467, %v465
        %v492 = vpack.c.b16 %v470, %v468
        %v493 = vpack.c.b16 %v471, %v469
        %v494 = vpack.c.b16 %v474, %v472
        %v495 = vpack.c.b16 %v475, %v473
        %v496 = vpack.c.b16 %v478, %v476
        %v497 = vpack.c.b16 %v479, %v477
        %v498 = vpack.c.b16 %v482, %v480
        %v499 = vpack.c.b16 %v483, %v481
        %516 = vmatprep.subr.bf16.mxu0 %v485
        %517 = vmatpush1.bf16.msra.mxu0 %v484
        %518 = vmatprep.subr.bf16.mxu0 %v487
        %519 = vmatpush1.bf16.msra.mxu0 %v486
        %520 = vmatprep.subr.bf16.mxu0 %v489
        %521 = vmatpush1.bf16.msra.mxu0 %v488
        %522 = vmatprep.subr.bf16.mxu0 %v491
        %523 = vmatpush1.bf16.msra.mxu0 %v490
        %524 = vmatprep.subr.bf16.mxu0 %v493
        %525 = vmatpush1.bf16.msra.mxu0 %v492
        %526 = vmatprep.subr.bf16.mxu0 %v495
        %527 = vmatpush1.bf16.msra.mxu0 %v494
        %528 = vmatprep.subr.bf16.mxu0 %v497
        %529 = vmatpush1.bf16.msra.mxu0 %v496
        %530 = vmatprep.subr.bf16.mxu0 %v499
        %531 = vmatpush1.bf16.msra.mxu0 %v498
        %532 = vmatprep.subr.bf16.mxu0 0
        %533 = vmatpush1.bf16.msra.mxu0 0
        %534 = vmatprep.subr.bf16.mxu0 0
        %535 = vmatpush1.bf16.msra.mxu0 0
        %536 = vmatprep.subr.bf16.mxu0 0
        %537 = vmatpush1.bf16.msra.mxu0 0
        %538 = vmatprep.subr.bf16.mxu0 0
        %539 = vmatpush1.bf16.msra.mxu0 0
        %540 = vmatprep.subr.bf16.mxu0 0
        %541 = vmatpush1.bf16.msra.mxu0 0
        %542 = vmatprep.subr.bf16.mxu0 0
        %543 = vmatpush1.bf16.msra.mxu0 0
        %544 = vmatprep.subr.bf16.mxu0 0
        %545 = vmatpush1.bf16.msra.mxu0 0
        %546 = vmatprep.subr.bf16.mxu0 0
        %547 = vmatpush1.bf16.msra.mxu0 0
        %548 = vmatprep.mubr.bf16.mxu0 0
        %549 = vmatmul.mubr.bf16.gmra.mrb[0].mxu0 %v420
        %v550 = vpop.f32.mrb[0].mxu0
        %v551 = vadd.f32 %v381, %v550
        %v552 = vpop.f32.mrb[0].mxu0
        %v553 = vadd.f32 %v385, %v552
        %v554 = vpop.f32.mrb[0].mxu0
        %v555 = vadd.f32 %v381, %v554
        %v556 = vpop.f32.mrb[0].mxu0
        %v557 = vadd.f32 %v385, %v556
        %558 = vmatprep.mubr.bf16.mxu0 0
        %559 = vmatmul.mubr.bf16.gmra.mrb[0].mxu0 %v421
        %v560 = vpop.f32.mrb[0].mxu0
        %v561 = vadd.f32 %v381, %v560
        %v562 = vpop.f32.mrb[0].mxu0
        %v563 = vadd.f32 %v385, %v562
        %v564 = vpop.f32.mrb[0].mxu0
        %v565 = vadd.f32 %v381, %v564
        %v566 = vpop.f32.mrb[0].mxu0
        %v567 = vadd.f32 %v385, %v566
        %568 = vmatprep.mubr.bf16.mxu0 0
        %569 = vmatmul.mubr.bf16.gmra.mrb[0].mxu0 %v422
        %v570 = vpop.f32.mrb[0].mxu0
        %v571 = vadd.f32 %v381, %v570
        %v572 = vpop.f32.mrb[0].mxu0
        %v573 = vadd.f32 %v385, %v572
        %v574 = vpop.f32.mrb[0].mxu0
        %v575 = vadd.f32 %v381, %v574
        %v576 = vpop.f32.mrb[0].mxu0
        %v577 = vadd.f32 %v385, %v576
        %578 = vmatprep.mubr.bf16.mxu0 0
        %579 = vmatmul.mubr.bf16.gmra.mrb[0].mxu0 %v423
        %v580 = vpop.f32.mrb[0].mxu0
        %v581 = vadd.f32 %v381, %v580
        %v582 = vpop.f32.mrb[0].mxu0
        %v583 = vadd.f32 %v385, %v582
        %v584 = vpop.f32.mrb[0].mxu0
        %v585 = vadd.f32 %v381, %v584
        %v586 = vpop.f32.mrb[0].mxu0
        %v587 = vadd.f32 %v385, %v586
        %588 = vmatprep.mubr.bf16.mxu0 0
        %589 = vmatmul.mubr.bf16.gmra.mrb[0].mxu0 %v424
        %v590 = vpop.f32.mrb[0].mxu0
        %v591 = vadd.f32 %v381, %v590
        %v592 = vpop.f32.mrb[0].mxu0
        %v593 = vadd.f32 %v385, %v592
        %v594 = vpop.f32.mrb[0].mxu0
        %v595 = vadd.f32 %v381, %v594
        %v596 = vpop.f32.mrb[0].mxu0
        %v597 = vadd.f32 %v385, %v596
        %598 = vmatprep.mubr.bf16.mxu0 0
        %599 = vmatmul.mubr.bf16.gmra.mrb[0].mxu0 %v425
        %v600 = vpop.f32.mrb[0].mxu0
        %v601 = vadd.f32 %v381, %v600
        %v602 = vpop.f32.mrb[0].mxu0
        %v603 = vadd.f32 %v385, %v602
        %v604 = vpop.f32.mrb[0].mxu0
        %v605 = vadd.f32 %v381, %v604
        %v606 = vpop.f32.mrb[0].mxu0
        %v607 = vadd.f32 %v385, %v606
        %608 = vmatprep.mubr.bf16.mxu0 0
        %609 = vmatmul.mubr.bf16.gmra.mrb[0].mxu0 %v426
        %v610 = vpop.f32.mrb[0].mxu0
        %v611 = vadd.f32 %v381, %v610
        %v612 = vpop.f32.mrb[0].mxu0
        %v613 = vadd.f32 %v385, %v612
        %v614 = vpop.f32.mrb[0].mxu0
        %v615 = vadd.f32 %v381, %v614
        %v616 = vpop.f32.mrb[0].mxu0
        %v617 = vadd.f32 %v385, %v616
        %618 = vmatprep.mubr.bf16.mxu0 0
        %619 = vmatmul.mubr.bf16.gmra.mrb[0].mxu0 %v427
        %v620 = vpop.f32.mrb[0].mxu0
        %v621 = vadd.f32 %v381, %v620
        %v622 = vpop.f32.mrb[0].mxu0
        %v623 = vadd.f32 %v385, %v622
        %v624 = vpop.f32.mrb[0].mxu0
        %v625 = vadd.f32 %v381, %v624
        %v626 = vpop.f32.mrb[0].mxu0
        %v627 = vadd.f32 %v385, %v626
        %628 = vdwg.mxu0
        %v629 = vmul.f32 %v551, 0.5
        %v630 = vmul.f32 %v553, 0.5
        %v631 = vmul.f32 %v555, 0.5
        %v632 = vmul.f32 %v557, 0.5
        %v633 = vmul.f32 %v561, 0.5
        %v634 = vmul.f32 %v563, 0.5
        %v635 = vmul.f32 %v565, 0.5
        %v636 = vmul.f32 %v567, 0.5
        %v637 = vmul.f32 %v571, 0.5
        %v638 = vmul.f32 %v573, 0.5
        %v639 = vmul.f32 %v575, 0.5
        %v640 = vmul.f32 %v577, 0.5
        %v641 = vmul.f32 %v581, 0.5
        %v642 = vmul.f32 %v583, 0.5
        %v643 = vmul.f32 %v585, 0.5
        %v644 = vmul.f32 %v587, 0.5
        %v645 = vmul.f32 %v591, 0.5
        %v646 = vmul.f32 %v593, 0.5
        %v647 = vmul.f32 %v595, 0.5
        %v648 = vmul.f32 %v597, 0.5
        %v649 = vmul.f32 %v601, 0.5
        %v650 = vmul.f32 %v603, 0.5
        %v651 = vmul.f32 %v605, 0.5
        %v652 = vmul.f32 %v607, 0.5
        %v653 = vmul.f32 %v611, 0.5
        %v654 = vmul.f32 %v613, 0.5
        %v655 = vmul.f32 %v615, 0.5
        %v656 = vmul.f32 %v617, 0.5
        %v657 = vmul.f32 %v621, 0.5
        %v658 = vmul.f32 %v623, 0.5
        %v659 = vmul.f32 %v625, 0.5
        %v660 = vmul.f32 %v627, 0.5
        %v661 = vmul.f32 %v551, 0.70710677
        %v662 = vmul.f32 %v553, 0.70710677
        %v663 = vmul.f32 %v555, 0.70710677
        %v664 = vmul.f32 %v557, 0.70710677
        %v665 = vmul.f32 %v561, 0.70710677
        %v666 = vmul.f32 %v563, 0.70710677
        %v667 = vmul.f32 %v565, 0.70710677
        %v668 = vmul.f32 %v567, 0.70710677
        %v669 = vmul.f32 %v571, 0.70710677
        %v670 = vmul.f32 %v573, 0.70710677
        %v671 = vmul.f32 %v575, 0.70710677
        %v672 = vmul.f32 %v577, 0.70710677
        %v673 = vmul.f32 %v581, 0.70710677
        %v674 = vmul.f32 %v583, 0.70710677
        %v675 = vmul.f32 %v585, 0.70710677
        %v676 = vmul.f32 %v587, 0.70710677
        %v677 = vmul.f32 %v591, 0.70710677
        %v678 = vmul.f32 %v593, 0.70710677
        %v679 = vmul.f32 %v595, 0.70710677
        %v680 = vmul.f32 %v597, 0.70710677
        %v681 = vmul.f32 %v601, 0.70710677
        %v682 = vmul.f32 %v603, 0.70710677
        %v683 = vmul.f32 %v605, 0.70710677
        %v684 = vmul.f32 %v607, 0.70710677
        %v685 = vmul.f32 %v611, 0.70710677
        %v686 = vmul.f32 %v613, 0.70710677
        %v687 = vmul.f32 %v615, 0.70710677
        %v688 = vmul.f32 %v617, 0.70710677
        %v689 = vmul.f32 %v621, 0.70710677
        %v690 = vmul.f32 %v623, 0.70710677
        %v691 = vmul.f32 %v625, 0.70710677
        %v692 = vmul.f32 %v627, 0.70710677
        %v693 = vand.u32 2147483647, %v661
        %v694 = vand.u32 2147483647, %v662
        %v695 = vand.u32 2147483647, %v663
        %v696 = vand.u32 2147483647, %v664
        %v697 = vand.u32 2147483647, %v665
        %v698 = vand.u32 2147483647, %v666
        %v699 = vand.u32 2147483647, %v667
        %v700 = vand.u32 2147483647, %v668
        %v701 = vand.u32 2147483647, %v669
        %v702 = vand.u32 2147483647, %v670
        %v703 = vand.u32 2147483647, %v671
        %v704 = vand.u32 2147483647, %v672
        %v705 = vand.u32 2147483647, %v673
        %v706 = vand.u32 2147483647, %v674
        %v707 = vand.u32 2147483647, %v675
        %v708 = vand.u32 2147483647, %v676
        %v709 = vand.u32 2147483647, %v677
        %v710 = vand.u32 2147483647, %v678
        %v711 = vand.u32 2147483647, %v679
        %v712 = vand.u32 2147483647, %v680
        %v713 = vand.u32 2147483647, %v681
        %v714 = vand.u32 2147483647, %v682
        %v715 = vand.u32 2147483647, %v683
        %v716 = vand.u32 2147483647, %v684
        %v717 = vand.u32 2147483647, %v685
        %v718 = vand.u32 2147483647, %v686
        %v719 = vand.u32 2147483647, %v687
        %v720 = vand.u32 2147483647, %v688
        %v721 = vand.u32 2147483647, %v689
        %v722 = vand.u32 2147483647, %v690
        %v723 = vand.u32 2147483647, %v691
        %v724 = vand.u32 2147483647, %v692
        %v725 = vmul.f32 %v693, 0.3275911
        %v726 = vmul.f32 %v694, 0.3275911
        %v727 = vmul.f32 %v695, 0.3275911
        %v728 = vmul.f32 %v696, 0.3275911
        %v729 = vmul.f32 %v697, 0.3275911
        %v730 = vmul.f32 %v698, 0.3275911
        %v731 = vmul.f32 %v699, 0.3275911
        %v732 = vmul.f32 %v700, 0.3275911
        %v733 = vmul.f32 %v701, 0.3275911
        %v734 = vmul.f32 %v702, 0.3275911
        %v735 = vmul.f32 %v703, 0.3275911
        %v736 = vmul.f32 %v704, 0.3275911
        %v737 = vmul.f32 %v705, 0.3275911
        %v738 = vmul.f32 %v706, 0.3275911
        %v739 = vmul.f32 %v707, 0.3275911
        %v740 = vmul.f32 %v708, 0.3275911
        %v741 = vmul.f32 %v709, 0.3275911
        %v742 = vmul.f32 %v710, 0.3275911
        %v743 = vmul.f32 %v711, 0.3275911
        %v744 = vmul.f32 %v712, 0.3275911
        %v745 = vmul.f32 %v713, 0.3275911
        %v746 = vmul.f32 %v714, 0.3275911
        %v747 = vmul.f32 %v715, 0.3275911
        %v748 = vmul.f32 %v716, 0.3275911
        %v749 = vmul.f32 %v717, 0.3275911
        %v750 = vmul.f32 %v718, 0.3275911
        %v751 = vmul.f32 %v719, 0.3275911
        %v752 = vmul.f32 %v720, 0.3275911
        %v753 = vmul.f32 %v721, 0.3275911
        %v754 = vmul.f32 %v722, 0.3275911
        %v755 = vmul.f32 %v723, 0.3275911
        %v756 = vmul.f32 %v724, 0.3275911
        %v757 = vadd.f32 %v725, 1.0
        %v758 = vadd.f32 %v726, 1.0
        %v759 = vadd.f32 %v727, 1.0
        %v760 = vadd.f32 %v728, 1.0
        %v761 = vadd.f32 %v729, 1.0
        %v762 = vadd.f32 %v730, 1.0
        %v763 = vadd.f32 %v731, 1.0
        %v764 = vadd.f32 %v732, 1.0
        %v765 = vadd.f32 %v733, 1.0
        %v766 = vadd.f32 %v734, 1.0
        %v767 = vadd.f32 %v735, 1.0
        %v768 = vadd.f32 %v736, 1.0
        %v769 = vadd.f32 %v737, 1.0
        %v770 = vadd.f32 %v738, 1.0
        %v771 = vadd.f32 %v739, 1.0
        %v772 = vadd.f32 %v740, 1.0
        %v773 = vadd.f32 %v741, 1.0
        %v774 = vadd.f32 %v742, 1.0
        %v775 = vadd.f32 %v743, 1.0
        %v776 = vadd.f32 %v744, 1.0
        %v777 = vadd.f32 %v745, 1.0
        %v778 = vadd.f32 %v746, 1.0
        %v779 = vadd.f32 %v747, 1.0
        %v780 = vadd.f32 %v748, 1.0
        %v781 = vadd.f32 %v749, 1.0
        %v782 = vadd.f32 %v750, 1.0
        %v783 = vadd.f32 %v751, 1.0
        %v784 = vadd.f32 %v752, 1.0
        %v785 = vadd.f32 %v753, 1.0
        %v786 = vadd.f32 %v754, 1.0
        %v787 = vadd.f32 %v755, 1.0
        %v788 = vadd.f32 %v756, 1.0
        %v789 = vrcp.pop %v757
        %v790 = vmul.f32 1.0, %v789
        %v791 = vrcp.pop %v758
        %v792 = vmul.f32 1.0, %v791
        %v793 = vrcp.pop %v759
        %v794 = vmul.f32 1.0, %v793
        %v795 = vrcp.pop %v760
        %v796 = vmul.f32 1.0, %v795
        %v797 = vrcp.pop %v761
        %v798 = vmul.f32 1.0, %v797
        %v799 = vrcp.pop %v762
        %v800 = vmul.f32 1.0, %v799
        %v801 = vrcp.pop %v763
        %v802 = vmul.f32 1.0, %v801
        %v803 = vrcp.pop %v764
        %v804 = vmul.f32 1.0, %v803
        %v805 = vrcp.pop %v765
        %v806 = vmul.f32 1.0, %v805
        %v807 = vrcp.pop %v766
        %v808 = vmul.f32 1.0, %v807
        %v809 = vrcp.pop %v767
        %v810 = vmul.f32 1.0, %v809
        %v811 = vrcp.pop %v768
        %v812 = vmul.f32 1.0, %v811
        %v813 = vrcp.pop %v769
        %v814 = vmul.f32 1.0, %v813
        %v815 = vrcp.pop %v770
        %v816 = vmul.f32 1.0, %v815
        %v817 = vrcp.pop %v771
        %v818 = vmul.f32 1.0, %v817
        %v819 = vrcp.pop %v772
        %v820 = vmul.f32 1.0, %v819
        %v821 = vrcp.pop %v773
        %v822 = vmul.f32 1.0, %v821
        %v823 = vrcp.pop %v774
        %v824 = vmul.f32 1.0, %v823
        %v825 = vrcp.pop %v775
        %v826 = vmul.f32 1.0, %v825
        %v827 = vrcp.pop %v776
        %v828 = vmul.f32 1.0, %v827
        %v829 = vrcp.pop %v777
        %v830 = vmul.f32 1.0, %v829
        %v831 = vrcp.pop %v778
        %v832 = vmul.f32 1.0, %v831
        %v833 = vrcp.pop %v779
        %v834 = vmul.f32 1.0, %v833
        %v835 = vrcp.pop %v780
        %v836 = vmul.f32 1.0, %v835
        %v837 = vrcp.pop %v781
        %v838 = vmul.f32 1.0, %v837
        %v839 = vrcp.pop %v782
        %v840 = vmul.f32 1.0, %v839
        %v841 = vrcp.pop %v783
        %v842 = vmul.f32 1.0, %v841
        %v843 = vrcp.pop %v784
        %v844 = vmul.f32 1.0, %v843
        %v845 = vrcp.pop %v785
        %v846 = vmul.f32 1.0, %v845
        %v847 = vrcp.pop %v786
        %v848 = vmul.f32 1.0, %v847
        %v849 = vrcp.pop %v787
        %v850 = vmul.f32 1.0, %v849
        %v851 = vrcp.pop %v788
        %v852 = vmul.f32 1.0, %v851
        %v853 = vmul.f32 %v790, 1.0614054
        %v854 = vmul.f32 %v792, 1.0614054
        %v855 = vmul.f32 %v794, 1.0614054
        %v856 = vmul.f32 %v796, 1.0614054
        %v857 = vmul.f32 %v798, 1.0614054
        %v858 = vmul.f32 %v800, 1.0614054
        %v859 = vmul.f32 %v802, 1.0614054
        %v860 = vmul.f32 %v804, 1.0614054
        %v861 = vmul.f32 %v806, 1.0614054
        %v862 = vmul.f32 %v808, 1.0614054
        %v863 = vmul.f32 %v810, 1.0614054
        %v864 = vmul.f32 %v812, 1.0614054
        %v865 = vmul.f32 %v814, 1.0614054
        %v866 = vmul.f32 %v816, 1.0614054
        %v867 = vmul.f32 %v818, 1.0614054
        %v868 = vmul.f32 %v820, 1.0614054
        %v869 = vmul.f32 %v822, 1.0614054
        %v870 = vmul.f32 %v824, 1.0614054
        %v871 = vmul.f32 %v826, 1.0614054
        %v872 = vmul.f32 %v828, 1.0614054
        %v873 = vmul.f32 %v830, 1.0614054
        %v874 = vmul.f32 %v832, 1.0614054
        %v875 = vmul.f32 %v834, 1.0614054
        %v876 = vmul.f32 %v836, 1.0614054
        %v877 = vmul.f32 %v838, 1.0614054
        %v878 = vmul.f32 %v840, 1.0614054
        %v879 = vmul.f32 %v842, 1.0614054
        %v880 = vmul.f32 %v844, 1.0614054
        %v881 = vmul.f32 %v846, 1.0614054
        %v882 = vmul.f32 %v848, 1.0614054
        %v883 = vmul.f32 %v850, 1.0614054
        %v884 = vmul.f32 %v852, 1.0614054
        %v885 = vadd.f32 %v853, -1.4531521
        %v886 = vadd.f32 %v854, -1.4531521
        %v887 = vadd.f32 %v855, -1.4531521
        %v888 = vadd.f32 %v856, -1.4531521
        %v889 = vadd.f32 %v857, -1.4531521
        %v890 = vadd.f32 %v858, -1.4531521
        %v891 = vadd.f32 %v859, -1.4531521
        %v892 = vadd.f32 %v860, -1.4531521
        %v893 = vadd.f32 %v861, -1.4531521
        %v894 = vadd.f32 %v862, -1.4531521
        %v895 = vadd.f32 %v863, -1.4531521
        %v896 = vadd.f32 %v864, -1.4531521
        %v897 = vadd.f32 %v865, -1.4531521
        %v898 = vadd.f32 %v866, -1.4531521
        %v899 = vadd.f32 %v867, -1.4531521
        %v900 = vadd.f32 %v868, -1.4531521
        %v901 = vadd.f32 %v869, -1.4531521
        %v902 = vadd.f32 %v870, -1.4531521
        %v903 = vadd.f32 %v871, -1.4531521
        %v904 = vadd.f32 %v872, -1.4531521
        %v905 = vadd.f32 %v873, -1.4531521
        %v906 = vadd.f32 %v874, -1.4531521
        %v907 = vadd.f32 %v875, -1.4531521
        %v908 = vadd.f32 %v876, -1.4531521
        %v909 = vadd.f32 %v877, -1.4531521
        %v910 = vadd.f32 %v878, -1.4531521
        %v911 = vadd.f32 %v879, -1.4531521
        %v912 = vadd.f32 %v880, -1.4531521
        %v913 = vadd.f32 %v881, -1.4531521
        %v914 = vadd.f32 %v882, -1.4531521
        %v915 = vadd.f32 %v883, -1.4531521
        %v916 = vadd.f32 %v884, -1.4531521
        %v917 = vmul.f32 %v790, %v885
        %v918 = vmul.f32 %v792, %v886
        %v919 = vmul.f32 %v794, %v887
        %v920 = vmul.f32 %v796, %v888
        %v921 = vmul.f32 %v798, %v889
        %v922 = vmul.f32 %v800, %v890
        %v923 = vmul.f32 %v802, %v891
        %v924 = vmul.f32 %v804, %v892
        %v925 = vmul.f32 %v806, %v893
        %v926 = vmul.f32 %v808, %v894
        %v927 = vmul.f32 %v810, %v895
        %v928 = vmul.f32 %v812, %v896
        %v929 = vmul.f32 %v814, %v897
        %v930 = vmul.f32 %v816, %v898
        %v931 = vmul.f32 %v818, %v899
        %v932 = vmul.f32 %v820, %v900
        %v933 = vmul.f32 %v822, %v901
        %v934 = vmul.f32 %v824, %v902
        %v935 = vmul.f32 %v826, %v903
        %v936 = vmul.f32 %v828, %v904
        %v937 = vmul.f32 %v830, %v905
        %v938 = vmul.f32 %v832, %v906
        %v939 = vmul.f32 %v834, %v907
        %v940 = vmul.f32 %v836, %v908
        %v941 = vmul.f32 %v838, %v909
        %v942 = vmul.f32 %v840, %v910
        %v943 = vmul.f32 %v842, %v911
        %v944 = vmul.f32 %v844, %v912
        %v945 = vmul.f32 %v846, %v913
        %v946 = vmul.f32 %v848, %v914
        %v947 = vmul.f32 %v850, %v915
        %v948 = vmul.f32 %v852, %v916
        %v949 = vadd.f32 %v917, 1.4214138
        %v950 = vadd.f32 %v918, 1.4214138
        %v951 = vadd.f32 %v919, 1.4214138
        %v952 = vadd.f32 %v920, 1.4214138
        %v953 = vadd.f32 %v921, 1.4214138
        %v954 = vadd.f32 %v922, 1.4214138
        %v955 = vadd.f32 %v923, 1.4214138
        %v956 = vadd.f32 %v924, 1.4214138
        %v957 = vadd.f32 %v925, 1.4214138
        %v958 = vadd.f32 %v926, 1.4214138
        %v959 = vadd.f32 %v927, 1.4214138
        %v960 = vadd.f32 %v928, 1.4214138
        %v961 = vadd.f32 %v929, 1.4214138
        %v962 = vadd.f32 %v930, 1.4214138
        %v963 = vadd.f32 %v931, 1.4214138
        %v964 = vadd.f32 %v932, 1.4214138
        %v965 = vadd.f32 %v933, 1.4214138
        %v966 = vadd.f32 %v934, 1.4214138
        %v967 = vadd.f32 %v935, 1.4214138
        %v968 = vadd.f32 %v936, 1.4214138
        %v969 = vadd.f32 %v937, 1.4214138
        %v970 = vadd.f32 %v938, 1.4214138
        %v971 = vadd.f32 %v939, 1.4214138
        %v972 = vadd.f32 %v940, 1.4214138
        %v973 = vadd.f32 %v941, 1.4214138
        %v974 = vadd.f32 %v942, 1.4214138
        %v975 = vadd.f32 %v943, 1.4214138
        %v976 = vadd.f32 %v944, 1.4214138
        %v977 = vadd.f32 %v945, 1.4214138
        %v978 = vadd.f32 %v946, 1.4214138
        %v979 = vadd.f32 %v947, 1.4214138
        %v980 = vadd.f32 %v948, 1.4214138
        %v981 = vmul.f32 %v790, %v949
        %v982 = vmul.f32 %v792, %v950
        %v983 = vmul.f32 %v794, %v951
        %v984 = vmul.f32 %v796, %v952
        %v985 = vmul.f32 %v798, %v953
        %v986 = vmul.f32 %v800, %v954
        %v987 = vmul.f32 %v802, %v955
        %v988 = vmul.f32 %v804, %v956
        %v989 = vmul.f32 %v806, %v957
        %v990 = vmul.f32 %v808, %v958
        %v991 = vmul.f32 %v810, %v959
        %v992 = vmul.f32 %v812, %v960
        %v993 = vmul.f32 %v814, %v961
        %v994 = vmul.f32 %v816, %v962
        %v995 = vmul.f32 %v818, %v963
        %v996 = vmul.f32 %v820, %v964
        %v997 = vmul.f32 %v822, %v965
        %v998 = vmul.f32 %v824, %v966
        %v999 = vmul.f32 %v826, %v967
        %v1000 = vmul.f32 %v828, %v968
        %v1001 = vmul.f32 %v830, %v969
        %v1002 = vmul.f32 %v832, %v970
        %v1003 = vmul.f32 %v834, %v971
        %v1004 = vmul.f32 %v836, %v972
        %v1005 = vmul.f32 %v838, %v973
        %v1006 = vmul.f32 %v840, %v974
        %v1007 = vmul.f32 %v842, %v975
        %v1008 = vmul.f32 %v844, %v976
        %v1009 = vmul.f32 %v846, %v977
        %v1010 = vmul.f32 %v848, %v978
        %v1011 = vmul.f32 %v850, %v979
        %v1012 = vmul.f32 %v852, %v980
        %v1013 = vadd.f32 %v981, -0.28449672
        %v1014 = vadd.f32 %v982, -0.28449672
        %v1015 = vadd.f32 %v983, -0.28449672
        %v1016 = vadd.f32 %v984, -0.28449672
        %v1017 = vadd.f32 %v985, -0.28449672
        %v1018 = vadd.f32 %v986, -0.28449672
        %v1019 = vadd.f32 %v987, -0.28449672
        %v1020 = vadd.f32 %v988, -0.28449672
        %v1021 = vadd.f32 %v989, -0.28449672
        %v1022 = vadd.f32 %v990, -0.28449672
        %v1023 = vadd.f32 %v991, -0.28449672
        %v1024 = vadd.f32 %v992, -0.28449672
        %v1025 = vadd.f32 %v993, -0.28449672
        %v1026 = vadd.f32 %v994, -0.28449672
        %v1027 = vadd.f32 %v995, -0.28449672
        %v1028 = vadd.f32 %v996, -0.28449672
        %v1029 = vadd.f32 %v997, -0.28449672
        %v1030 = vadd.f32 %v998, -0.28449672
        %v1031 = vadd.f32 %v999, -0.28449672
        %v1032 = vadd.f32 %v1000, -0.28449672
        %v1033 = vadd.f32 %v1001, -0.28449672
        %v1034 = vadd.f32 %v1002, -0.28449672
        %v1035 = vadd.f32 %v1003, -0.28449672
        %v1036 = vadd.f32 %v1004, -0.28449672
        %v1037 = vadd.f32 %v1005, -0.28449672
        %v1038 = vadd.f32 %v1006, -0.28449672
        %v1039 = vadd.f32 %v1007, -0.28449672
        %v1040 = vadd.f32 %v1008, -0.28449672
        %v1041 = vadd.f32 %v1009, -0.28449672
        %v1042 = vadd.f32 %v1010, -0.28449672
        %v1043 = vadd.f32 %v1011, -0.28449672
        %v1044 = vadd.f32 %v1012, -0.28449672
        %v1045 = vmul.f32 %v790, %v1013
        %v1046 = vmul.f32 %v792, %v1014
        %v1047 = vmul.f32 %v794, %v1015
        %v1048 = vmul.f32 %v796, %v1016
        %v1049 = vmul.f32 %v798, %v1017
        %v1050 = vmul.f32 %v800, %v1018
        %v1051 = vmul.f32 %v802, %v1019
        %v1052 = vmul.f32 %v804, %v1020
        %v1053 = vmul.f32 %v806, %v1021
        %v1054 = vmul.f32 %v808, %v1022
        %v1055 = vmul.f32 %v810, %v1023
        %v1056 = vmul.f32 %v812, %v1024
        %v1057 = vmul.f32 %v814, %v1025
        %v1058 = vmul.f32 %v816, %v1026
        %v1059 = vmul.f32 %v818, %v1027
        %v1060 = vmul.f32 %v820, %v1028
        %v1061 = vmul.f32 %v822, %v1029
        %v1062 = vmul.f32 %v824, %v1030
        %v1063 = vmul.f32 %v826, %v1031
        %v1064 = vmul.f32 %v828, %v1032
        %v1065 = vmul.f32 %v830, %v1033
        %v1066 = vmul.f32 %v832, %v1034
        %v1067 = vmul.f32 %v834, %v1035
        %v1068 = vmul.f32 %v836, %v1036
        %v1069 = vmul.f32 %v838, %v1037
        %v1070 = vmul.f32 %v840, %v1038
        %v1071 = vmul.f32 %v842, %v1039
        %v1072 = vmul.f32 %v844, %v1040
        %v1073 = vmul.f32 %v846, %v1041
        %v1074 = vmul.f32 %v848, %v1042
        %v1075 = vmul.f32 %v850, %v1043
        %v1076 = vmul.f32 %v852, %v1044
        %v1077 = vadd.f32 %v1045, 0.2548296
        %v1078 = vadd.f32 %v1046, 0.2548296
        %v1079 = vadd.f32 %v1047, 0.2548296
        %v1080 = vadd.f32 %v1048, 0.2548296
        %v1081 = vadd.f32 %v1049, 0.2548296
        %v1082 = vadd.f32 %v1050, 0.2548296
        %v1083 = vadd.f32 %v1051, 0.2548296
        %v1084 = vadd.f32 %v1052, 0.2548296
        %v1085 = vadd.f32 %v1053, 0.2548296
        %v1086 = vadd.f32 %v1054, 0.2548296
        %v1087 = vadd.f32 %v1055, 0.2548296
        %v1088 = vadd.f32 %v1056, 0.2548296
        %v1089 = vadd.f32 %v1057, 0.2548296
        %v1090 = vadd.f32 %v1058, 0.2548296
        %v1091 = vadd.f32 %v1059, 0.2548296
        %v1092 = vadd.f32 %v1060, 0.2548296
        %v1093 = vadd.f32 %v1061, 0.2548296
        %v1094 = vadd.f32 %v1062, 0.2548296
        %v1095 = vadd.f32 %v1063, 0.2548296
        %v1096 = vadd.f32 %v1064, 0.2548296
        %v1097 = vadd.f32 %v1065, 0.2548296
        %v1098 = vadd.f32 %v1066, 0.2548296
        %v1099 = vadd.f32 %v1067, 0.2548296
        %v1100 = vadd.f32 %v1068, 0.2548296
        %v1101 = vadd.f32 %v1069, 0.2548296
        %v1102 = vadd.f32 %v1070, 0.2548296
        %v1103 = vadd.f32 %v1071, 0.2548296
        %v1104 = vadd.f32 %v1072, 0.2548296
        %v1105 = vadd.f32 %v1073, 0.2548296
        %v1106 = vadd.f32 %v1074, 0.2548296
        %v1107 = vadd.f32 %v1075, 0.2548296
        %v1108 = vadd.f32 %v1076, 0.2548296
        %v1109 = vmul.f32 %v790, %v1077
        %v1110 = vmul.f32 %v792, %v1078
        %v1111 = vmul.f32 %v794, %v1079
        %v1112 = vmul.f32 %v796, %v1080
        %v1113 = vmul.f32 %v798, %v1081
        %v1114 = vmul.f32 %v800, %v1082
        %v1115 = vmul.f32 %v802, %v1083
        %v1116 = vmul.f32 %v804, %v1084
        %v1117 = vmul.f32 %v806, %v1085
        %v1118 = vmul.f32 %v808, %v1086
        %v1119 = vmul.f32 %v810, %v1087
        %v1120 = vmul.f32 %v812, %v1088
        %v1121 = vmul.f32 %v814, %v1089
        %v1122 = vmul.f32 %v816, %v1090
        %v1123 = vmul.f32 %v818, %v1091
        %v1124 = vmul.f32 %v820, %v1092
        %v1125 = vmul.f32 %v822, %v1093
        %v1126 = vmul.f32 %v824, %v1094
        %v1127 = vmul.f32 %v826, %v1095
        %v1128 = vmul.f32 %v828, %v1096
        %v1129 = vmul.f32 %v830, %v1097
        %v1130 = vmul.f32 %v832, %v1098
        %v1131 = vmul.f32 %v834, %v1099
        %v1132 = vmul.f32 %v836, %v1100
        %v1133 = vmul.f32 %v838, %v1101
        %v1134 = vmul.f32 %v840, %v1102
        %v1135 = vmul.f32 %v842, %v1103
        %v1136 = vmul.f32 %v844, %v1104
        %v1137 = vmul.f32 %v846, %v1105
        %v1138 = vmul.f32 %v848, %v1106
        %v1139 = vmul.f32 %v850, %v1107
        %v1140 = vmul.f32 %v852, %v1108
        %v1141 = vsub.f32 0.0, %v693
        %v1142 = vsub.f32 0.0, %v694
        %v1143 = vsub.f32 0.0, %v695
        %v1144 = vsub.f32 0.0, %v696
        %v1145 = vsub.f32 0.0, %v697
        %v1146 = vsub.f32 0.0, %v698
        %v1147 = vsub.f32 0.0, %v699
        %v1148 = vsub.f32 0.0, %v700
        %v1149 = vsub.f32 0.0, %v701
        %v1150 = vsub.f32 0.0, %v702
        %v1151 = vsub.f32 0.0, %v703
        %v1152 = vsub.f32 0.0, %v704
        %v1153 = vsub.f32 0.0, %v705
        %v1154 = vsub.f32 0.0, %v706
        %v1155 = vsub.f32 0.0, %v707
        %v1156 = vsub.f32 0.0, %v708
        %v1157 = vsub.f32 0.0, %v709
        %v1158 = vsub.f32 0.0, %v710
        %v1159 = vsub.f32 0.0, %v711
        %v1160 = vsub.f32 0.0, %v712
        %v1161 = vsub.f32 0.0, %v713
        %v1162 = vsub.f32 0.0, %v714
        %v1163 = vsub.f32 0.0, %v715
        %v1164 = vsub.f32 0.0, %v716
        %v1165 = vsub.f32 0.0, %v717
        %v1166 = vsub.f32 0.0, %v718
        %v1167 = vsub.f32 0.0, %v719
        %v1168 = vsub.f32 0.0, %v720
        %v1169 = vsub.f32 0.0, %v721
        %v1170 = vsub.f32 0.0, %v722
        %v1171 = vsub.f32 0.0, %v723
        %v1172 = vsub.f32 0.0, %v724
        %v1173 = vmul.f32 %v1141, %v693
        %v1174 = vmul.f32 %v1142, %v694
        %v1175 = vmul.f32 %v1143, %v695
        %v1176 = vmul.f32 %v1144, %v696
        %v1177 = vmul.f32 %v1145, %v697
        %v1178 = vmul.f32 %v1146, %v698
        %v1179 = vmul.f32 %v1147, %v699
        %v1180 = vmul.f32 %v1148, %v700
        %v1181 = vmul.f32 %v1149, %v701
        %v1182 = vmul.f32 %v1150, %v702
        %v1183 = vmul.f32 %v1151, %v703
        %v1184 = vmul.f32 %v1152, %v704
        %v1185 = vmul.f32 %v1153, %v705
        %v1186 = vmul.f32 %v1154, %v706
        %v1187 = vmul.f32 %v1155, %v707
        %v1188 = vmul.f32 %v1156, %v708
        %v1189 = vmul.f32 %v1157, %v709
        %v1190 = vmul.f32 %v1158, %v710
        %v1191 = vmul.f32 %v1159, %v711
        %v1192 = vmul.f32 %v1160, %v712
        %v1193 = vmul.f32 %v1161, %v713
        %v1194 = vmul.f32 %v1162, %v714
        %v1195 = vmul.f32 %v1163, %v715
        %v1196 = vmul.f32 %v1164, %v716
        %v1197 = vmul.f32 %v1165, %v717
        %v1198 = vmul.f32 %v1166, %v718
        %v1199 = vmul.f32 %v1167, %v719
        %v1200 = vmul.f32 %v1168, %v720
        %v1201 = vmul.f32 %v1169, %v721
        %v1202 = vmul.f32 %v1170, %v722
        %v1203 = vmul.f32 %v1171, %v723
        %v1204 = vmul.f32 %v1172, %v724
        %v1205 = vmul.f32 %v1173, 1.442695
        %v1206 = vpow.pop %v1205
        %v1207 = vmul.f32 %v1174, 1.442695
        %v1208 = vpow.pop %v1207
        %v1209 = vmul.f32 %v1175, 1.442695
        %v1210 = vpow.pop %v1209
        %v1211 = vmul.f32 %v1176, 1.442695
        %v1212 = vpow.pop %v1211
        %v1213 = vmul.f32 %v1177, 1.442695
        %v1214 = vpow.pop %v1213
        %v1215 = vmul.f32 %v1178, 1.442695
        %v1216 = vpow.pop %v1215
        %v1217 = vmul.f32 %v1179, 1.442695
        %v1218 = vpow.pop %v1217
        %v1219 = vmul.f32 %v1180, 1.442695
        %v1220 = vpow.pop %v1219
        %v1221 = vmul.f32 %v1181, 1.442695
        %v1222 = vpow.pop %v1221
        %v1223 = vmul.f32 %v1182, 1.442695
        %v1224 = vpow.pop %v1223
        %v1225 = vmul.f32 %v1183, 1.442695
        %v1226 = vpow.pop %v1225
        %v1227 = vmul.f32 %v1184, 1.442695
        %v1228 = vpow.pop %v1227
        %v1229 = vmul.f32 %v1185, 1.442695
        %v1230 = vpow.pop %v1229
        %v1231 = vmul.f32 %v1186, 1.442695
        %v1232 = vpow.pop %v1231
        %v1233 = vmul.f32 %v1187, 1.442695
        %v1234 = vpow.pop %v1233
        %v1235 = vmul.f32 %v1188, 1.442695
        %v1236 = vpow.pop %v1235
        %v1237 = vmul.f32 %v1189, 1.442695
        %v1238 = vpow.pop %v1237
        %v1239 = vmul.f32 %v1190, 1.442695
        %v1240 = vpow.pop %v1239
        %v1241 = vmul.f32 %v1191, 1.442695
        %v1242 = vpow.pop %v1241
        %v1243 = vmul.f32 %v1192, 1.442695
        %v1244 = vpow.pop %v1243
        %v1245 = vmul.f32 %v1193, 1.442695
        %v1246 = vpow.pop %v1245
        %v1247 = vmul.f32 %v1194, 1.442695
        %v1248 = vpow.pop %v1247
        %v1249 = vmul.f32 %v1195, 1.442695
        %v1250 = vpow.pop %v1249
        %v1251 = vmul.f32 %v1196, 1.442695
        %v1252 = vpow.pop %v1251
        %v1253 = vmul.f32 %v1197, 1.442695
        %v1254 = vpow.pop %v1253
        %v1255 = vmul.f32 %v1198, 1.442695
        %v1256 = vpow.pop %v1255
        %v1257 = vmul.f32 %v1199, 1.442695
        %v1258 = vpow.pop %v1257
        %v1259 = vmul.f32 %v1200, 1.442695
        %v1260 = vpow.pop %v1259
        %v1261 = vmul.f32 %v1201, 1.442695
        %v1262 = vpow.pop %v1261
        %v1263 = vmul.f32 %v1202, 1.442695
        %v1264 = vpow.pop %v1263
        %v1265 = vmul.f32 %v1203, 1.442695
        %v1266 = vpow.pop %v1265
        %v1267 = vmul.f32 %v1204, 1.442695
        %v1268 = vpow.pop %v1267
        %v1269 = vmul.f32 %v1109, %v1206
        %v1270 = vmul.f32 %v1110, %v1208
        %v1271 = vmul.f32 %v1111, %v1210
        %v1272 = vmul.f32 %v1112, %v1212
        %v1273 = vmul.f32 %v1113, %v1214
        %v1274 = vmul.f32 %v1114, %v1216
        %v1275 = vmul.f32 %v1115, %v1218
        %v1276 = vmul.f32 %v1116, %v1220
        %v1277 = vmul.f32 %v1117, %v1222
        %v1278 = vmul.f32 %v1118, %v1224
        %v1279 = vmul.f32 %v1119, %v1226
        %v1280 = vmul.f32 %v1120, %v1228
        %v1281 = vmul.f32 %v1121, %v1230
        %v1282 = vmul.f32 %v1122, %v1232
        %v1283 = vmul.f32 %v1123, %v1234
        %v1284 = vmul.f32 %v1124, %v1236
        %v1285 = vmul.f32 %v1125, %v1238
        %v1286 = vmul.f32 %v1126, %v1240
        %v1287 = vmul.f32 %v1127, %v1242
        %v1288 = vmul.f32 %v1128, %v1244
        %v1289 = vmul.f32 %v1129, %v1246
        %v1290 = vmul.f32 %v1130, %v1248
        %v1291 = vmul.f32 %v1131, %v1250
        %v1292 = vmul.f32 %v1132, %v1252
        %v1293 = vmul.f32 %v1133, %v1254
        %v1294 = vmul.f32 %v1134, %v1256
        %v1295 = vmul.f32 %v1135, %v1258
        %v1296 = vmul.f32 %v1136, %v1260
        %v1297 = vmul.f32 %v1137, %v1262
        %v1298 = vmul.f32 %v1138, %v1264
        %v1299 = vmul.f32 %v1139, %v1266
        %v1300 = vmul.f32 %v1140, %v1268
        %v1301 = vsub.f32 1.0, %v1269
        %v1302 = vsub.f32 1.0, %v1270
        %v1303 = vsub.f32 1.0, %v1271
        %v1304 = vsub.f32 1.0, %v1272
        %v1305 = vsub.f32 1.0, %v1273
        %v1306 = vsub.f32 1.0, %v1274
        %v1307 = vsub.f32 1.0, %v1275
        %v1308 = vsub.f32 1.0, %v1276
        %v1309 = vsub.f32 1.0, %v1277
        %v1310 = vsub.f32 1.0, %v1278
        %v1311 = vsub.f32 1.0, %v1279
        %v1312 = vsub.f32 1.0, %v1280
        %v1313 = vsub.f32 1.0, %v1281
        %v1314 = vsub.f32 1.0, %v1282
        %v1315 = vsub.f32 1.0, %v1283
        %v1316 = vsub.f32 1.0, %v1284
        %v1317 = vsub.f32 1.0, %v1285
        %v1318 = vsub.f32 1.0, %v1286
        %v1319 = vsub.f32 1.0, %v1287
        %v1320 = vsub.f32 1.0, %v1288
        %v1321 = vsub.f32 1.0, %v1289
        %v1322 = vsub.f32 1.0, %v1290
        %v1323 = vsub.f32 1.0, %v1291
        %v1324 = vsub.f32 1.0, %v1292
        %v1325 = vsub.f32 1.0, %v1293
        %v1326 = vsub.f32 1.0, %v1294
        %v1327 = vsub.f32 1.0, %v1295
        %v1328 = vsub.f32 1.0, %v1296
        %v1329 = vsub.f32 1.0, %v1297
        %v1330 = vsub.f32 1.0, %v1298
        %v1331 = vsub.f32 1.0, %v1299
        %v1332 = vsub.f32 1.0, %v1300
        %vm1333 = vcmp.ge.f32.partialorder %v661, 0.0
        %vm1334 = vcmp.ge.f32.partialorder %v662, 0.0
        %vm1335 = vcmp.ge.f32.partialorder %v663, 0.0
        %vm1336 = vcmp.ge.f32.partialorder %v664, 0.0
        %vm1337 = vcmp.ge.f32.partialorder %v665, 0.0
        %vm1338 = vcmp.ge.f32.partialorder %v666, 0.0
        %vm1339 = vcmp.ge.f32.partialorder %v667, 0.0
        %vm1340 = vcmp.ge.f32.partialorder %v668, 0.0
        %vm1341 = vcmp.ge.f32.partialorder %v669, 0.0
        %vm1342 = vcmp.ge.f32.partialorder %v670, 0.0
        %vm1343 = vcmp.ge.f32.partialorder %v671, 0.0
        %vm1344 = vcmp.ge.f32.partialorder %v672, 0.0
        %vm1345 = vcmp.ge.f32.partialorder %v673, 0.0
        %vm1346 = vcmp.ge.f32.partialorder %v674, 0.0
        %vm1347 = vcmp.ge.f32.partialorder %v675, 0.0
        %vm1348 = vcmp.ge.f32.partialorder %v676, 0.0
        %vm1349 = vcmp.ge.f32.partialorder %v677, 0.0
        %vm1350 = vcmp.ge.f32.partialorder %v678, 0.0
        %vm1351 = vcmp.ge.f32.partialorder %v679, 0.0
        %vm1352 = vcmp.ge.f32.partialorder %v680, 0.0
        %vm1353 = vcmp.ge.f32.partialorder %v681, 0.0
        %vm1354 = vcmp.ge.f32.partialorder %v682, 0.0
        %vm1355 = vcmp.ge.f32.partialorder %v683, 0.0
        %vm1356 = vcmp.ge.f32.partialorder %v684, 0.0
        %vm1357 = vcmp.ge.f32.partialorder %v685, 0.0
        %vm1358 = vcmp.ge.f32.partialorder %v686, 0.0
        %vm1359 = vcmp.ge.f32.partialorder %v687, 0.0
        %vm1360 = vcmp.ge.f32.partialorder %v688, 0.0
        %vm1361 = vcmp.ge.f32.partialorder %v689, 0.0
        %vm1362 = vcmp.ge.f32.partialorder %v690, 0.0
        %vm1363 = vcmp.ge.f32.partialorder %v691, 0.0
        %vm1364 = vcmp.ge.f32.partialorder %v692, 0.0
        %v1365 = vsub.f32 0.0, %v1301
        %v1366 = vsub.f32 0.0, %v1302
        %v1367 = vsub.f32 0.0, %v1303
        %v1368 = vsub.f32 0.0, %v1304
        %v1369 = vsub.f32 0.0, %v1305
        %v1370 = vsub.f32 0.0, %v1306
        %v1371 = vsub.f32 0.0, %v1307
        %v1372 = vsub.f32 0.0, %v1308
        %v1373 = vsub.f32 0.0, %v1309
        %v1374 = vsub.f32 0.0, %v1310
        %v1375 = vsub.f32 0.0, %v1311
        %v1376 = vsub.f32 0.0, %v1312
        %v1377 = vsub.f32 0.0, %v1313
        %v1378 = vsub.f32 0.0, %v1314
        %v1379 = vsub.f32 0.0, %v1315
        %v1380 = vsub.f32 0.0, %v1316
        %v1381 = vsub.f32 0.0, %v1317
        %v1382 = vsub.f32 0.0, %v1318
        %v1383 = vsub.f32 0.0, %v1319
        %v1384 = vsub.f32 0.0, %v1320
        %v1385 = vsub.f32 0.0, %v1321
        %v1386 = vsub.f32 0.0, %v1322
        %v1387 = vsub.f32 0.0, %v1323
        %v1388 = vsub.f32 0.0, %v1324
        %v1389 = vsub.f32 0.0, %v1325
        %v1390 = vsub.f32 0.0, %v1326
        %v1391 = vsub.f32 0.0, %v1327
        %v1392 = vsub.f32 0.0, %v1328
        %v1393 = vsub.f32 0.0, %v1329
        %v1394 = vsub.f32 0.0, %v1330
        %v1395 = vsub.f32 0.0, %v1331
        %v1396 = vsub.f32 0.0, %v1332
        %v1397 = vsel %vm1333, %v1301, %v1365
        %v1398 = vsel %vm1334, %v1302, %v1366
        %v1399 = vsel %vm1335, %v1303, %v1367
        %v1400 = vsel %vm1336, %v1304, %v1368
        %v1401 = vsel %vm1337, %v1305, %v1369
        %v1402 = vsel %vm1338, %v1306, %v1370
        %v1403 = vsel %vm1339, %v1307, %v1371
        %v1404 = vsel %vm1340, %v1308, %v1372
        %v1405 = vsel %vm1341, %v1309, %v1373
        %v1406 = vsel %vm1342, %v1310, %v1374
        %v1407 = vsel %vm1343, %v1311, %v1375
        %v1408 = vsel %vm1344, %v1312, %v1376
        %v1409 = vsel %vm1345, %v1313, %v1377
        %v1410 = vsel %vm1346, %v1314, %v1378
        %v1411 = vsel %vm1347, %v1315, %v1379
        %v1412 = vsel %vm1348, %v1316, %v1380
        %v1413 = vsel %vm1349, %v1317, %v1381
        %v1414 = vsel %vm1350, %v1318, %v1382
        %v1415 = vsel %vm1351, %v1319, %v1383
        %v1416 = vsel %vm1352, %v1320, %v1384
        %v1417 = vsel %vm1353, %v1321, %v1385
        %v1418 = vsel %vm1354, %v1322, %v1386
        %v1419 = vsel %vm1355, %v1323, %v1387
        %v1420 = vsel %vm1356, %v1324, %v1388
        %v1421 = vsel %vm1357, %v1325, %v1389
        %v1422 = vsel %vm1358, %v1326, %v1390
        %v1423 = vsel %vm1359, %v1327, %v1391
        %v1424 = vsel %vm1360, %v1328, %v1392
        %v1425 = vsel %vm1361, %v1329, %v1393
        %v1426 = vsel %vm1362, %v1330, %v1394
        %v1427 = vsel %vm1363, %v1331, %v1395
        %v1428 = vsel %vm1364, %v1332, %v1396
        %v1429 = vadd.f32 %v1397, 1.0
        %v1430 = vadd.f32 %v1398, 1.0
        %v1431 = vadd.f32 %v1399, 1.0
        %v1432 = vadd.f32 %v1400, 1.0
        %v1433 = vadd.f32 %v1401, 1.0
        %v1434 = vadd.f32 %v1402, 1.0
        %v1435 = vadd.f32 %v1403, 1.0
        %v1436 = vadd.f32 %v1404, 1.0
        %v1437 = vadd.f32 %v1405, 1.0
        %v1438 = vadd.f32 %v1406, 1.0
        %v1439 = vadd.f32 %v1407, 1.0
        %v1440 = vadd.f32 %v1408, 1.0
        %v1441 = vadd.f32 %v1409, 1.0
        %v1442 = vadd.f32 %v1410, 1.0
        %v1443 = vadd.f32 %v1411, 1.0
        %v1444 = vadd.f32 %v1412, 1.0
        %v1445 = vadd.f32 %v1413, 1.0
        %v1446 = vadd.f32 %v1414, 1.0
        %v1447 = vadd.f32 %v1415, 1.0
        %v1448 = vadd.f32 %v1416, 1.0
        %v1449 = vadd.f32 %v1417, 1.0
        %v1450 = vadd.f32 %v1418, 1.0
        %v1451 = vadd.f32 %v1419, 1.0
        %v1452 = vadd.f32 %v1420, 1.0
        %v1453 = vadd.f32 %v1421, 1.0
        %v1454 = vadd.f32 %v1422, 1.0
        %v1455 = vadd.f32 %v1423, 1.0
        %v1456 = vadd.f32 %v1424, 1.0
        %v1457 = vadd.f32 %v1425, 1.0
        %v1458 = vadd.f32 %v1426, 1.0
        %v1459 = vadd.f32 %v1427, 1.0
        %v1460 = vadd.f32 %v1428, 1.0
        %v1461 = vmul.f32 %v629, %v1429
        %v1462 = vmul.f32 %v630, %v1430
        %v1463 = vmul.f32 %v631, %v1431
        %v1464 = vmul.f32 %v632, %v1432
        %v1465 = vmul.f32 %v633, %v1433
        %v1466 = vmul.f32 %v634, %v1434
        %v1467 = vmul.f32 %v635, %v1435
        %v1468 = vmul.f32 %v636, %v1436
        %v1469 = vmul.f32 %v637, %v1437
        %v1470 = vmul.f32 %v638, %v1438
        %v1471 = vmul.f32 %v639, %v1439
        %v1472 = vmul.f32 %v640, %v1440
        %v1473 = vmul.f32 %v641, %v1441
        %v1474 = vmul.f32 %v642, %v1442
        %v1475 = vmul.f32 %v643, %v1443
        %v1476 = vmul.f32 %v644, %v1444
        %v1477 = vmul.f32 %v645, %v1445
        %v1478 = vmul.f32 %v646, %v1446
        %v1479 = vmul.f32 %v647, %v1447
        %v1480 = vmul.f32 %v648, %v1448
        %v1481 = vmul.f32 %v649, %v1449
        %v1482 = vmul.f32 %v650, %v1450
        %v1483 = vmul.f32 %v651, %v1451
        %v1484 = vmul.f32 %v652, %v1452
        %v1485 = vmul.f32 %v653, %v1453
        %v1486 = vmul.f32 %v654, %v1454
        %v1487 = vmul.f32 %v655, %v1455
        %v1488 = vmul.f32 %v656, %v1456
        %v1489 = vmul.f32 %v657, %v1457
        %v1490 = vmul.f32 %v658, %v1458
        %v1491 = vmul.f32 %v659, %v1459
        %v1492 = vmul.f32 %v660, %v1460
        %v1493 = vpack.c.bf16 %v1463, %v1461
        %v1494 = vpack.c.bf16 %v1464, %v1462
        %v1495 = vpack.c.bf16 %v1467, %v1465
        %v1496 = vpack.c.bf16 %v1468, %v1466
        %v1497 = vpack.c.bf16 %v1471, %v1469
        %v1498 = vpack.c.bf16 %v1472, %v1470
        %v1499 = vpack.c.bf16 %v1475, %v1473
        %v1500 = vpack.c.bf16 %v1476, %v1474
        %v1501 = vpack.c.bf16 %v1479, %v1477
        %v1502 = vpack.c.bf16 %v1480, %v1478
        %v1503 = vpack.c.bf16 %v1483, %v1481
        %v1504 = vpack.c.bf16 %v1484, %v1482
        %v1505 = vpack.c.bf16 %v1487, %v1485
        %v1506 = vpack.c.bf16 %v1488, %v1486
        %v1507 = vpack.c.bf16 %v1491, %v1489
        %v1508 = vpack.c.bf16 %v1492, %v1490
        %v1509 = vld [vmem:[#allocation7] sm:$0xff]
        %v1510 = vld [vmem:[#allocation7 + $0x8] sm:$0xff]
        %v1511 = vld [vmem:[#allocation7 + $0x10] sm:$0xff]
        %v1512 = vld [vmem:[#allocation7 + $0x18] sm:$0xff]
        %v1513 = vld [vmem:[#allocation7 + $0x20] sm:$0xff]
        %v1514 = vld [vmem:[#allocation7 + $0x28] sm:$0xff]
        %v1515 = vld [vmem:[#allocation7 + $0x30] sm:$0xff]
        %v1516 = vld [vmem:[#allocation7 + $0x38] sm:$0xff]
        %v1517 = vld [vmem:[#allocation7 + $0x40] sm:$0xff]
        %v1518 = vld [vmem:[#allocation7 + $0x48] sm:$0xff]
        %v1519 = vld [vmem:[#allocation7 + $0x50] sm:$0xff]
        %v1520 = vld [vmem:[#allocation7 + $0x58] sm:$0xff]
        %v1521 = vld [vmem:[#allocation7 + $0x60] sm:$0xff]
        %v1522 = vld [vmem:[#allocation7 + $0x68] sm:$0xff]
        %v1523 = vld [vmem:[#allocation7 + $0x70] sm:$0xff]
        %v1524 = vld [vmem:[#allocation7 + $0x78] sm:$0xff]
        %v1525 = vld [vmem:[#allocation7 + $0x80] sm:$0xff]
        %v1526 = vld [vmem:[#allocation7 + $0x88] sm:$0xff]
        %v1527 = vld [vmem:[#allocation7 + $0x90] sm:$0xff]
        %v1528 = vld [vmem:[#allocation7 + $0x98] sm:$0xff]
        %v1529 = vld [vmem:[#allocation7 + $0xa0] sm:$0xff]
        %v1530 = vld [vmem:[#allocation7 + $0xa8] sm:$0xff]
        %v1531 = vld [vmem:[#allocation7 + $0xb0] sm:$0xff]
        %v1532 = vld [vmem:[#allocation7 + $0xb8] sm:$0xff]
        %v1533 = vld [vmem:[#allocation7 + $0xc0] sm:$0xff]
        %v1534 = vld [vmem:[#allocation7 + $0xc8] sm:$0xff]
        %v1535 = vld [vmem:[#allocation7 + $0xd0] sm:$0xff]
        %v1536 = vld [vmem:[#allocation7 + $0xd8] sm:$0xff]
        %v1537 = vld [vmem:[#allocation7 + $0xe0] sm:$0xff]
        %v1538 = vld [vmem:[#allocation7 + $0xe8] sm:$0xff]
        %v1539 = vld [vmem:[#allocation7 + $0xf0] sm:$0xff]
        %v1540 = vld [vmem:[#allocation7 + $0xf8] sm:$0xff]
        %v1541 = vld [vmem:[%s4] sm:$0x3]
        %v1543 = vlaneseq
        %v1544 = vshrl.u32 %v1543, 7
        %v1545 = vsub.s32 0, %v1544
        %v1546 = vrot.slane %v1541, %v1545
        %v1547 = vlaneseq
        %v1548 = vshrl.u32 %v1547, 7
        %v1549 = vsub.s32 1, %v1548
        %v1550 = vrot.slane %v1541, %v1549
        %v1585 = vunpack.c.l.b16 %v1509
        %v1586 = vunpack.c.h.b16 %v1509
        %v1587 = vunpack.c.l.b16 %v1510
        %v1588 = vunpack.c.h.b16 %v1510
        %v1589 = vunpack.c.l.b16 %v1511
        %v1590 = vunpack.c.h.b16 %v1511
        %v1591 = vunpack.c.l.b16 %v1512
        %v1592 = vunpack.c.h.b16 %v1512
        %v1593 = vunpack.c.l.b16 %v1513
        %v1594 = vunpack.c.h.b16 %v1513
        %v1595 = vunpack.c.l.b16 %v1514
        %v1596 = vunpack.c.h.b16 %v1514
        %v1597 = vunpack.c.l.b16 %v1515
        %v1598 = vunpack.c.h.b16 %v1515
        %v1599 = vunpack.c.l.b16 %v1516
        %v1600 = vunpack.c.h.b16 %v1516
        %v1601 = vunpack.c.l.b16 %v1517
        %v1602 = vunpack.c.h.b16 %v1517
        %v1603 = vunpack.c.l.b16 %v1518
        %v1604 = vunpack.c.h.b16 %v1518
        %v1605 = vunpack.c.l.b16 %v1519
        %v1606 = vunpack.c.h.b16 %v1519
        %v1607 = vunpack.c.l.b16 %v1520
        %v1608 = vunpack.c.h.b16 %v1520
        %v1609 = vunpack.c.l.b16 %v1521
        %v1610 = vunpack.c.h.b16 %v1521
        %v1611 = vunpack.c.l.b16 %v1522
        %v1612 = vunpack.c.h.b16 %v1522
        %v1613 = vunpack.c.l.b16 %v1523
        %v1614 = vunpack.c.h.b16 %v1523
        %v1615 = vunpack.c.l.b16 %v1524
        %v1616 = vunpack.c.h.b16 %v1524
        %v1617 = vunpack.c.l.b16 %v1525
        %v1618 = vunpack.c.h.b16 %v1525
        %v1619 = vunpack.c.l.b16 %v1526
        %v1620 = vunpack.c.h.b16 %v1526
        %v1621 = vunpack.c.l.b16 %v1527
        %v1622 = vunpack.c.h.b16 %v1527
        %v1623 = vunpack.c.l.b16 %v1528
        %v1624 = vunpack.c.h.b16 %v1528
        %v1625 = vunpack.c.l.b16 %v1529
        %v1626 = vunpack.c.h.b16 %v1529
        %v1627 = vunpack.c.l.b16 %v1530
        %v1628 = vunpack.c.h.b16 %v1530
        %v1629 = vunpack.c.l.b16 %v1531
        %v1630 = vunpack.c.h.b16 %v1531
        %v1631 = vunpack.c.l.b16 %v1532
        %v1632 = vunpack.c.h.b16 %v1532
        %v1633 = vunpack.c.l.b16 %v1533
        %v1634 = vunpack.c.h.b16 %v1533
        %v1635 = vunpack.c.l.b16 %v1534
        %v1636 = vunpack.c.h.b16 %v1534
        %v1637 = vunpack.c.l.b16 %v1535
        %v1638 = vunpack.c.h.b16 %v1535
        %v1639 = vunpack.c.l.b16 %v1536
        %v1640 = vunpack.c.h.b16 %v1536
        %v1641 = vunpack.c.l.b16 %v1537
        %v1642 = vunpack.c.h.b16 %v1537
        %v1643 = vunpack.c.l.b16 %v1538
        %v1644 = vunpack.c.h.b16 %v1538
        %v1645 = vunpack.c.l.b16 %v1539
        %v1646 = vunpack.c.h.b16 %v1539
        %v1647 = vunpack.c.l.b16 %v1540
        %v1648 = vunpack.c.h.b16 %v1540
        %v1649 = vpack.c.b16 %v1587, %v1585
        %v1650 = vpack.c.b16 %v1588, %v1586
        %v1651 = vpack.c.b16 %v1591, %v1589
        %v1652 = vpack.c.b16 %v1592, %v1590
        %v1653 = vpack.c.b16 %v1595, %v1593
        %v1654 = vpack.c.b16 %v1596, %v1594
        %v1655 = vpack.c.b16 %v1599, %v1597
        %v1656 = vpack.c.b16 %v1600, %v1598
        %v1657 = vpack.c.b16 %v1603, %v1601
        %v1658 = vpack.c.b16 %v1604, %v1602
        %v1659 = vpack.c.b16 %v1607, %v1605
        %v1660 = vpack.c.b16 %v1608, %v1606
        %v1661 = vpack.c.b16 %v1611, %v1609
        %v1662 = vpack.c.b16 %v1612, %v1610
        %v1663 = vpack.c.b16 %v1615, %v1613
        %v1664 = vpack.c.b16 %v1616, %v1614
        %v1665 = vpack.c.b16 %v1619, %v1617
        %v1666 = vpack.c.b16 %v1620, %v1618
        %v1667 = vpack.c.b16 %v1623, %v1621
        %v1668 = vpack.c.b16 %v1624, %v1622
        %v1669 = vpack.c.b16 %v1627, %v1625
        %v1670 = vpack.c.b16 %v1628, %v1626
        %v1671 = vpack.c.b16 %v1631, %v1629
        %v1672 = vpack.c.b16 %v1632, %v1630
        %v1673 = vpack.c.b16 %v1635, %v1633
        %v1674 = vpack.c.b16 %v1636, %v1634
        %v1675 = vpack.c.b16 %v1639, %v1637
        %v1676 = vpack.c.b16 %v1640, %v1638
        %v1677 = vpack.c.b16 %v1643, %v1641
        %v1678 = vpack.c.b16 %v1644, %v1642
        %v1679 = vpack.c.b16 %v1647, %v1645
        %v1680 = vpack.c.b16 %v1648, %v1646
        %1713 = vmatprep.subr.bf16.mxu0 %v1650
        %1714 = vmatpush1.bf16.msra.mxu0 %v1649
        %1715 = vmatprep.subr.bf16.mxu0 %v1652
        %1716 = vmatpush1.bf16.msra.mxu0 %v1651
        %1717 = vmatprep.subr.bf16.mxu0 %v1654
        %1718 = vmatpush1.bf16.msra.mxu0 %v1653
        %1719 = vmatprep.subr.bf16.mxu0 %v1656
        %1720 = vmatpush1.bf16.msra.mxu0 %v1655
        %1721 = vmatprep.subr.bf16.mxu0 %v1658
        %1722 = vmatpush1.bf16.msra.mxu0 %v1657
        %1723 = vmatprep.subr.bf16.mxu0 %v1660
        %1724 = vmatpush1.bf16.msra.mxu0 %v1659
        %1725 = vmatprep.subr.bf16.mxu0 %v1662
        %1726 = vmatpush1.bf16.msra.mxu0 %v1661
        %1727 = vmatprep.subr.bf16.mxu0 %v1664
        %1728 = vmatpush1.bf16.msra.mxu0 %v1663
        %1729 = vmatprep.subr.bf16.mxu0 %v1666
        %1730 = vmatpush1.bf16.msra.mxu0 %v1665
        %1731 = vmatprep.subr.bf16.mxu0 %v1668
        %1732 = vmatpush1.bf16.msra.mxu0 %v1667
        %1733 = vmatprep.subr.bf16.mxu0 %v1670
        %1734 = vmatpush1.bf16.msra.mxu0 %v1669
        %1735 = vmatprep.subr.bf16.mxu0 %v1672
        %1736 = vmatpush1.bf16.msra.mxu0 %v1671
        %1737 = vmatprep.subr.bf16.mxu0 %v1674
        %1738 = vmatpush1.bf16.msra.mxu0 %v1673
        %1739 = vmatprep.subr.bf16.mxu0 %v1676
        %1740 = vmatpush1.bf16.msra.mxu0 %v1675
        %1741 = vmatprep.subr.bf16.mxu0 %v1678
        %1742 = vmatpush1.bf16.msra.mxu0 %v1677
        %1743 = vmatprep.subr.bf16.mxu0 %v1680
        %1744 = vmatpush1.bf16.msra.mxu0 %v1679
        %1745 = vmatprep.mubr.bf16.mxu0 %v1494
        %1746 = vmatmul.mubr.bf16.gmra.mrb[0].mxu0 %v1493
        %v1747 = vpop.f32.mrb[0].mxu0
        %v1748 = vadd.f32 %v1546, %v1747
        %v1749 = vpop.f32.mrb[0].mxu0
        %v1750 = vadd.f32 %v1550, %v1749
        %v1751 = vpop.f32.mrb[0].mxu0
        %v1752 = vadd.f32 %v1546, %v1751
        %v1753 = vpop.f32.mrb[0].mxu0
        %v1754 = vadd.f32 %v1550, %v1753
        %1755 = vmatprep.mubr.bf16.mxu0 %v1496
        %1756 = vmatmul.mubr.bf16.gmra.mrb[0].mxu0 %v1495
        %v1757 = vpop.f32.mrb[0].mxu0
        %v1758 = vadd.f32 %v1546, %v1757
        %v1759 = vpop.f32.mrb[0].mxu0
        %v1760 = vadd.f32 %v1550, %v1759
        %v1761 = vpop.f32.mrb[0].mxu0
        %v1762 = vadd.f32 %v1546, %v1761
        %v1763 = vpop.f32.mrb[0].mxu0
        %v1764 = vadd.f32 %v1550, %v1763
        %1765 = vmatprep.mubr.bf16.mxu0 %v1498
        %1766 = vmatmul.mubr.bf16.gmra.mrb[0].mxu0 %v1497
        %v1767 = vpop.f32.mrb[0].mxu0
        %v1768 = vadd.f32 %v1546, %v1767
        %v1769 = vpop.f32.mrb[0].mxu0
        %v1770 = vadd.f32 %v1550, %v1769
        %v1771 = vpop.f32.mrb[0].mxu0
        %v1772 = vadd.f32 %v1546, %v1771
        %v1773 = vpop.f32.mrb[0].mxu0
        %v1774 = vadd.f32 %v1550, %v1773
        %1775 = vmatprep.mubr.bf16.mxu0 %v1500
        %1776 = vmatmul.mubr.bf16.gmra.mrb[0].mxu0 %v1499
        %v1777 = vpop.f32.mrb[0].mxu0
        %v1778 = vadd.f32 %v1546, %v1777
        %v1779 = vpop.f32.mrb[0].mxu0
        %v1780 = vadd.f32 %v1550, %v1779
        %v1781 = vpop.f32.mrb[0].mxu0
        %v1782 = vadd.f32 %v1546, %v1781
        %v1783 = vpop.f32.mrb[0].mxu0
        %v1784 = vadd.f32 %v1550, %v1783
        %1785 = vmatprep.mubr.bf16.mxu0 %v1502
        %1786 = vmatmul.mubr.bf16.gmra.mrb[0].mxu0 %v1501
        %v1787 = vpop.f32.mrb[0].mxu0
        %v1788 = vadd.f32 %v1546, %v1787
        %v1789 = vpop.f32.mrb[0].mxu0
        %v1790 = vadd.f32 %v1550, %v1789
        %v1791 = vpop.f32.mrb[0].mxu0
        %v1792 = vadd.f32 %v1546, %v1791
        %v1793 = vpop.f32.mrb[0].mxu0
        %v1794 = vadd.f32 %v1550, %v1793
        %1795 = vmatprep.mubr.bf16.mxu0 %v1504
        %1796 = vmatmul.mubr.bf16.gmra.mrb[0].mxu0 %v1503
        %v1797 = vpop.f32.mrb[0].mxu0
        %v1798 = vadd.f32 %v1546, %v1797
        %v1799 = vpop.f32.mrb[0].mxu0
        %v1800 = vadd.f32 %v1550, %v1799
        %v1801 = vpop.f32.mrb[0].mxu0
        %v1802 = vadd.f32 %v1546, %v1801
        %v1803 = vpop.f32.mrb[0].mxu0
        %v1804 = vadd.f32 %v1550, %v1803
        %1805 = vmatprep.mubr.bf16.mxu0 %v1506
        %1806 = vmatmul.mubr.bf16.gmra.mrb[0].mxu0 %v1505
        %v1807 = vpop.f32.mrb[0].mxu0
        %v1808 = vadd.f32 %v1546, %v1807
        %v1809 = vpop.f32.mrb[0].mxu0
        %v1810 = vadd.f32 %v1550, %v1809
        %v1811 = vpop.f32.mrb[0].mxu0
        %v1812 = vadd.f32 %v1546, %v1811
        %v1813 = vpop.f32.mrb[0].mxu0
        %v1814 = vadd.f32 %v1550, %v1813
        %1815 = vmatprep.mubr.bf16.mxu0 %v1508
        %1816 = vmatmul.mubr.bf16.gmra.mrb[0].mxu0 %v1507
        %v1817 = vpop.f32.mrb[0].mxu0
        %v1818 = vadd.f32 %v1546, %v1817
        %v1819 = vpop.f32.mrb[0].mxu0
        %v1820 = vadd.f32 %v1550, %v1819
        %v1821 = vpop.f32.mrb[0].mxu0
        %v1822 = vadd.f32 %v1546, %v1821
        %v1823 = vpop.f32.mrb[0].mxu0
        %v1824 = vadd.f32 %v1550, %v1823
        %1825 = vdwg.mxu0
        %v1826 = vmul.f32 %v1748, 0.5
        %v1827 = vmul.f32 %v1750, 0.5
        %v1828 = vmul.f32 %v1752, 0.5
        %v1829 = vmul.f32 %v1754, 0.5
        %v1830 = vmul.f32 %v1758, 0.5
        %v1831 = vmul.f32 %v1760, 0.5
        %v1832 = vmul.f32 %v1762, 0.5
        %v1833 = vmul.f32 %v1764, 0.5
        %v1834 = vmul.f32 %v1768, 0.5
        %v1835 = vmul.f32 %v1770, 0.5
        %v1836 = vmul.f32 %v1772, 0.5
        %v1837 = vmul.f32 %v1774, 0.5
        %v1838 = vmul.f32 %v1778, 0.5
        %v1839 = vmul.f32 %v1780, 0.5
        %v1840 = vmul.f32 %v1782, 0.5
        %v1841 = vmul.f32 %v1784, 0.5
        %v1842 = vmul.f32 %v1788, 0.5
        %v1843 = vmul.f32 %v1790, 0.5
        %v1844 = vmul.f32 %v1792, 0.5
        %v1845 = vmul.f32 %v1794, 0.5
        %v1846 = vmul.f32 %v1798, 0.5
        %v1847 = vmul.f32 %v1800, 0.5
        %v1848 = vmul.f32 %v1802, 0.5
        %v1849 = vmul.f32 %v1804, 0.5
        %v1850 = vmul.f32 %v1808, 0.5
        %v1851 = vmul.f32 %v1810, 0.5
        %v1852 = vmul.f32 %v1812, 0.5
        %v1853 = vmul.f32 %v1814, 0.5
        %v1854 = vmul.f32 %v1818, 0.5
        %v1855 = vmul.f32 %v1820, 0.5
        %v1856 = vmul.f32 %v1822, 0.5
        %v1857 = vmul.f32 %v1824, 0.5
        %v1858 = vmul.f32 %v1748, 0.70710677
        %v1859 = vmul.f32 %v1750, 0.70710677
        %v1860 = vmul.f32 %v1752, 0.70710677
        %v1861 = vmul.f32 %v1754, 0.70710677
        %v1862 = vmul.f32 %v1758, 0.70710677
        %v1863 = vmul.f32 %v1760, 0.70710677
        %v1864 = vmul.f32 %v1762, 0.70710677
        %v1865 = vmul.f32 %v1764, 0.70710677
        %v1866 = vmul.f32 %v1768, 0.70710677
        %v1867 = vmul.f32 %v1770, 0.70710677
        %v1868 = vmul.f32 %v1772, 0.70710677
        %v1869 = vmul.f32 %v1774, 0.70710677
        %v1870 = vmul.f32 %v1778, 0.70710677
        %v1871 = vmul.f32 %v1780, 0.70710677
        %v1872 = vmul.f32 %v1782, 0.70710677
        %v1873 = vmul.f32 %v1784, 0.70710677
        %v1874 = vmul.f32 %v1788, 0.70710677
        %v1875 = vmul.f32 %v1790, 0.70710677
        %v1876 = vmul.f32 %v1792, 0.70710677
        %v1877 = vmul.f32 %v1794, 0.70710677
        %v1878 = vmul.f32 %v1798, 0.70710677
        %v1879 = vmul.f32 %v1800, 0.70710677
        %v1880 = vmul.f32 %v1802, 0.70710677
        %v1881 = vmul.f32 %v1804, 0.70710677
        %v1882 = vmul.f32 %v1808, 0.70710677
        %v1883 = vmul.f32 %v1810, 0.70710677
        %v1884 = vmul.f32 %v1812, 0.70710677
        %v1885 = vmul.f32 %v1814, 0.70710677
        %v1886 = vmul.f32 %v1818, 0.70710677
        %v1887 = vmul.f32 %v1820, 0.70710677
        %v1888 = vmul.f32 %v1822, 0.70710677
        %v1889 = vmul.f32 %v1824, 0.70710677
        %v1890 = vand.u32 2147483647, %v1858
        %v1891 = vand.u32 2147483647, %v1859
        %v1892 = vand.u32 2147483647, %v1860
        %v1893 = vand.u32 2147483647, %v1861
        %v1894 = vand.u32 2147483647, %v1862
        %v1895 = vand.u32 2147483647, %v1863
        %v1896 = vand.u32 2147483647, %v1864
        %v1897 = vand.u32 2147483647, %v1865
        %v1898 = vand.u32 2147483647, %v1866
        %v1899 = vand.u32 2147483647, %v1867
        %v1900 = vand.u32 2147483647, %v1868
        %v1901 = vand.u32 2147483647, %v1869
        %v1902 = vand.u32 2147483647, %v1870
        %v1903 = vand.u32 2147483647, %v1871
        %v1904 = vand.u32 2147483647, %v1872
        %v1905 = vand.u32 2147483647, %v1873
        %v1906 = vand.u32 2147483647, %v1874
        %v1907 = vand.u32 2147483647, %v1875
        %v1908 = vand.u32 2147483647, %v1876
        %v1909 = vand.u32 2147483647, %v1877
        %v1910 = vand.u32 2147483647, %v1878
        %v1911 = vand.u32 2147483647, %v1879
        %v1912 = vand.u32 2147483647, %v1880
        %v1913 = vand.u32 2147483647, %v1881
        %v1914 = vand.u32 2147483647, %v1882
        %v1915 = vand.u32 2147483647, %v1883
        %v1916 = vand.u32 2147483647, %v1884
        %v1917 = vand.u32 2147483647, %v1885
        %v1918 = vand.u32 2147483647, %v1886
        %v1919 = vand.u32 2147483647, %v1887
        %v1920 = vand.u32 2147483647, %v1888
        %v1921 = vand.u32 2147483647, %v1889
        %v1922 = vmul.f32 %v1890, 0.3275911
        %v1923 = vmul.f32 %v1891, 0.3275911
        %v1924 = vmul.f32 %v1892, 0.3275911
        %v1925 = vmul.f32 %v1893, 0.3275911
        %v1926 = vmul.f32 %v1894, 0.3275911
        %v1927 = vmul.f32 %v1895, 0.3275911
        %v1928 = vmul.f32 %v1896, 0.3275911
        %v1929 = vmul.f32 %v1897, 0.3275911
        %v1930 = vmul.f32 %v1898, 0.3275911
        %v1931 = vmul.f32 %v1899, 0.3275911
        %v1932 = vmul.f32 %v1900, 0.3275911
        %v1933 = vmul.f32 %v1901, 0.3275911
        %v1934 = vmul.f32 %v1902, 0.3275911
        %v1935 = vmul.f32 %v1903, 0.3275911
        %v1936 = vmul.f32 %v1904, 0.3275911
        %v1937 = vmul.f32 %v1905, 0.3275911
        %v1938 = vmul.f32 %v1906, 0.3275911
        %v1939 = vmul.f32 %v1907, 0.3275911
        %v1940 = vmul.f32 %v1908, 0.3275911
        %v1941 = vmul.f32 %v1909, 0.3275911
        %v1942 = vmul.f32 %v1910, 0.3275911
        %v1943 = vmul.f32 %v1911, 0.3275911
        %v1944 = vmul.f32 %v1912, 0.3275911
        %v1945 = vmul.f32 %v1913, 0.3275911
        %v1946 = vmul.f32 %v1914, 0.3275911
        %v1947 = vmul.f32 %v1915, 0.3275911
        %v1948 = vmul.f32 %v1916, 0.3275911
        %v1949 = vmul.f32 %v1917, 0.3275911
        %v1950 = vmul.f32 %v1918, 0.3275911
        %v1951 = vmul.f32 %v1919, 0.3275911
        %v1952 = vmul.f32 %v1920, 0.3275911
        %v1953 = vmul.f32 %v1921, 0.3275911
        %v1954 = vadd.f32 %v1922, 1.0
        %v1955 = vadd.f32 %v1923, 1.0
        %v1956 = vadd.f32 %v1924, 1.0
        %v1957 = vadd.f32 %v1925, 1.0
        %v1958 = vadd.f32 %v1926, 1.0
        %v1959 = vadd.f32 %v1927, 1.0
        %v1960 = vadd.f32 %v1928, 1.0
        %v1961 = vadd.f32 %v1929, 1.0
        %v1962 = vadd.f32 %v1930, 1.0
        %v1963 = vadd.f32 %v1931, 1.0
        %v1964 = vadd.f32 %v1932, 1.0
        %v1965 = vadd.f32 %v1933, 1.0
        %v1966 = vadd.f32 %v1934, 1.0
        %v1967 = vadd.f32 %v1935, 1.0
        %v1968 = vadd.f32 %v1936, 1.0
        %v1969 = vadd.f32 %v1937, 1.0
        %v1970 = vadd.f32 %v1938, 1.0
        %v1971 = vadd.f32 %v1939, 1.0
        %v1972 = vadd.f32 %v1940, 1.0
        %v1973 = vadd.f32 %v1941, 1.0
        %v1974 = vadd.f32 %v1942, 1.0
        %v1975 = vadd.f32 %v1943, 1.0
        %v1976 = vadd.f32 %v1944, 1.0
        %v1977 = vadd.f32 %v1945, 1.0
        %v1978 = vadd.f32 %v1946, 1.0
        %v1979 = vadd.f32 %v1947, 1.0
        %v1980 = vadd.f32 %v1948, 1.0
        %v1981 = vadd.f32 %v1949, 1.0
        %v1982 = vadd.f32 %v1950, 1.0
        %v1983 = vadd.f32 %v1951, 1.0
        %v1984 = vadd.f32 %v1952, 1.0
        %v1985 = vadd.f32 %v1953, 1.0
        %v1986 = vrcp.pop %v1954
        %v1987 = vmul.f32 1.0, %v1986
        %v1988 = vrcp.pop %v1955
        %v1989 = vmul.f32 1.0, %v1988
        %v1990 = vrcp.pop %v1956
        %v1991 = vmul.f32 1.0, %v1990
        %v1992 = vrcp.pop %v1957
        %v1993 = vmul.f32 1.0, %v1992
        %v1994 = vrcp.pop %v1958
        %v1995 = vmul.f32 1.0, %v1994
        %v1996 = vrcp.pop %v1959
        %v1997 = vmul.f32 1.0, %v1996
        %v1998 = vrcp.pop %v1960
        %v1999 = vmul.f32 1.0, %v1998
        %v2000 = vrcp.pop %v1961
        %v2001 = vmul.f32 1.0, %v2000
        %v2002 = vrcp.pop %v1962
        %v2003 = vmul.f32 1.0, %v2002
        %v2004 = vrcp.pop %v1963
        %v2005 = vmul.f32 1.0, %v2004
        %v2006 = vrcp.pop %v1964
        %v2007 = vmul.f32 1.0, %v2006
        %v2008 = vrcp.pop %v1965
        %v2009 = vmul.f32 1.0, %v2008
        %v2010 = vrcp.pop %v1966
        %v2011 = vmul.f32 1.0, %v2010
        %v2012 = vrcp.pop %v1967
        %v2013 = vmul.f32 1.0, %v2012
        %v2014 = vrcp.pop %v1968
        %v2015 = vmul.f32 1.0, %v2014
        %v2016 = vrcp.pop %v1969
        %v2017 = vmul.f32 1.0, %v2016
        %v2018 = vrcp.pop %v1970
        %v2019 = vmul.f32 1.0, %v2018
        %v2020 = vrcp.pop %v1971
        %v2021 = vmul.f32 1.0, %v2020
        %v2022 = vrcp.pop %v1972
        %v2023 = vmul.f32 1.0, %v2022
        %v2024 = vrcp.pop %v1973
        %v2025 = vmul.f32 1.0, %v2024
        %v2026 = vrcp.pop %v1974
        %v2027 = vmul.f32 1.0, %v2026
        %v2028 = vrcp.pop %v1975
        %v2029 = vmul.f32 1.0, %v2028
        %v2030 = vrcp.pop %v1976
        %v2031 = vmul.f32 1.0, %v2030
        %v2032 = vrcp.pop %v1977
        %v2033 = vmul.f32 1.0, %v2032
        %v2034 = vrcp.pop %v1978
        %v2035 = vmul.f32 1.0, %v2034
        %v2036 = vrcp.pop %v1979
        %v2037 = vmul.f32 1.0, %v2036
        %v2038 = vrcp.pop %v1980
        %v2039 = vmul.f32 1.0, %v2038
        %v2040 = vrcp.pop %v1981
        %v2041 = vmul.f32 1.0, %v2040
        %v2042 = vrcp.pop %v1982
        %v2043 = vmul.f32 1.0, %v2042
        %v2044 = vrcp.pop %v1983
        %v2045 = vmul.f32 1.0, %v2044
        %v2046 = vrcp.pop %v1984
        %v2047 = vmul.f32 1.0, %v2046
        %v2048 = vrcp.pop %v1985
        %v2049 = vmul.f32 1.0, %v2048
        %v2050 = vmul.f32 %v1987, 1.0614054
        %v2051 = vmul.f32 %v1989, 1.0614054
        %v2052 = vmul.f32 %v1991, 1.0614054
        %v2053 = vmul.f32 %v1993, 1.0614054
        %v2054 = vmul.f32 %v1995, 1.0614054
        %v2055 = vmul.f32 %v1997, 1.0614054
        %v2056 = vmul.f32 %v1999, 1.0614054
        %v2057 = vmul.f32 %v2001, 1.0614054
        %v2058 = vmul.f32 %v2003, 1.0614054
        %v2059 = vmul.f32 %v2005, 1.0614054
        %v2060 = vmul.f32 %v2007, 1.0614054
        %v2061 = vmul.f32 %v2009, 1.0614054
        %v2062 = vmul.f32 %v2011, 1.0614054
        %v2063 = vmul.f32 %v2013, 1.0614054
        %v2064 = vmul.f32 %v2015, 1.0614054
        %v2065 = vmul.f32 %v2017, 1.0614054
        %v2066 = vmul.f32 %v2019, 1.0614054
        %v2067 = vmul.f32 %v2021, 1.0614054
        %v2068 = vmul.f32 %v2023, 1.0614054
        %v2069 = vmul.f32 %v2025, 1.0614054
        %v2070 = vmul.f32 %v2027, 1.0614054
        %v2071 = vmul.f32 %v2029, 1.0614054
        %v2072 = vmul.f32 %v2031, 1.0614054
        %v2073 = vmul.f32 %v2033, 1.0614054
        %v2074 = vmul.f32 %v2035, 1.0614054
        %v2075 = vmul.f32 %v2037, 1.0614054
        %v2076 = vmul.f32 %v2039, 1.0614054
        %v2077 = vmul.f32 %v2041, 1.0614054
        %v2078 = vmul.f32 %v2043, 1.0614054
        %v2079 = vmul.f32 %v2045, 1.0614054
        %v2080 = vmul.f32 %v2047, 1.0614054
        %v2081 = vmul.f32 %v2049, 1.0614054
        %v2082 = vadd.f32 %v2050, -1.4531521
        %v2083 = vadd.f32 %v2051, -1.4531521
        %v2084 = vadd.f32 %v2052, -1.4531521
        %v2085 = vadd.f32 %v2053, -1.4531521
        %v2086 = vadd.f32 %v2054, -1.4531521
        %v2087 = vadd.f32 %v2055, -1.4531521
        %v2088 = vadd.f32 %v2056, -1.4531521
        %v2089 = vadd.f32 %v2057, -1.4531521
        %v2090 = vadd.f32 %v2058, -1.4531521
        %v2091 = vadd.f32 %v2059, -1.4531521
        %v2092 = vadd.f32 %v2060, -1.4531521
        %v2093 = vadd.f32 %v2061, -1.4531521
        %v2094 = vadd.f32 %v2062, -1.4531521
        %v2095 = vadd.f32 %v2063, -1.4531521
        %v2096 = vadd.f32 %v2064, -1.4531521
        %v2097 = vadd.f32 %v2065, -1.4531521
        %v2098 = vadd.f32 %v2066, -1.4531521
        %v2099 = vadd.f32 %v2067, -1.4531521
        %v2100 = vadd.f32 %v2068, -1.4531521
        %v2101 = vadd.f32 %v2069, -1.4531521
        %v2102 = vadd.f32 %v2070, -1.4531521
        %v2103 = vadd.f32 %v2071, -1.4531521
        %v2104 = vadd.f32 %v2072, -1.4531521
        %v2105 = vadd.f32 %v2073, -1.4531521
        %v2106 = vadd.f32 %v2074, -1.4531521
        %v2107 = vadd.f32 %v2075, -1.4531521
        %v2108 = vadd.f32 %v2076, -1.4531521
        %v2109 = vadd.f32 %v2077, -1.4531521
        %v2110 = vadd.f32 %v2078, -1.4531521
        %v2111 = vadd.f32 %v2079, -1.4531521
        %v2112 = vadd.f32 %v2080, -1.4531521
        %v2113 = vadd.f32 %v2081, -1.4531521
        %v2114 = vmul.f32 %v1987, %v2082
        %v2115 = vmul.f32 %v1989, %v2083
        %v2116 = vmul.f32 %v1991, %v2084
        %v2117 = vmul.f32 %v1993, %v2085
        %v2118 = vmul.f32 %v1995, %v2086
        %v2119 = vmul.f32 %v1997, %v2087
        %v2120 = vmul.f32 %v1999, %v2088
        %v2121 = vmul.f32 %v2001, %v2089
        %v2122 = vmul.f32 %v2003, %v2090
        %v2123 = vmul.f32 %v2005, %v2091
        %v2124 = vmul.f32 %v2007, %v2092
        %v2125 = vmul.f32 %v2009, %v2093
        %v2126 = vmul.f32 %v2011, %v2094
        %v2127 = vmul.f32 %v2013, %v2095
        %v2128 = vmul.f32 %v2015, %v2096
        %v2129 = vmul.f32 %v2017, %v2097
        %v2130 = vmul.f32 %v2019, %v2098
        %v2131 = vmul.f32 %v2021, %v2099
        %v2132 = vmul.f32 %v2023, %v2100
        %v2133 = vmul.f32 %v2025, %v2101
        %v2134 = vmul.f32 %v2027, %v2102
        %v2135 = vmul.f32 %v2029, %v2103
        %v2136 = vmul.f32 %v2031, %v2104
        %v2137 = vmul.f32 %v2033, %v2105
        %v2138 = vmul.f32 %v2035, %v2106
        %v2139 = vmul.f32 %v2037, %v2107
        %v2140 = vmul.f32 %v2039, %v2108
        %v2141 = vmul.f32 %v2041, %v2109
        %v2142 = vmul.f32 %v2043, %v2110
        %v2143 = vmul.f32 %v2045, %v2111
        %v2144 = vmul.f32 %v2047, %v2112
        %v2145 = vmul.f32 %v2049, %v2113
        %v2146 = vadd.f32 %v2114, 1.4214138
        %v2147 = vadd.f32 %v2115, 1.4214138
        %v2148 = vadd.f32 %v2116, 1.4214138
        %v2149 = vadd.f32 %v2117, 1.4214138
        %v2150 = vadd.f32 %v2118, 1.4214138
        %v2151 = vadd.f32 %v2119, 1.4214138
        %v2152 = vadd.f32 %v2120, 1.4214138
        %v2153 = vadd.f32 %v2121, 1.4214138
        %v2154 = vadd.f32 %v2122, 1.4214138
        %v2155 = vadd.f32 %v2123, 1.4214138
        %v2156 = vadd.f32 %v2124, 1.4214138
        %v2157 = vadd.f32 %v2125, 1.4214138
        %v2158 = vadd.f32 %v2126, 1.4214138
        %v2159 = vadd.f32 %v2127, 1.4214138
        %v2160 = vadd.f32 %v2128, 1.4214138
        %v2161 = vadd.f32 %v2129, 1.4214138
        %v2162 = vadd.f32 %v2130, 1.4214138
        %v2163 = vadd.f32 %v2131, 1.4214138
        %v2164 = vadd.f32 %v2132, 1.4214138
        %v2165 = vadd.f32 %v2133, 1.4214138
        %v2166 = vadd.f32 %v2134, 1.4214138
        %v2167 = vadd.f32 %v2135, 1.4214138
        %v2168 = vadd.f32 %v2136, 1.4214138
        %v2169 = vadd.f32 %v2137, 1.4214138
        %v2170 = vadd.f32 %v2138, 1.4214138
        %v2171 = vadd.f32 %v2139, 1.4214138
        %v2172 = vadd.f32 %v2140, 1.4214138
        %v2173 = vadd.f32 %v2141, 1.4214138
        %v2174 = vadd.f32 %v2142, 1.4214138
        %v2175 = vadd.f32 %v2143, 1.4214138
        %v2176 = vadd.f32 %v2144, 1.4214138
        %v2177 = vadd.f32 %v2145, 1.4214138
        %v2178 = vmul.f32 %v1987, %v2146
        %v2179 = vmul.f32 %v1989, %v2147
        %v2180 = vmul.f32 %v1991, %v2148
        %v2181 = vmul.f32 %v1993, %v2149
        %v2182 = vmul.f32 %v1995, %v2150
        %v2183 = vmul.f32 %v1997, %v2151
        %v2184 = vmul.f32 %v1999, %v2152
        %v2185 = vmul.f32 %v2001, %v2153
        %v2186 = vmul.f32 %v2003, %v2154
        %v2187 = vmul.f32 %v2005, %v2155
        %v2188 = vmul.f32 %v2007, %v2156
        %v2189 = vmul.f32 %v2009, %v2157
        %v2190 = vmul.f32 %v2011, %v2158
        %v2191 = vmul.f32 %v2013, %v2159
        %v2192 = vmul.f32 %v2015, %v2160
        %v2193 = vmul.f32 %v2017, %v2161
        %v2194 = vmul.f32 %v2019, %v2162
        %v2195 = vmul.f32 %v2021, %v2163
        %v2196 = vmul.f32 %v2023, %v2164
        %v2197 = vmul.f32 %v2025, %v2165
        %v2198 = vmul.f32 %v2027, %v2166
        %v2199 = vmul.f32 %v2029, %v2167
        %v2200 = vmul.f32 %v2031, %v2168
        %v2201 = vmul.f32 %v2033, %v2169
        %v2202 = vmul.f32 %v2035, %v2170
        %v2203 = vmul.f32 %v2037, %v2171
        %v2204 = vmul.f32 %v2039, %v2172
        %v2205 = vmul.f32 %v2041, %v2173
        %v2206 = vmul.f32 %v2043, %v2174
        %v2207 = vmul.f32 %v2045, %v2175
        %v2208 = vmul.f32 %v2047, %v2176
        %v2209 = vmul.f32 %v2049, %v2177
        %v2210 = vadd.f32 %v2178, -0.28449672
        %v2211 = vadd.f32 %v2179, -0.28449672
        %v2212 = vadd.f32 %v2180, -0.28449672
        %v2213 = vadd.f32 %v2181, -0.28449672
        %v2214 = vadd.f32 %v2182, -0.28449672
        %v2215 = vadd.f32 %v2183, -0.28449672
        %v2216 = vadd.f32 %v2184, -0.28449672
        %v2217 = vadd.f32 %v2185, -0.28449672
        %v2218 = vadd.f32 %v2186, -0.28449672
        %v2219 = vadd.f32 %v2187, -0.28449672
        %v2220 = vadd.f32 %v2188, -0.28449672
        %v2221 = vadd.f32 %v2189, -0.28449672
        %v2222 = vadd.f32 %v2190, -0.28449672
        %v2223 = vadd.f32 %v2191, -0.28449672
        %v2224 = vadd.f32 %v2192, -0.28449672
        %v2225 = vadd.f32 %v2193, -0.28449672
        %v2226 = vadd.f32 %v2194, -0.28449672
        %v2227 = vadd.f32 %v2195, -0.28449672
        %v2228 = vadd.f32 %v2196, -0.28449672
        %v2229 = vadd.f32 %v2197, -0.28449672
        %v2230 = vadd.f32 %v2198, -0.28449672
        %v2231 = vadd.f32 %v2199, -0.28449672
        %v2232 = vadd.f32 %v2200, -0.28449672
        %v2233 = vadd.f32 %v2201, -0.28449672
        %v2234 = vadd.f32 %v2202, -0.28449672
        %v2235 = vadd.f32 %v2203, -0.28449672
        %v2236 = vadd.f32 %v2204, -0.28449672
        %v2237 = vadd.f32 %v2205, -0.28449672
        %v2238 = vadd.f32 %v2206, -0.28449672
        %v2239 = vadd.f32 %v2207, -0.28449672
        %v2240 = vadd.f32 %v2208, -0.28449672
        %v2241 = vadd.f32 %v2209, -0.28449672
        %v2242 = vmul.f32 %v1987, %v2210
        %v2243 = vmul.f32 %v1989, %v2211
        %v2244 = vmul.f32 %v1991, %v2212
        %v2245 = vmul.f32 %v1993, %v2213
        %v2246 = vmul.f32 %v1995, %v2214
        %v2247 = vmul.f32 %v1997, %v2215
        %v2248 = vmul.f32 %v1999, %v2216
        %v2249 = vmul.f32 %v2001, %v2217
        %v2250 = vmul.f32 %v2003, %v2218
        %v2251 = vmul.f32 %v2005, %v2219
        %v2252 = vmul.f32 %v2007, %v2220
        %v2253 = vmul.f32 %v2009, %v2221
        %v2254 = vmul.f32 %v2011, %v2222
        %v2255 = vmul.f32 %v2013, %v2223
        %v2256 = vmul.f32 %v2015, %v2224
        %v2257 = vmul.f32 %v2017, %v2225
        %v2258 = vmul.f32 %v2019, %v2226
        %v2259 = vmul.f32 %v2021, %v2227
        %v2260 = vmul.f32 %v2023, %v2228
        %v2261 = vmul.f32 %v2025, %v2229
        %v2262 = vmul.f32 %v2027, %v2230
        %v2263 = vmul.f32 %v2029, %v2231
        %v2264 = vmul.f32 %v2031, %v2232
        %v2265 = vmul.f32 %v2033, %v2233
        %v2266 = vmul.f32 %v2035, %v2234
        %v2267 = vmul.f32 %v2037, %v2235
        %v2268 = vmul.f32 %v2039, %v2236
        %v2269 = vmul.f32 %v2041, %v2237
        %v2270 = vmul.f32 %v2043, %v2238
        %v2271 = vmul.f32 %v2045, %v2239
        %v2272 = vmul.f32 %v2047, %v2240
        %v2273 = vmul.f32 %v2049, %v2241
        %v2274 = vadd.f32 %v2242, 0.2548296
        %v2275 = vadd.f32 %v2243, 0.2548296
        %v2276 = vadd.f32 %v2244, 0.2548296
        %v2277 = vadd.f32 %v2245, 0.2548296
        %v2278 = vadd.f32 %v2246, 0.2548296
        %v2279 = vadd.f32 %v2247, 0.2548296
        %v2280 = vadd.f32 %v2248, 0.2548296
        %v2281 = vadd.f32 %v2249, 0.2548296
        %v2282 = vadd.f32 %v2250, 0.2548296
        %v2283 = vadd.f32 %v2251, 0.2548296
        %v2284 = vadd.f32 %v2252, 0.2548296
        %v2285 = vadd.f32 %v2253, 0.2548296
        %v2286 = vadd.f32 %v2254, 0.2548296
        %v2287 = vadd.f32 %v2255, 0.2548296
        %v2288 = vadd.f32 %v2256, 0.2548296
        %v2289 = vadd.f32 %v2257, 0.2548296
        %v2290 = vadd.f32 %v2258, 0.2548296
        %v2291 = vadd.f32 %v2259, 0.2548296
        %v2292 = vadd.f32 %v2260, 0.2548296
        %v2293 = vadd.f32 %v2261, 0.2548296
        %v2294 = vadd.f32 %v2262, 0.2548296
        %v2295 = vadd.f32 %v2263, 0.2548296
        %v2296 = vadd.f32 %v2264, 0.2548296
        %v2297 = vadd.f32 %v2265, 0.2548296
        %v2298 = vadd.f32 %v2266, 0.2548296
        %v2299 = vadd.f32 %v2267, 0.2548296
        %v2300 = vadd.f32 %v2268, 0.2548296
        %v2301 = vadd.f32 %v2269, 0.2548296
        %v2302 = vadd.f32 %v2270, 0.2548296
        %v2303 = vadd.f32 %v2271, 0.2548296
        %v2304 = vadd.f32 %v2272, 0.2548296
        %v2305 = vadd.f32 %v2273, 0.2548296
        %v2306 = vmul.f32 %v1987, %v2274
        %v2307 = vmul.f32 %v1989, %v2275
        %v2308 = vmul.f32 %v1991, %v2276
        %v2309 = vmul.f32 %v1993, %v2277
        %v2310 = vmul.f32 %v1995, %v2278
        %v2311 = vmul.f32 %v1997, %v2279
        %v2312 = vmul.f32 %v1999, %v2280
        %v2313 = vmul.f32 %v2001, %v2281
        %v2314 = vmul.f32 %v2003, %v2282
        %v2315 = vmul.f32 %v2005, %v2283
        %v2316 = vmul.f32 %v2007, %v2284
        %v2317 = vmul.f32 %v2009, %v2285
        %v2318 = vmul.f32 %v2011, %v2286
        %v2319 = vmul.f32 %v2013, %v2287
        %v2320 = vmul.f32 %v2015, %v2288
        %v2321 = vmul.f32 %v2017, %v2289
        %v2322 = vmul.f32 %v2019, %v2290
        %v2323 = vmul.f32 %v2021, %v2291
        %v2324 = vmul.f32 %v2023, %v2292
        %v2325 = vmul.f32 %v2025, %v2293
        %v2326 = vmul.f32 %v2027, %v2294
        %v2327 = vmul.f32 %v2029, %v2295
        %v2328 = vmul.f32 %v2031, %v2296
        %v2329 = vmul.f32 %v2033, %v2297
        %v2330 = vmul.f32 %v2035, %v2298
        %v2331 = vmul.f32 %v2037, %v2299
        %v2332 = vmul.f32 %v2039, %v2300
        %v2333 = vmul.f32 %v2041, %v2301
        %v2334 = vmul.f32 %v2043, %v2302
        %v2335 = vmul.f32 %v2045, %v2303
        %v2336 = vmul.f32 %v2047, %v2304
        %v2337 = vmul.f32 %v2049, %v2305
        %v2338 = vsub.f32 0.0, %v1890
        %v2339 = vsub.f32 0.0, %v1891
        %v2340 = vsub.f32 0.0, %v1892
        %v2341 = vsub.f32 0.0, %v1893
        %v2342 = vsub.f32 0.0, %v1894
        %v2343 = vsub.f32 0.0, %v1895
        %v2344 = vsub.f32 0.0, %v1896
        %v2345 = vsub.f32 0.0, %v1897
        %v2346 = vsub.f32 0.0, %v1898
        %v2347 = vsub.f32 0.0, %v1899
        %v2348 = vsub.f32 0.0, %v1900
        %v2349 = vsub.f32 0.0, %v1901
        %v2350 = vsub.f32 0.0, %v1902
        %v2351 = vsub.f32 0.0, %v1903
        %v2352 = vsub.f32 0.0, %v1904
        %v2353 = vsub.f32 0.0, %v1905
        %v2354 = vsub.f32 0.0, %v1906
        %v2355 = vsub.f32 0.0, %v1907
        %v2356 = vsub.f32 0.0, %v1908
        %v2357 = vsub.f32 0.0, %v1909
        %v2358 = vsub.f32 0.0, %v1910
        %v2359 = vsub.f32 0.0, %v1911
        %v2360 = vsub.f32 0.0, %v1912
        %v2361 = vsub.f32 0.0, %v1913
        %v2362 = vsub.f32 0.0, %v1914
        %v2363 = vsub.f32 0.0, %v1915
        %v2364 = vsub.f32 0.0, %v1916
        %v2365 = vsub.f32 0.0, %v1917
        %v2366 = vsub.f32 0.0, %v1918
        %v2367 = vsub.f32 0.0, %v1919
        %v2368 = vsub.f32 0.0, %v1920
        %v2369 = vsub.f32 0.0, %v1921
        %v2370 = vmul.f32 %v2338, %v1890
        %v2371 = vmul.f32 %v2339, %v1891
        %v2372 = vmul.f32 %v2340, %v1892
        %v2373 = vmul.f32 %v2341, %v1893
        %v2374 = vmul.f32 %v2342, %v1894
        %v2375 = vmul.f32 %v2343, %v1895
        %v2376 = vmul.f32 %v2344, %v1896
        %v2377 = vmul.f32 %v2345, %v1897
        %v2378 = vmul.f32 %v2346, %v1898
        %v2379 = vmul.f32 %v2347, %v1899
        %v2380 = vmul.f32 %v2348, %v1900
        %v2381 = vmul.f32 %v2349, %v1901
        %v2382 = vmul.f32 %v2350, %v1902
        %v2383 = vmul.f32 %v2351, %v1903
        %v2384 = vmul.f32 %v2352, %v1904
        %v2385 = vmul.f32 %v2353, %v1905
        %v2386 = vmul.f32 %v2354, %v1906
        %v2387 = vmul.f32 %v2355, %v1907
        %v2388 = vmul.f32 %v2356, %v1908
        %v2389 = vmul.f32 %v2357, %v1909
        %v2390 = vmul.f32 %v2358, %v1910
        %v2391 = vmul.f32 %v2359, %v1911
        %v2392 = vmul.f32 %v2360, %v1912
        %v2393 = vmul.f32 %v2361, %v1913
        %v2394 = vmul.f32 %v2362, %v1914
        %v2395 = vmul.f32 %v2363, %v1915
        %v2396 = vmul.f32 %v2364, %v1916
        %v2397 = vmul.f32 %v2365, %v1917
        %v2398 = vmul.f32 %v2366, %v1918
        %v2399 = vmul.f32 %v2367, %v1919
        %v2400 = vmul.f32 %v2368, %v1920
        %v2401 = vmul.f32 %v2369, %v1921
        %v2402 = vmul.f32 %v2370, 1.442695
        %v2403 = vpow.pop %v2402
        %v2404 = vmul.f32 %v2371, 1.442695
        %v2405 = vpow.pop %v2404
        %v2406 = vmul.f32 %v2372, 1.442695
        %v2407 = vpow.pop %v2406
        %v2408 = vmul.f32 %v2373, 1.442695
        %v2409 = vpow.pop %v2408
        %v2410 = vmul.f32 %v2374, 1.442695
        %v2411 = vpow.pop %v2410
        %v2412 = vmul.f32 %v2375, 1.442695
        %v2413 = vpow.pop %v2412
        %v2414 = vmul.f32 %v2376, 1.442695
        %v2415 = vpow.pop %v2414
        %v2416 = vmul.f32 %v2377, 1.442695
        %v2417 = vpow.pop %v2416
        %v2418 = vmul.f32 %v2378, 1.442695
        %v2419 = vpow.pop %v2418
        %v2420 = vmul.f32 %v2379, 1.442695
        %v2421 = vpow.pop %v2420
        %v2422 = vmul.f32 %v2380, 1.442695
        %v2423 = vpow.pop %v2422
        %v2424 = vmul.f32 %v2381, 1.442695
        %v2425 = vpow.pop %v2424
        %v2426 = vmul.f32 %v2382, 1.442695
        %v2427 = vpow.pop %v2426
        %v2428 = vmul.f32 %v2383, 1.442695
        %v2429 = vpow.pop %v2428
        %v2430 = vmul.f32 %v2384, 1.442695
        %v2431 = vpow.pop %v2430
        %v2432 = vmul.f32 %v2385, 1.442695
        %v2433 = vpow.pop %v2432
        %v2434 = vmul.f32 %v2386, 1.442695
        %v2435 = vpow.pop %v2434
        %v2436 = vmul.f32 %v2387, 1.442695
        %v2437 = vpow.pop %v2436
        %v2438 = vmul.f32 %v2388, 1.442695
        %v2439 = vpow.pop %v2438
        %v2440 = vmul.f32 %v2389, 1.442695
        %v2441 = vpow.pop %v2440
        %v2442 = vmul.f32 %v2390, 1.442695
        %v2443 = vpow.pop %v2442
        %v2444 = vmul.f32 %v2391, 1.442695
        %v2445 = vpow.pop %v2444
        %v2446 = vmul.f32 %v2392, 1.442695
        %v2447 = vpow.pop %v2446
        %v2448 = vmul.f32 %v2393, 1.442695
        %v2449 = vpow.pop %v2448
        %v2450 = vmul.f32 %v2394, 1.442695
        %v2451 = vpow.pop %v2450
        %v2452 = vmul.f32 %v2395, 1.442695
        %v2453 = vpow.pop %v2452
        %v2454 = vmul.f32 %v2396, 1.442695
        %v2455 = vpow.pop %v2454
        %v2456 = vmul.f32 %v2397, 1.442695
        %v2457 = vpow.pop %v2456
        %v2458 = vmul.f32 %v2398, 1.442695
        %v2459 = vpow.pop %v2458
        %v2460 = vmul.f32 %v2399, 1.442695
        %v2461 = vpow.pop %v2460
        %v2462 = vmul.f32 %v2400, 1.442695
        %v2463 = vpow.pop %v2462
        %v2464 = vmul.f32 %v2401, 1.442695
        %v2465 = vpow.pop %v2464
        %v2466 = vmul.f32 %v2306, %v2403
        %v2467 = vmul.f32 %v2307, %v2405
        %v2468 = vmul.f32 %v2308, %v2407
        %v2469 = vmul.f32 %v2309, %v2409
        %v2470 = vmul.f32 %v2310, %v2411
        %v2471 = vmul.f32 %v2311, %v2413
        %v2472 = vmul.f32 %v2312, %v2415
        %v2473 = vmul.f32 %v2313, %v2417
        %v2474 = vmul.f32 %v2314, %v2419
        %v2475 = vmul.f32 %v2315, %v2421
        %v2476 = vmul.f32 %v2316, %v2423
        %v2477 = vmul.f32 %v2317, %v2425
        %v2478 = vmul.f32 %v2318, %v2427
        %v2479 = vmul.f32 %v2319, %v2429
        %v2480 = vmul.f32 %v2320, %v2431
        %v2481 = vmul.f32 %v2321, %v2433
        %v2482 = vmul.f32 %v2322, %v2435
        %v2483 = vmul.f32 %v2323, %v2437
        %v2484 = vmul.f32 %v2324, %v2439
        %v2485 = vmul.f32 %v2325, %v2441
        %v2486 = vmul.f32 %v2326, %v2443
        %v2487 = vmul.f32 %v2327, %v2445
        %v2488 = vmul.f32 %v2328, %v2447
        %v2489 = vmul.f32 %v2329, %v2449
        %v2490 = vmul.f32 %v2330, %v2451
        %v2491 = vmul.f32 %v2331, %v2453
        %v2492 = vmul.f32 %v2332, %v2455
        %v2493 = vmul.f32 %v2333, %v2457
        %v2494 = vmul.f32 %v2334, %v2459
        %v2495 = vmul.f32 %v2335, %v2461
        %v2496 = vmul.f32 %v2336, %v2463
        %v2497 = vmul.f32 %v2337, %v2465
        %v2498 = vsub.f32 1.0, %v2466
        %v2499 = vsub.f32 1.0, %v2467
        %v2500 = vsub.f32 1.0, %v2468
        %v2501 = vsub.f32 1.0, %v2469
        %v2502 = vsub.f32 1.0, %v2470
        %v2503 = vsub.f32 1.0, %v2471
        %v2504 = vsub.f32 1.0, %v2472
        %v2505 = vsub.f32 1.0, %v2473
        %v2506 = vsub.f32 1.0, %v2474
        %v2507 = vsub.f32 1.0, %v2475
        %v2508 = vsub.f32 1.0, %v2476
        %v2509 = vsub.f32 1.0, %v2477
        %v2510 = vsub.f32 1.0, %v2478
        %v2511 = vsub.f32 1.0, %v2479
        %v2512 = vsub.f32 1.0, %v2480
        %v2513 = vsub.f32 1.0, %v2481
        %v2514 = vsub.f32 1.0, %v2482
        %v2515 = vsub.f32 1.0, %v2483
        %v2516 = vsub.f32 1.0, %v2484
        %v2517 = vsub.f32 1.0, %v2485
        %v2518 = vsub.f32 1.0, %v2486
        %v2519 = vsub.f32 1.0, %v2487
        %v2520 = vsub.f32 1.0, %v2488
        %v2521 = vsub.f32 1.0, %v2489
        %v2522 = vsub.f32 1.0, %v2490
        %v2523 = vsub.f32 1.0, %v2491
        %v2524 = vsub.f32 1.0, %v2492
        %v2525 = vsub.f32 1.0, %v2493
        %v2526 = vsub.f32 1.0, %v2494
        %v2527 = vsub.f32 1.0, %v2495
        %v2528 = vsub.f32 1.0, %v2496
        %v2529 = vsub.f32 1.0, %v2497
        %vm2530 = vcmp.ge.f32.partialorder %v1858, 0.0
        %vm2531 = vcmp.ge.f32.partialorder %v1859, 0.0
        %vm2532 = vcmp.ge.f32.partialorder %v1860, 0.0
        %vm2533 = vcmp.ge.f32.partialorder %v1861, 0.0
        %vm2534 = vcmp.ge.f32.partialorder %v1862, 0.0
        %vm2535 = vcmp.ge.f32.partialorder %v1863, 0.0
        %vm2536 = vcmp.ge.f32.partialorder %v1864, 0.0
        %vm2537 = vcmp.ge.f32.partialorder %v1865, 0.0
        %vm2538 = vcmp.ge.f32.partialorder %v1866, 0.0
        %vm2539 = vcmp.ge.f32.partialorder %v1867, 0.0
        %vm2540 = vcmp.ge.f32.partialorder %v1868, 0.0
        %vm2541 = vcmp.ge.f32.partialorder %v1869, 0.0
        %vm2542 = vcmp.ge.f32.partialorder %v1870, 0.0
        %vm2543 = vcmp.ge.f32.partialorder %v1871, 0.0
        %vm2544 = vcmp.ge.f32.partialorder %v1872, 0.0
        %vm2545 = vcmp.ge.f32.partialorder %v1873, 0.0
        %vm2546 = vcmp.ge.f32.partialorder %v1874, 0.0
        %vm2547 = vcmp.ge.f32.partialorder %v1875, 0.0
        %vm2548 = vcmp.ge.f32.partialorder %v1876, 0.0
        %vm2549 = vcmp.ge.f32.partialorder %v1877, 0.0
        %vm2550 = vcmp.ge.f32.partialorder %v1878, 0.0
        %vm2551 = vcmp.ge.f32.partialorder %v1879, 0.0
        %vm2552 = vcmp.ge.f32.partialorder %v1880, 0.0
        %vm2553 = vcmp.ge.f32.partialorder %v1881, 0.0
        %vm2554 = vcmp.ge.f32.partialorder %v1882, 0.0
        %vm2555 = vcmp.ge.f32.partialorder %v1883, 0.0
        %vm2556 = vcmp.ge.f32.partialorder %v1884, 0.0
        %vm2557 = vcmp.ge.f32.partialorder %v1885, 0.0
        %vm2558 = vcmp.ge.f32.partialorder %v1886, 0.0
        %vm2559 = vcmp.ge.f32.partialorder %v1887, 0.0
        %vm2560 = vcmp.ge.f32.partialorder %v1888, 0.0
        %vm2561 = vcmp.ge.f32.partialorder %v1889, 0.0
        %v2562 = vsub.f32 0.0, %v2498
        %v2563 = vsub.f32 0.0, %v2499
        %v2564 = vsub.f32 0.0, %v2500
        %v2565 = vsub.f32 0.0, %v2501
        %v2566 = vsub.f32 0.0, %v2502
        %v2567 = vsub.f32 0.0, %v2503
        %v2568 = vsub.f32 0.0, %v2504
        %v2569 = vsub.f32 0.0, %v2505
        %v2570 = vsub.f32 0.0, %v2506
        %v2571 = vsub.f32 0.0, %v2507
        %v2572 = vsub.f32 0.0, %v2508
        %v2573 = vsub.f32 0.0, %v2509
        %v2574 = vsub.f32 0.0, %v2510
        %v2575 = vsub.f32 0.0, %v2511
        %v2576 = vsub.f32 0.0, %v2512
        %v2577 = vsub.f32 0.0, %v2513
        %v2578 = vsub.f32 0.0, %v2514
        %v2579 = vsub.f32 0.0, %v2515
        %v2580 = vsub.f32 0.0, %v2516
        %v2581 = vsub.f32 0.0, %v2517
        %v2582 = vsub.f32 0.0, %v2518
        %v2583 = vsub.f32 0.0, %v2519
        %v2584 = vsub.f32 0.0, %v2520
        %v2585 = vsub.f32 0.0, %v2521
        %v2586 = vsub.f32 0.0, %v2522
        %v2587 = vsub.f32 0.0, %v2523
        %v2588 = vsub.f32 0.0, %v2524
        %v2589 = vsub.f32 0.0, %v2525
        %v2590 = vsub.f32 0.0, %v2526
        %v2591 = vsub.f32 0.0, %v2527
        %v2592 = vsub.f32 0.0, %v2528
        %v2593 = vsub.f32 0.0, %v2529
        %v2594 = vsel %vm2530, %v2498, %v2562
        %v2595 = vsel %vm2531, %v2499, %v2563
        %v2596 = vsel %vm2532, %v2500, %v2564
        %v2597 = vsel %vm2533, %v2501, %v2565
        %v2598 = vsel %vm2534, %v2502, %v2566
        %v2599 = vsel %vm2535, %v2503, %v2567
        %v2600 = vsel %vm2536, %v2504, %v2568
        %v2601 = vsel %vm2537, %v2505, %v2569
        %v2602 = vsel %vm2538, %v2506, %v2570
        %v2603 = vsel %vm2539, %v2507, %v2571
        %v2604 = vsel %vm2540, %v2508, %v2572
        %v2605 = vsel %vm2541, %v2509, %v2573
        %v2606 = vsel %vm2542, %v2510, %v2574
        %v2607 = vsel %vm2543, %v2511, %v2575
        %v2608 = vsel %vm2544, %v2512, %v2576
        %v2609 = vsel %vm2545, %v2513, %v2577
        %v2610 = vsel %vm2546, %v2514, %v2578
        %v2611 = vsel %vm2547, %v2515, %v2579
        %v2612 = vsel %vm2548, %v2516, %v2580
        %v2613 = vsel %vm2549, %v2517, %v2581
        %v2614 = vsel %vm2550, %v2518, %v2582
        %v2615 = vsel %vm2551, %v2519, %v2583
        %v2616 = vsel %vm2552, %v2520, %v2584
        %v2617 = vsel %vm2553, %v2521, %v2585
        %v2618 = vsel %vm2554, %v2522, %v2586
        %v2619 = vsel %vm2555, %v2523, %v2587
        %v2620 = vsel %vm2556, %v2524, %v2588
        %v2621 = vsel %vm2557, %v2525, %v2589
        %v2622 = vsel %vm2558, %v2526, %v2590
        %v2623 = vsel %vm2559, %v2527, %v2591
        %v2624 = vsel %vm2560, %v2528, %v2592
        %v2625 = vsel %vm2561, %v2529, %v2593
        %v2626 = vadd.f32 %v2594, 1.0
        %v2627 = vadd.f32 %v2595, 1.0
        %v2628 = vadd.f32 %v2596, 1.0
        %v2629 = vadd.f32 %v2597, 1.0
        %v2630 = vadd.f32 %v2598, 1.0
        %v2631 = vadd.f32 %v2599, 1.0
        %v2632 = vadd.f32 %v2600, 1.0
        %v2633 = vadd.f32 %v2601, 1.0
        %v2634 = vadd.f32 %v2602, 1.0
        %v2635 = vadd.f32 %v2603, 1.0
        %v2636 = vadd.f32 %v2604, 1.0
        %v2637 = vadd.f32 %v2605, 1.0
        %v2638 = vadd.f32 %v2606, 1.0
        %v2639 = vadd.f32 %v2607, 1.0
        %v2640 = vadd.f32 %v2608, 1.0
        %v2641 = vadd.f32 %v2609, 1.0
        %v2642 = vadd.f32 %v2610, 1.0
        %v2643 = vadd.f32 %v2611, 1.0
        %v2644 = vadd.f32 %v2612, 1.0
        %v2645 = vadd.f32 %v2613, 1.0
        %v2646 = vadd.f32 %v2614, 1.0
        %v2647 = vadd.f32 %v2615, 1.0
        %v2648 = vadd.f32 %v2616, 1.0
        %v2649 = vadd.f32 %v2617, 1.0
        %v2650 = vadd.f32 %v2618, 1.0
        %v2651 = vadd.f32 %v2619, 1.0
        %v2652 = vadd.f32 %v2620, 1.0
        %v2653 = vadd.f32 %v2621, 1.0
        %v2654 = vadd.f32 %v2622, 1.0
        %v2655 = vadd.f32 %v2623, 1.0
        %v2656 = vadd.f32 %v2624, 1.0
        %v2657 = vadd.f32 %v2625, 1.0
        %v2658 = vmul.f32 %v1826, %v2626
        %v2659 = vmul.f32 %v1827, %v2627
        %v2660 = vmul.f32 %v1828, %v2628
        %v2661 = vmul.f32 %v1829, %v2629
        %v2662 = vmul.f32 %v1830, %v2630
        %v2663 = vmul.f32 %v1831, %v2631
        %v2664 = vmul.f32 %v1832, %v2632
        %v2665 = vmul.f32 %v1833, %v2633
        %v2666 = vmul.f32 %v1834, %v2634
        %v2667 = vmul.f32 %v1835, %v2635
        %v2668 = vmul.f32 %v1836, %v2636
        %v2669 = vmul.f32 %v1837, %v2637
        %v2670 = vmul.f32 %v1838, %v2638
        %v2671 = vmul.f32 %v1839, %v2639
        %v2672 = vmul.f32 %v1840, %v2640
        %v2673 = vmul.f32 %v1841, %v2641
        %v2674 = vmul.f32 %v1842, %v2642
        %v2675 = vmul.f32 %v1843, %v2643
        %v2676 = vmul.f32 %v1844, %v2644
        %v2677 = vmul.f32 %v1845, %v2645
        %v2678 = vmul.f32 %v1846, %v2646
        %v2679 = vmul.f32 %v1847, %v2647
        %v2680 = vmul.f32 %v1848, %v2648
        %v2681 = vmul.f32 %v1849, %v2649
        %v2682 = vmul.f32 %v1850, %v2650
        %v2683 = vmul.f32 %v1851, %v2651
        %v2684 = vmul.f32 %v1852, %v2652
        %v2685 = vmul.f32 %v1853, %v2653
        %v2686 = vmul.f32 %v1854, %v2654
        %v2687 = vmul.f32 %v1855, %v2655
        %v2688 = vmul.f32 %v1856, %v2656
        %v2689 = vmul.f32 %v1857, %v2657
        %v2690 = vpack.c.bf16 %v2660, %v2658
        %v2691 = vpack.c.bf16 %v2661, %v2659
        %v2692 = vpack.c.bf16 %v2664, %v2662
        %v2693 = vpack.c.bf16 %v2665, %v2663
        %v2694 = vpack.c.bf16 %v2668, %v2666
        %v2695 = vpack.c.bf16 %v2669, %v2667
        %v2696 = vpack.c.bf16 %v2672, %v2670
        %v2697 = vpack.c.bf16 %v2673, %v2671
        %v2698 = vpack.c.bf16 %v2676, %v2674
        %v2699 = vpack.c.bf16 %v2677, %v2675
        %v2700 = vpack.c.bf16 %v2680, %v2678
        %v2701 = vpack.c.bf16 %v2681, %v2679
        %v2702 = vpack.c.bf16 %v2684, %v2682
        %v2703 = vpack.c.bf16 %v2685, %v2683
        %v2704 = vpack.c.bf16 %v2688, %v2686
        %v2705 = vpack.c.bf16 %v2689, %v2687
        %v2706 = vld [vmem:[#allocation8] sm:$0xf]
        %v2707 = vld [vmem:[#allocation8 + $0x4] sm:$0xf]
        %v2708 = vld [vmem:[#allocation8 + $0x8] sm:$0xf]
        %v2709 = vld [vmem:[#allocation8 + $0xc] sm:$0xf]
        %v2710 = vld [vmem:[#allocation8 + $0x10] sm:$0xf]
        %v2711 = vld [vmem:[#allocation8 + $0x14] sm:$0xf]
        %v2712 = vld [vmem:[#allocation8 + $0x18] sm:$0xf]
        %v2713 = vld [vmem:[#allocation8 + $0x1c] sm:$0xf]
        %v2714 = vld [vmem:[#allocation8 + $0x20] sm:$0xf]
        %v2715 = vld [vmem:[#allocation8 + $0x24] sm:$0xf]
        %v2716 = vld [vmem:[#allocation8 + $0x28] sm:$0xf]
        %v2717 = vld [vmem:[#allocation8 + $0x2c] sm:$0xf]
        %v2718 = vld [vmem:[#allocation8 + $0x30] sm:$0xf]
        %v2719 = vld [vmem:[#allocation8 + $0x34] sm:$0xf]
        %v2720 = vld [vmem:[#allocation8 + $0x38] sm:$0xf]
        %v2721 = vld [vmem:[#allocation8 + $0x3c] sm:$0xf]
        %v2722 = vld [vmem:[#allocation8 + $0x40] sm:$0xf]
        %v2723 = vld [vmem:[#allocation8 + $0x44] sm:$0xf]
        %v2724 = vld [vmem:[#allocation8 + $0x48] sm:$0xf]
        %v2725 = vld [vmem:[#allocation8 + $0x4c] sm:$0xf]
        %v2726 = vld [vmem:[#allocation8 + $0x50] sm:$0xf]
        %v2727 = vld [vmem:[#allocation8 + $0x54] sm:$0xf]
        %v2728 = vld [vmem:[#allocation8 + $0x58] sm:$0xf]
        %v2729 = vld [vmem:[#allocation8 + $0x5c] sm:$0xf]
        %v2730 = vld [vmem:[#allocation8 + $0x60] sm:$0xf]
        %v2731 = vld [vmem:[#allocation8 + $0x64] sm:$0xf]
        %v2732 = vld [vmem:[#allocation8 + $0x68] sm:$0xf]
        %v2733 = vld [vmem:[#allocation8 + $0x6c] sm:$0xf]
        %v2734 = vld [vmem:[#allocation8 + $0x70] sm:$0xf]
        %v2735 = vld [vmem:[#allocation8 + $0x74] sm:$0xf]
        %v2736 = vld [vmem:[#allocation8 + $0x78] sm:$0xf]
        %v2737 = vld [vmem:[#allocation8 + $0x7c] sm:$0xf]
        %v2738 = vld [vmem:[%s6] sm:$0x1]
        %v2740 = vlaneseq
        %v2741 = vshrl.u32 %v2740, 7
        %v2742 = vsub.s32 0, %v2741
        %v2743 = vrot.slane %v2738, %v2742
        %v2777 = vunpack.c.l.b16 %v2706
        %v2778 = vunpack.c.l.b16 %v2707
        %v2779 = vunpack.c.l.b16 %v2708
        %v2780 = vunpack.c.l.b16 %v2709
        %v2781 = vunpack.c.l.b16 %v2710
        %v2782 = vunpack.c.l.b16 %v2711
        %v2783 = vunpack.c.l.b16 %v2712
        %v2784 = vunpack.c.l.b16 %v2713
        %v2785 = vunpack.c.l.b16 %v2714
        %v2786 = vunpack.c.l.b16 %v2715
        %v2787 = vunpack.c.l.b16 %v2716
        %v2788 = vunpack.c.l.b16 %v2717
        %v2789 = vunpack.c.l.b16 %v2718
        %v2790 = vunpack.c.l.b16 %v2719
        %v2791 = vunpack.c.l.b16 %v2720
        %v2792 = vunpack.c.l.b16 %v2721
        %v2793 = vunpack.c.l.b16 %v2722
        %v2794 = vunpack.c.l.b16 %v2723
        %v2795 = vunpack.c.l.b16 %v2724
        %v2796 = vunpack.c.l.b16 %v2725
        %v2797 = vunpack.c.l.b16 %v2726
        %v2798 = vunpack.c.l.b16 %v2727
        %v2799 = vunpack.c.l.b16 %v2728
        %v2800 = vunpack.c.l.b16 %v2729
        %v2801 = vunpack.c.l.b16 %v2730
        %v2802 = vunpack.c.l.b16 %v2731
        %v2803 = vunpack.c.l.b16 %v2732
        %v2804 = vunpack.c.l.b16 %v2733
        %v2805 = vunpack.c.l.b16 %v2734
        %v2806 = vunpack.c.l.b16 %v2735
        %v2807 = vunpack.c.l.b16 %v2736
        %v2808 = vunpack.c.l.b16 %v2737
        %v2809 = vpack.c.b16 %v2778, %v2777
        %v2810 = vpack.c.b16 %v2780, %v2779
        %v2811 = vpack.c.b16 %v2782, %v2781
        %v2812 = vpack.c.b16 %v2784, %v2783
        %v2813 = vpack.c.b16 %v2786, %v2785
        %v2814 = vpack.c.b16 %v2788, %v2787
        %v2815 = vpack.c.b16 %v2790, %v2789
        %v2816 = vpack.c.b16 %v2792, %v2791
        %v2817 = vpack.c.b16 %v2794, %v2793
        %v2818 = vpack.c.b16 %v2796, %v2795
        %v2819 = vpack.c.b16 %v2798, %v2797
        %v2820 = vpack.c.b16 %v2800, %v2799
        %v2821 = vpack.c.b16 %v2802, %v2801
        %v2822 = vpack.c.b16 %v2804, %v2803
        %v2823 = vpack.c.b16 %v2806, %v2805
        %v2824 = vpack.c.b16 %v2808, %v2807
        %2841 = vmatprep.subr.bf16.mxu0 0
        %2842 = vmatpush1.bf16.msra.mxu0 %v2809
        %2843 = vmatprep.subr.bf16.mxu0 0
        %2844 = vmatpush1.bf16.msra.mxu0 %v2810
        %2845 = vmatprep.subr.bf16.mxu0 0
        %2846 = vmatpush1.bf16.msra.mxu0 %v2811
        %2847 = vmatprep.subr.bf16.mxu0 0
        %2848 = vmatpush1.bf16.msra.mxu0 %v2812
        %2849 = vmatprep.subr.bf16.mxu0 0
        %2850 = vmatpush1.bf16.msra.mxu0 %v2813
        %2851 = vmatprep.subr.bf16.mxu0 0
        %2852 = vmatpush1.bf16.msra.mxu0 %v2814
        %2853 = vmatprep.subr.bf16.mxu0 0
        %2854 = vmatpush1.bf16.msra.mxu0 %v2815
        %2855 = vmatprep.subr.bf16.mxu0 0
        %2856 = vmatpush1.bf16.msra.mxu0 %v2816
        %2857 = vmatprep.subr.bf16.mxu0 0
        %2858 = vmatpush1.bf16.msra.mxu0 %v2817
        %2859 = vmatprep.subr.bf16.mxu0 0
        %2860 = vmatpush1.bf16.msra.mxu0 %v2818
        %2861 = vmatprep.subr.bf16.mxu0 0
        %2862 = vmatpush1.bf16.msra.mxu0 %v2819
        %2863 = vmatprep.subr.bf16.mxu0 0
        %2864 = vmatpush1.bf16.msra.mxu0 %v2820
        %2865 = vmatprep.subr.bf16.mxu0 0
        %2866 = vmatpush1.bf16.msra.mxu0 %v2821
        %2867 = vmatprep.subr.bf16.mxu0 0
        %2868 = vmatpush1.bf16.msra.mxu0 %v2822
        %2869 = vmatprep.subr.bf16.mxu0 0
        %2870 = vmatpush1.bf16.msra.mxu0 %v2823
        %2871 = vmatprep.subr.bf16.mxu0 0
        %2872 = vmatpush1.bf16.msra.mxu0 %v2824
        %2873 = vmatprep.mubr.bf16.mxu0 %v2691
        %2874 = vmatmul.mubr.bf16.gmra.mrb[0].mxu0 %v2690
        %v2875 = vpop.f32.mrb[0].mxu0
        %v2876 = vadd.f32 %v2743, %v2875
        %v2877 = vpop.f32.mrb[0].mxu0
        %v2878 = vpop.f32.mrb[0].mxu0
        %v2879 = vadd.f32 %v2743, %v2878
        %v2880 = vpop.f32.mrb[0].mxu0
        %2881 = vmatprep.mubr.bf16.mxu0 %v2693
        %2882 = vmatmul.mubr.bf16.gmra.mrb[0].mxu0 %v2692
        %v2883 = vpop.f32.mrb[0].mxu0
        %v2884 = vadd.f32 %v2743, %v2883
        %v2885 = vpop.f32.mrb[0].mxu0
        %v2886 = vpop.f32.mrb[0].mxu0
        %v2887 = vadd.f32 %v2743, %v2886
        %v2888 = vpop.f32.mrb[0].mxu0
        %2889 = vmatprep.mubr.bf16.mxu0 %v2695
        %2890 = vmatmul.mubr.bf16.gmra.mrb[0].mxu0 %v2694
        %v2891 = vpop.f32.mrb[0].mxu0
        %v2892 = vadd.f32 %v2743, %v2891
        %v2893 = vpop.f32.mrb[0].mxu0
        %v2894 = vpop.f32.mrb[0].mxu0
        %v2895 = vadd.f32 %v2743, %v2894
        %v2896 = vpop.f32.mrb[0].mxu0
        %2897 = vmatprep.mubr.bf16.mxu0 %v2697
        %2898 = vmatmul.mubr.bf16.gmra.mrb[0].mxu0 %v2696
        %v2899 = vpop.f32.mrb[0].mxu0
        %v2900 = vadd.f32 %v2743, %v2899
        %v2901 = vpop.f32.mrb[0].mxu0
        %v2902 = vpop.f32.mrb[0].mxu0
        %v2903 = vadd.f32 %v2743, %v2902
        %v2904 = vpop.f32.mrb[0].mxu0
        %2905 = vmatprep.mubr.bf16.mxu0 %v2699
        %2906 = vmatmul.mubr.bf16.gmra.mrb[0].mxu0 %v2698
        %v2907 = vpop.f32.mrb[0].mxu0
        %v2908 = vadd.f32 %v2743, %v2907
        %v2909 = vpop.f32.mrb[0].mxu0
        %v2910 = vpop.f32.mrb[0].mxu0
        %v2911 = vadd.f32 %v2743, %v2910
        %v2912 = vpop.f32.mrb[0].mxu0
        %2913 = vmatprep.mubr.bf16.mxu0 %v2701
        %2914 = vmatmul.mubr.bf16.gmra.mrb[0].mxu0 %v2700
        %v2915 = vpop.f32.mrb[0].mxu0
        %v2916 = vadd.f32 %v2743, %v2915
        %v2917 = vpop.f32.mrb[0].mxu0
        %v2918 = vpop.f32.mrb[0].mxu0
        %v2919 = vadd.f32 %v2743, %v2918
        %v2920 = vpop.f32.mrb[0].mxu0
        %2921 = vmatprep.mubr.bf16.mxu0 %v2703
        %2922 = vmatmul.mubr.bf16.gmra.mrb[0].mxu0 %v2702
        %v2923 = vpop.f32.mrb[0].mxu0
        %v2924 = vadd.f32 %v2743, %v2923
        %v2925 = vpop.f32.mrb[0].mxu0
        %v2926 = vpop.f32.mrb[0].mxu0
        %v2927 = vadd.f32 %v2743, %v2926
        %v2928 = vpop.f32.mrb[0].mxu0
        %2929 = vmatprep.mubr.bf16.mxu0 %v2705
        %2930 = vmatmul.mubr.bf16.gmra.mrb[0].mxu0 %v2704
        %v2931 = vpop.f32.mrb[0].mxu0
        %v2932 = vadd.f32 %v2743, %v2931
        %v2933 = vpop.f32.mrb[0].mxu0
        %v2934 = vpop.f32.mrb[0].mxu0
        %v2935 = vadd.f32 %v2743, %v2934
        %v2936 = vpop.f32.mrb[0].mxu0
        %2937 = vdwg.mxu0
        %v2938 = vmul.f32 %v2876, %v2876
        %v2939 = vmul.f32 %v2879, %v2879
        %v2940 = vmul.f32 %v2884, %v2884
        %v2941 = vmul.f32 %v2887, %v2887
        %v2942 = vmul.f32 %v2892, %v2892
        %v2943 = vmul.f32 %v2895, %v2895
        %v2944 = vmul.f32 %v2900, %v2900
        %v2945 = vmul.f32 %v2903, %v2903
        %v2946 = vmul.f32 %v2908, %v2908
        %v2947 = vmul.f32 %v2911, %v2911
        %v2948 = vmul.f32 %v2916, %v2916
        %v2949 = vmul.f32 %v2919, %v2919
        %v2950 = vmul.f32 %v2924, %v2924
        %v2951 = vmul.f32 %v2927, %v2927
        %v2952 = vmul.f32 %v2932, %v2932
        %v2953 = vmul.f32 %v2935, %v2935
        %2954 = vadd.xlane.f32.xlu0 %v2938
        %v2955 = vpop.xlane.xlu0 %2954
        %2956 = vadd.xlane.f32.xlu0 %v2939
        %v2957 = vpop.xlane.xlu0 %2956
        %2958 = vadd.xlane.f32.xlu0 %v2940
        %v2959 = vpop.xlane.xlu0 %2958
        %2960 = vadd.xlane.f32.xlu0 %v2941
        %v2961 = vpop.xlane.xlu0 %2960
        %2962 = vadd.xlane.f32.xlu0 %v2942
        %v2963 = vpop.xlane.xlu0 %2962
        %2964 = vadd.xlane.f32.xlu0 %v2943
        %v2965 = vpop.xlane.xlu0 %2964
        %2966 = vadd.xlane.f32.xlu0 %v2944
        %v2967 = vpop.xlane.xlu0 %2966
        %2968 = vadd.xlane.f32.xlu0 %v2945
        %v2969 = vpop.xlane.xlu0 %2968
        %2970 = vadd.xlane.f32.xlu0 %v2946
        %v2971 = vpop.xlane.xlu0 %2970
        %2972 = vadd.xlane.f32.xlu0 %v2947
        %v2973 = vpop.xlane.xlu0 %2972
        %2974 = vadd.xlane.f32.xlu0 %v2948
        %v2975 = vpop.xlane.xlu0 %2974
        %2976 = vadd.xlane.f32.xlu0 %v2949
        %v2977 = vpop.xlane.xlu0 %2976
        %2978 = vadd.xlane.f32.xlu0 %v2950
        %v2979 = vpop.xlane.xlu0 %2978
        %2980 = vadd.xlane.f32.xlu0 %v2951
        %v2981 = vpop.xlane.xlu0 %2980
        %2982 = vadd.xlane.f32.xlu0 %v2952
        %v2983 = vpop.xlane.xlu0 %2982
        %2984 = vadd.xlane.f32.xlu0 %v2953
        %v2985 = vpop.xlane.xlu0 %2984
        %v2986 = vmax.f32 %v2955, 1e-24
        %v2987 = vmax.f32 %v2957, 1e-24
        %v2988 = vmax.f32 %v2959, 1e-24
        %v2989 = vmax.f32 %v2961, 1e-24
        %v2990 = vmax.f32 %v2963, 1e-24
        %v2991 = vmax.f32 %v2965, 1e-24
        %v2992 = vmax.f32 %v2967, 1e-24
        %v2993 = vmax.f32 %v2969, 1e-24
        %v2994 = vmax.f32 %v2971, 1e-24
        %v2995 = vmax.f32 %v2973, 1e-24
        %v2996 = vmax.f32 %v2975, 1e-24
        %v2997 = vmax.f32 %v2977, 1e-24
        %v2998 = vmax.f32 %v2979, 1e-24
        %v2999 = vmax.f32 %v2981, 1e-24
        %v3000 = vmax.f32 %v2983, 1e-24
        %v3001 = vmax.f32 %v2985, 1e-24
        %v3002 = vrsqrt.pop %v2986
        %v3003 = vrsqrt.pop %v2987
        %v3004 = vrsqrt.pop %v2988
        %v3005 = vrsqrt.pop %v2989
        %v3006 = vrsqrt.pop %v2990
        %v3007 = vrsqrt.pop %v2991
        %v3008 = vrsqrt.pop %v2992
        %v3009 = vrsqrt.pop %v2993
        %v3010 = vrsqrt.pop %v2994
        %v3011 = vrsqrt.pop %v2995
        %v3012 = vrsqrt.pop %v2996
        %v3013 = vrsqrt.pop %v2997
        %v3014 = vrsqrt.pop %v2998
        %v3015 = vrsqrt.pop %v2999
        %v3016 = vrsqrt.pop %v3000
        %v3017 = vrsqrt.pop %v3001
        %v3018 = vmul.f32 %v2876, %v3002
        %v3019 = vmul.f32 %v2879, %v3003
        %v3020 = vmul.f32 %v2884, %v3004
        %v3021 = vmul.f32 %v2887, %v3005
        %v3022 = vmul.f32 %v2892, %v3006
        %v3023 = vmul.f32 %v2895, %v3007
        %v3024 = vmul.f32 %v2900, %v3008
        %v3025 = vmul.f32 %v2903, %v3009
        %v3026 = vmul.f32 %v2908, %v3010
        %v3027 = vmul.f32 %v2911, %v3011
        %v3028 = vmul.f32 %v2916, %v3012
        %v3029 = vmul.f32 %v2919, %v3013
        %v3030 = vmul.f32 %v2924, %v3014
        %v3031 = vmul.f32 %v2927, %v3015
        %v3032 = vmul.f32 %v2932, %v3016
        %v3033 = vmul.f32 %v2935, %v3017
        %v3034 = vpack.c.bf16 %v3019, %v3018
        %v3035 = vpack.c.bf16 %v3021, %v3020
        %v3036 = vpack.c.bf16 %v3023, %v3022
        %v3037 = vpack.c.bf16 %v3025, %v3024
        %v3038 = vpack.c.bf16 %v3027, %v3026
        %v3039 = vpack.c.bf16 %v3029, %v3028
        %v3040 = vpack.c.bf16 %v3031, %v3030
        %v3041 = vpack.c.bf16 %v3033, %v3032
        %v3050 = vunpack.c.l.b16 %v3034
        %v3051 = vunpack.c.h.b16 %v3034
        %v3052 = vunpack.c.l.b16 %v3035
        %v3053 = vunpack.c.h.b16 %v3035
        %v3054 = vunpack.c.l.b16 %v3036
        %v3055 = vunpack.c.h.b16 %v3036
        %v3056 = vunpack.c.l.b16 %v3037
        %v3057 = vunpack.c.h.b16 %v3037
        %v3058 = vunpack.c.l.b16 %v3038
        %v3059 = vunpack.c.h.b16 %v3038
        %v3060 = vunpack.c.l.b16 %v3039
        %v3061 = vunpack.c.h.b16 %v3039
        %v3062 = vunpack.c.l.b16 %v3040
        %v3063 = vunpack.c.h.b16 %v3040
        %v3064 = vunpack.c.l.b16 %v3041
        %v3065 = vunpack.c.h.b16 %v3041
        %v3066 = vpack.c.b16 %v3050, %v3050
        %v3067 = vpack.c.b16 %v3051, %v3051
        %v3068 = vpack.c.b16 %v3052, %v3052
        %v3069 = vpack.c.b16 %v3053, %v3053
        %v3070 = vpack.c.b16 %v3054, %v3054
        %v3071 = vpack.c.b16 %v3055, %v3055
        %v3072 = vpack.c.b16 %v3056, %v3056
        %v3073 = vpack.c.b16 %v3057, %v3057
        %v3074 = vpack.c.b16 %v3058, %v3058
        %v3075 = vpack.c.b16 %v3059, %v3059
        %v3076 = vpack.c.b16 %v3060, %v3060
        %v3077 = vpack.c.b16 %v3061, %v3061
        %v3078 = vpack.c.b16 %v3062, %v3062
        %v3079 = vpack.c.b16 %v3063, %v3063
        %v3080 = vpack.c.b16 %v3064, %v3064
        %v3081 = vpack.c.b16 %v3065, %v3065
        %3098 = vst [vmem:[%s340] sm:$0xf] %v3066
        %3099 = vst [vmem:[%s340 + $0x4] sm:$0xf] %v3067
        %3100 = vst [vmem:[%s340 + $0x8] sm:$0xf] %v3068
        %3101 = vst [vmem:[%s340 + $0xc] sm:$0xf] %v3069
        %3102 = vst [vmem:[%s340 + $0x10] sm:$0xf] %v3070
        %3103 = vst [vmem:[%s340 + $0x14] sm:$0xf] %v3071
        %3104 = vst [vmem:[%s340 + $0x18] sm:$0xf] %v3072
        %3105 = vst [vmem:[%s340 + $0x1c] sm:$0xf] %v3073
        %3106 = vst [vmem:[%s340 + $0x20] sm:$0xf] %v3074
        %3107 = vst [vmem:[%s340 + $0x24] sm:$0xf] %v3075
        %3108 = vst [vmem:[%s340 + $0x28] sm:$0xf] %v3076
        %3109 = vst [vmem:[%s340 + $0x2c] sm:$0xf] %v3077
        %3110 = vst [vmem:[%s340 + $0x30] sm:$0xf] %v3078
        %3111 = vst [vmem:[%s340 + $0x34] sm:$0xf] %v3079
        %3112 = vst [vmem:[%s340 + $0x38] sm:$0xf] %v3080
        %3113 = vst [vmem:[%s340 + $0x3c] sm:$0xf] %v3081
        %s3114 = sand.u32 %s186, 1
        %s3115 = scalar_lea.sflag [#allocation4], %s3114
        %s3116 = sand.u32 %s186, 1
        %s3117 = smul.addr %s3116, 64
        %s3118 = scalar_lea.vmem [#allocation10], %s3117
        // Predicated region
        $region65: #{tpu_custom_call.1} parent=47 // pred_check
          %p3119 = pneg %p196
        $region66: #{tpu_custom_call.1} parent=47 // pred_check_branch
          %3121 = sbr.rel (%p3119) target = $region68
        $region67: #{tpu_custom_call.1} parent=47 // pred_region
          %s3122 = smul.u32 16, %s26
          %s3124 = ssub.s32 1024, 1024
          %3125 = vsyncadd %s3115, %s3124
          %s3126 = smul.addr %s3122, 64
          %s3127 = scalar_lea.hbm %s7, %s3126
          %s3128 = sshll.u32 %s3118, 4
          %s3129 = int_to_ptr.vmem [resolvable:$true] %s3128
          %3134 = dma.vmem_to_hbm [thread:$0]  %s3129, 1024, %s3127, %s3115, 64, 64, 4
        $region68: #{tpu_custom_call.1} parent=47 // pred_fallthru
          _
      $region48: #{tpu_custom_call.1} parent=5 // pred_fallthru
        _
      %p3135 = scmp.le.s32.totalorder 2, %s21
      // Predicated region
      $region69: #{tpu_custom_call.1} parent=5 // pred_check
        %p3136 = pneg %p3135
      $region70: #{tpu_custom_call.1} parent=5 // pred_check_branch
        %3138 = sbr.rel (%p3136) target = $region72
      $region71: #{tpu_custom_call.1} parent=5 // pred_region
        %s3139 = ssub.s32 %s21, 2
        // Predicated region
        $region73: #{tpu_custom_call.1} parent=71 // pred_check
          %p3140 = pneg %p202
        $region74: #{tpu_custom_call.1} parent=71 // pred_check_branch
          %3142 = sbr.rel (%p3140) target = $region76
        $region75: #{tpu_custom_call.1} parent=71 // pred_region
          %s3143 = sand.u32 %s187, 1
          %s3144 = scalar_lea.sflag [#allocation4], %s3143
          %s3145 = sand.u32 %s187, 1
          %s3146 = smul.addr %s3145, 64
          %s3147 = scalar_lea.vmem [#allocation10], %s3146
          %3148 = dma.done %s3144, 1024
        $region76: #{tpu_custom_call.1} parent=71 // pred_fallthru
          _
      $region72: #{tpu_custom_call.1} parent=5 // pred_fallthru
        _
    $region6: #{tpu_custom_call.1} parent=1 // loop_footer
      %s25 = sadd.s32 1, %s21
    $region7: #{tpu_custom_call.1} parent=1 // loop_footer_branch
      %20 = sbr.rel target = $region3
    $region8: #{tpu_custom_call.1} parent=1 // loop_exit
      _
    %3149 = vsyncpa [#allocation3], 1
    %s3150 = scalar_lea.sflag [#allocation3], 1
    %3151 = vsyncpa %s3150, 1
    %3152 = vsyncpa [#allocation6], 1
    %3153 = vsyncpa [#allocation9], 1
    %3154 = vsyncpa [#allocation4], 1
    %s3155 = scalar_lea.sflag [#allocation4], 1
    %3156 = vsyncpa %s3155, 1

// kernel: tpu_custom_call.1
$region0: #{tpu_custom_call.1}
  #allocation0 [shape = 'u32[]', space=smem, size = 0x4, offset = 0x4, fixed_abs, tag = 'smem constant byte address 0x4 - core index']
  #allocation1 [shape = 'u32[144,128]{1,0:T(1,128)}', space=vmem, size = 0x12000, scoped, tag = 'internal scratch']
  %s0 = inlined_call_operand.hbm [shape: bf16[256,128], index: 0, kind: input, shape index: {}]
  %s1 = inlined_call_operand.hbm [shape: bf16[128,256], index: 1, kind: input, shape index: {}]
  %s2 = inlined_call_operand.vmem [shape: f32[1,256], index: 2, kind: input, shape index: {}]
  %s3 = inlined_call_operand.hbm [shape: bf16[256,256], index: 3, kind: input, shape index: {}]
  %s4 = inlined_call_operand.vmem [shape: f32[1,256], index: 4, kind: input, shape index: {}]
  %s5 = inlined_call_operand.hbm [shape: bf16[256,128], index: 5, kind: input, shape index: {}]
  %s6 = inlined_call_operand.vmem [shape: f32[1,128], index: 6, kind: input, shape index: {}]
  %s7 = inlined_call_operand.hbm [shape: bf16[256,128], index: 7, kind: output, shape index: {}]
  %s8 = sld [smem:[#allocation0]]
  $region77: #{tpu_custom_call.1} parent=0
    _
  %s10 = ssub.s32 1, %s8
  %s11 = scalar_select 0, %s10, %s8
  $region1: #{tpu_custom_call.1} parent=0
    #allocation2 [shape = 'u8[65536]{0}', space=vmem, size = 0x10000, scoped, tag = 'input window, operand 0']
    #allocation3 [shape = 's32[2]{0}', space=sflag, size = 0x8, scoped, tag = 'scoped memory for tpu_custom_call.1']
    #allocation4 [shape = 's32[2]{0}', space=sflag, size = 0x8, scoped, tag = 'scoped memory for tpu_custom_call.1']
    #allocation5 [shape = 'u8[65536]{0}', space=vmem, size = 0x10000, scoped, tag = 'input window, operand 1, single buffered']
    #allocation6 [shape = 's32[1]{0}', space=sflag, size = 0x4, scoped, tag = 'scoped memory for tpu_custom_call.1']
    #allocation7 [shape = 'u8[131072]{0}', space=vmem, size = 0x20000, scoped, tag = 'input window, operand 3, single buffered']
    #allocation8 [shape = 'u8[65536]{0}', space=vmem, size = 0x10000, scoped, tag = 'input window, operand 5, single buffered']
    #allocation9 [shape = 's32[1]{0}', space=sflag, size = 0x4, scoped, tag = 'scoped memory for tpu_custom_call.1']
    #allocation10 [shape = 'u8[65536]{0}', space=vmem, size = 0x10000, scoped, tag = 'output window, operand 0']
    %12 = vsyncpa [#allocation3], 0
    %s13 = scalar_lea.sflag [#allocation3], 1
    %14 = vsyncpa %s13, 0
    %15 = vsyncpa [#allocation6], 0
    %16 = vsyncpa [#allocation9], 0
    %17 = vsyncpa [#allocation4], 0
    %s18 = scalar_lea.sflag [#allocation4], 1
    %19 = vsyncpa %s18, 0
    loop: start=0, step=1, limit=4
    $region2: #{tpu_custom_call.1} parent=1 // loop_pre_header
      _
    $region3: #{tpu_custom_call.1} parent=1 // loop_header
      %s21 = sphi 0, %s25
      %p22 = scmp.ge.s32.totalorder %s21, 4
      %s31 = sphi 0, %s33
      %s34 = sphi 0, %s31
      %s35 = sphi 0, %s34
      %s51 = sphi 0, %s35
      %s55 = sphi 0, %s55
      %s57 = sphi 0, %s55
      %s58 = sphi 0, %s57
      %s72 = sphi 0, %s58
      %s76 = sphi 0, %s76
      %s78 = sphi 0, %s76
      %s79 = sphi 0, %s78
      %s93 = sphi 0, %s79
      %s97 = sphi 0, %s97
      %s99 = sphi 0, %s97
      %s100 = sphi 0, %s99
      %s114 = sphi 0, %s100
      %s118 = sphi 0, %s118
      %s120 = sphi 0, %s118
      %s121 = sphi 0, %s120
      %s135 = sphi 0, %s121
      %s139 = sphi 0, %s139
      %s141 = sphi 0, %s139
      %s142 = sphi 0, %s141
      %s156 = sphi 0, %s142
      %s160 = sphi 0, %s160
      %s162 = sphi 0, %s160
      %s163 = sphi 0, %s162
      %s177 = sphi 0, %s163
      %s183 = sphi 0, %s185
      %s186 = sphi 0, %s183
      %s187 = sphi 0, %s186
      %s203 = sphi 0, %s187
    $region4: #{tpu_custom_call.1} parent=1 // loop_header_branch
      %24 = sbr.rel (%p22) target = $region8
    $region5: #{tpu_custom_call.1} parent=1 // loop_body
      %s26 = ssub.s32 %s21, 1
      %s27 = ssub.s32 %s21, 2
      %s28 = sadd.s32 %s21, 1
      %s29 = ssub.s32 %s21, %s28
      %p30 = scmp.eq.s32.totalorder %s29, 0
      %s32 = sadd.s32 %s31, 1
      %s33 = scalar_select %p30, %s31, %s32
      %p36 = pneg %p30
      %p37 = scmp.eq.s32.totalorder %s21, 1
      %p38 = por %p36, %p37
      %p39 = scmp.ne.s32.totalorder %s31, %s34
      %p40 = scmp.eq.s32.totalorder %s21, 0
      %p41 = por %p39, %p40
      %p42 = scmp.ne.s32.totalorder %s31, %s34
      %p43 = scmp.eq.s32.totalorder %s26, 1
      %p44 = por %p42, %p43
      %p45 = scmp.ne.s32.totalorder %s34, %s35
      %p46 = scmp.eq.s32.totalorder %s26, 0
      %p47 = por %p45, %p46
      %p48 = scmp.ne.s32.totalorder %s34, %s35
      %p49 = scmp.eq.s32.totalorder %s27, 1
      %p50 = por %p48, %p49
      %p52 = scmp.ne.s32.totalorder %s35, %s51
      %p53 = scmp.eq.s32.totalorder %s27, 0
      %p54 = por %p52, %p53
      %s56 = sadd.s32 %s55, 1
      %p59 = scmp.eq.s32.totalorder %s21, 1
      %p60 = scmp.ne.s32.totalorder %s55, %s57
      %p61 = scmp.eq.s32.totalorder %s21, 0
      %p62 = por %p60, %p61
      %p63 = scmp.ne.s32.totalorder %s55, %s57
      %p64 = scmp.eq.s32.totalorder %s26, 1
      %p65 = por %p63, %p64
      %p66 = scmp.ne.s32.totalorder %s57, %s58
      %p67 = scmp.eq.s32.totalorder %s26, 0
      %p68 = por %p66, %p67
      %p69 = scmp.ne.s32.totalorder %s57, %s58
      %p70 = scmp.eq.s32.totalorder %s27, 1
      %p71 = por %p69, %p70
      %p73 = scmp.ne.s32.totalorder %s58, %s72
      %p74 = scmp.eq.s32.totalorder %s27, 0
      %p75 = por %p73, %p74
      %s77 = sadd.s32 %s76, 1
      %p80 = scmp.eq.s32.totalorder %s21, 1
      %p81 = scmp.ne.s32.totalorder %s76, %s78
      %p82 = scmp.eq.s32.totalorder %s21, 0
      %p83 = por %p81, %p82
      %p84 = scmp.ne.s32.totalorder %s76, %s78
      %p85 = scmp.eq.s32.totalorder %s26, 1
      %p86 = por %p84, %p85
      %p87 = scmp.ne.s32.totalorder %s78, %s79
      %p88 = scmp.eq.s32.totalorder %s26, 0
      %p89 = por %p87, %p88
      %p90 = scmp.ne.s32.totalorder %s78, %s79
      %p91 = scmp.eq.s32.totalorder %s27, 1
      %p92 = por %p90, %p91
      %p94 = scmp.ne.s32.totalorder %s79, %s93
      %p95 = scmp.eq.s32.totalorder %s27, 0
      %p96 = por %p94, %p95
      %s98 = sadd.s32 %s97, 1
      %p101 = scmp.eq.s32.totalorder %s21, 1
      %p102 = scmp.ne.s32.totalorder %s97, %s99
      %p103 = scmp.eq.s32.totalorder %s21, 0
      %p104 = por %p102, %p103
      %p105 = scmp.ne.s32.totalorder %s97, %s99
      %p106 = scmp.eq.s32.totalorder %s26, 1
      %p107 = por %p105, %p106
      %p108 = scmp.ne.s32.totalorder %s99, %s100
      %p109 = scmp.eq.s32.totalorder %s26, 0
      %p110 = por %p108, %p109
      %p111 = scmp.ne.s32.totalorder %s99, %s100
      %p112 = scmp.eq.s32.totalorder %s27, 1
      %p113 = por %p111, %p112
      %p115 = scmp.ne.s32.totalorder %s100, %s114
      %p116 = scmp.eq.s32.totalorder %s27, 0
      %p117 = por %p115, %p116
      %s119 = sadd.s32 %s118, 1
      %p122 = scmp.eq.s32.totalorder %s21, 1
      %p123 = scmp.ne.s32.totalorder %s118, %s120
      %p124 = scmp.eq.s32.totalorder %s21, 0
      %p125 = por %p123, %p124
      %p126 = scmp.ne.s32.totalorder %s118, %s120
      %p127 = scmp.eq.s32.totalorder %s26, 1
      %p128 = por %p126, %p127
      %p129 = scmp.ne.s32.totalorder %s120, %s121
      %p130 = scmp.eq.s32.totalorder %s26, 0
      %p131 = por %p129, %p130
      %p132 = scmp.ne.s32.totalorder %s120, %s121
      %p133 = scmp.eq.s32.totalorder %s27, 1
      %p134 = por %p132, %p133
      %p136 = scmp.ne.s32.totalorder %s121, %s135
      %p137 = scmp.eq.s32.totalorder %s27, 0
      %p138 = por %p136, %p137
      %s140 = sadd.s32 %s139, 1
      %p143 = scmp.eq.s32.totalorder %s21, 1
      %p144 = scmp.ne.s32.totalorder %s139, %s141
      %p145 = scmp.eq.s32.totalorder %s21, 0
      %p146 = por %p144, %p145
      %p147 = scmp.ne.s32.totalorder %s139, %s141
      %p148 = scmp.eq.s32.totalorder %s26, 1
      %p149 = por %p147, %p148
      %p150 = scmp.ne.s32.totalorder %s141, %s142
      %p151 = scmp.eq.s32.totalorder %s26, 0
      %p152 = por %p150, %p151
      %p153 = scmp.ne.s32.totalorder %s141, %s142
      %p154 = scmp.eq.s32.totalorder %s27, 1
      %p155 = por %p153, %p154
      %p157 = scmp.ne.s32.totalorder %s142, %s156
      %p158 = scmp.eq.s32.totalorder %s27, 0
      %p159 = por %p157, %p158
      %s161 = sadd.s32 %s160, 1
      %p164 = scmp.eq.s32.totalorder %s21, 1
      %p165 = scmp.ne.s32.totalorder %s160, %s162
      %p166 = scmp.eq.s32.totalorder %s21, 0
      %p167 = por %p165, %p166
      %p168 = scmp.ne.s32.totalorder %s160, %s162
      %p169 = scmp.eq.s32.totalorder %s26, 1
      %p170 = por %p168, %p169
      %p171 = scmp.ne.s32.totalorder %s162, %s163
      %p172 = scmp.eq.s32.totalorder %s26, 0
      %p173 = por %p171, %p172
      %p174 = scmp.ne.s32.totalorder %s162, %s163
      %p175 = scmp.eq.s32.totalorder %s27, 1
      %p176 = por %p174, %p175
      %p178 = scmp.ne.s32.totalorder %s163, %s177
      %p179 = scmp.eq.s32.totalorder %s27, 0
      %p180 = por %p178, %p179
      %s181 = ssub.s32 %s21, %s28
      %p182 = scmp.eq.s32.totalorder %s181, 0
      %s184 = sadd.s32 %s183, 1
      %s185 = scalar_select %p182, %s183, %s184
      %p188 = pneg %p182
      %p189 = scmp.eq.s32.totalorder %s21, 1
      %p190 = por %p188, %p189
      %p191 = scmp.ne.s32.totalorder %s183, %s186
      %p192 = scmp.eq.s32.totalorder %s21, 0
      %p193 = por %p191, %p192
      %p194 = scmp.ne.s32.totalorder %s183, %s186
      %p195 = scmp.eq.s32.totalorder %s26, 1
      %p196 = por %p194, %p195
      %p197 = scmp.ne.s32.totalorder %s186, %s187
      %p198 = scmp.eq.s32.totalorder %s26, 0
      %p199 = por %p197, %p198
      %p200 = scmp.ne.s32.totalorder %s186, %s187
      %p201 = scmp.eq.s32.totalorder %s27, 1
      %p202 = por %p200, %p201
      %p204 = scmp.ne.s32.totalorder %s187, %s203
      %p205 = scmp.eq.s32.totalorder %s27, 0
      %p206 = por %p204, %p205
      %p207 = scmp.le.s32.totalorder 1, %s21
      %p208 = scmp.lt.s32.totalorder %s21, 3
      %p209 = pnand %p207, %p208
      %p210 = pneg %p209
      // Predicated region
      $region9: #{tpu_custom_call.1} parent=5 // pred_check
        _
      $region10: #{tpu_custom_call.1} parent=5 // pred_check_branch
        %212 = sbr.rel (%p209) target = $region12
      $region11: #{tpu_custom_call.1} parent=5 // pred_region
        %s213 = ssub.s32 %s21, 1
        // Predicated region
        $region13: #{tpu_custom_call.1} parent=11 // pred_check
          %p214 = pneg %p68
        $region14: #{tpu_custom_call.1} parent=11 // pred_check_branch
          %216 = sbr.rel (%p214) target = $region16
        $region15: #{tpu_custom_call.1} parent=11 // pred_region
          %s218 = ssub.s32 2048, 2048
          %219 = vsyncadd [#allocation6], %s218
          %s220 = sshll.u32 [#allocation5], 4
          %s221 = int_to_ptr.vmem [resolvable:$true] %s220
          %226 = dma.hbm_to_vmem [thread:$0]  %s1, 2048, %s221, [#allocation6], 128, 128, 8
        $region16: #{tpu_custom_call.1} parent=11 // pred_fallthru
          _
        // Predicated region
        $region17: #{tpu_custom_call.1} parent=11 // pred_check
          %p227 = pneg %p89
        $region18: #{tpu_custom_call.1} parent=11 // pred_check_branch
          %229 = sbr.rel (%p227) target = $region20
        $region19: #{tpu_custom_call.1} parent=11 // pred_region
          _
        $region20: #{tpu_custom_call.1} parent=11 // pred_fallthru
          _
        // Predicated region
        $region21: #{tpu_custom_call.1} parent=11 // pred_check
          %p230 = pneg %p110
        $region22: #{tpu_custom_call.1} parent=11 // pred_check_branch
          %232 = sbr.rel (%p230) target = $region24
        $region23: #{tpu_custom_call.1} parent=11 // pred_region
          %s234 = ssub.s32 4096, 4096
          %235 = vsyncadd [#allocation6], %s234
          %s236 = sshll.u32 [#allocation7], 4
          %s237 = int_to_ptr.vmem [resolvable:$true] %s236
          %242 = dma.hbm_to_vmem [thread:$0]  %s3, 4096, %s237, [#allocation6], 128, 128, 8
        $region24: #{tpu_custom_call.1} parent=11 // pred_fallthru
          _
        // Predicated region
        $region25: #{tpu_custom_call.1} parent=11 // pred_check
          %p243 = pneg %p131
        $region26: #{tpu_custom_call.1} parent=11 // pred_check_branch
          %245 = sbr.rel (%p243) target = $region28
        $region27: #{tpu_custom_call.1} parent=11 // pred_region
          _
        $region28: #{tpu_custom_call.1} parent=11 // pred_fallthru
          _
        // Predicated region
        $region29: #{tpu_custom_call.1} parent=11 // pred_check
          %p246 = pneg %p152
        $region30: #{tpu_custom_call.1} parent=11 // pred_check_branch
          %248 = sbr.rel (%p246) target = $region32
        $region31: #{tpu_custom_call.1} parent=11 // pred_region
          %s250 = ssub.s32 2048, 2048
          %251 = vsyncadd [#allocation9], %s250
          %s252 = sshll.u32 [#allocation8], 4
          %s253 = int_to_ptr.vmem [resolvable:$true] %s252
          %258 = dma.hbm_to_vmem [thread:$0]  %s5, 2048, %s253, [#allocation9], 64, 64, 4
        $region32: #{tpu_custom_call.1} parent=11 // pred_fallthru
          _
        // Predicated region
        $region33: #{tpu_custom_call.1} parent=11 // pred_check
          %p259 = pneg %p173
        $region34: #{tpu_custom_call.1} parent=11 // pred_check_branch
          %261 = sbr.rel (%p259) target = $region36
        $region35: #{tpu_custom_call.1} parent=11 // pred_region
          _
        $region36: #{tpu_custom_call.1} parent=11 // pred_fallthru
          _
      $region12: #{tpu_custom_call.1} parent=5 // pred_fallthru
        _
      %p262 = scmp.lt.s32.totalorder %s21, 2
      // Predicated region
      $region37: #{tpu_custom_call.1} parent=5 // pred_check
        %p263 = pneg %p262
      $region38: #{tpu_custom_call.1} parent=5 // pred_check_branch
        %265 = sbr.rel (%p263) target = $region40
      $region39: #{tpu_custom_call.1} parent=5 // pred_region
        // Predicated region
        $region41: #{tpu_custom_call.1} parent=39 // pred_check
          %p266 = pneg %p41
        $region42: #{tpu_custom_call.1} parent=39 // pred_check_branch
          %268 = sbr.rel (%p266) target = $region44
        $region43: #{tpu_custom_call.1} parent=39 // pred_region
          %s269 = sand.u32 %s31, 1
          %s270 = scalar_lea.sflag [#allocation3], %s269
          %s271 = sand.u32 %s31, 1
          %s272 = smul.addr %s271, 64
          %s273 = scalar_lea.vmem [#allocation2], %s272
          %s274 = smul.u32 16, %s21
          %s276 = ssub.s32 1024, 1024
          %277 = vsyncadd %s270, %s276
          %s278 = smul.addr %s274, 64
          %s279 = scalar_lea.hbm %s0, %s278
          %s280 = sshll.u32 %s273, 4
          %s281 = int_to_ptr.vmem [resolvable:$true] %s280
          %286 = dma.hbm_to_vmem [thread:$0]  %s279, 1024, %s281, %s270, 64, 64, 4
        $region44: #{tpu_custom_call.1} parent=39 // pred_fallthru
          _
      $region40: #{tpu_custom_call.1} parent=5 // pred_fallthru
        _
      %p287 = scmp.le.s32.totalorder 1, %s21
      %p288 = scmp.lt.s32.totalorder %s21, 3
      %p289 = pnand %p287, %p288
      %p290 = pneg %p289
      // Predicated region
      $region45: #{tpu_custom_call.1} parent=5 // pred_check
        _
      $region46: #{tpu_custom_call.1} parent=5 // pred_check_branch
        %292 = sbr.rel (%p289) target = $region48
      $region47: #{tpu_custom_call.1} parent=5 // pred_region
        %s293 = ssub.s32 %s21, 1
        %s294 = sand.u32 %s34, 1
        %s295 = scalar_lea.sflag [#allocation3], %s294
        %s296 = sand.u32 %s34, 1
        %s297 = smul.addr %s296, 64
        %s298 = scalar_lea.vmem [#allocation2], %s297
        // Predicated region
        $region49: #{tpu_custom_call.1} parent=47 // pred_check
          %p299 = pneg %p47
        $region50: #{tpu_custom_call.1} parent=47 // pred_check_branch
          %301 = sbr.rel (%p299) target = $region52
        $region51: #{tpu_custom_call.1} parent=47 // pred_region
          %302 = dma.done %s295, 1024
        $region52: #{tpu_custom_call.1} parent=47 // pred_fallthru
          _
        // Predicated region
        $region53: #{tpu_custom_call.1} parent=47 // pred_check
          %p303 = pneg %p68
        $region54: #{tpu_custom_call.1} parent=47 // pred_check_branch
          %305 = sbr.rel (%p303) target = $region56
        $region55: #{tpu_custom_call.1} parent=47 // pred_region
          %306 = dma.done [#allocation6], 2048
        $region56: #{tpu_custom_call.1} parent=47 // pred_fallthru
          _
        // Predicated region
        $region57: #{tpu_custom_call.1} parent=47 // pred_check
          %p307 = pneg %p110
        $region58: #{tpu_custom_call.1} parent=47 // pred_check_branch
          %309 = sbr.rel (%p307) target = $region60
        $region59: #{tpu_custom_call.1} parent=47 // pred_region
          %310 = dma.done [#allocation6], 4096
        $region60: #{tpu_custom_call.1} parent=47 // pred_fallthru
          _
        // Predicated region
        $region61: #{tpu_custom_call.1} parent=47 // pred_check
          %p311 = pneg %p152
        $region62: #{tpu_custom_call.1} parent=47 // pred_check_branch
          %313 = sbr.rel (%p311) target = $region64
        $region63: #{tpu_custom_call.1} parent=47 // pred_region
          %314 = dma.done [#allocation9], 2048
        $region64: #{tpu_custom_call.1} parent=47 // pred_fallthru
          _
        %s315 = sand.u32 %s34, 1
        %s316 = scalar_lea.sflag [#allocation3], %s315
        %s317 = sand.u32 %s34, 1
        %s318 = smul.addr %s317, 64
        %s319 = scalar_lea.vmem [#allocation2], %s318
        %p320 = pneg %p47
        %p321 = pneg %p44
        %p322 = pneg %p68
        %p323 = pneg %p65
        %p324 = pneg %p89
        %p325 = pneg %p86
        %p326 = pneg %p110
        %p327 = pneg %p107
        %p328 = pneg %p131
        %p329 = pneg %p128
        %p330 = pneg %p152
        %p331 = pneg %p149
        %p332 = pneg %p173
        %p333 = pneg %p170
        %p334 = pneg %p199
        %p335 = pneg %p196
        %s336 = sand.u32 %s186, 1
        %s337 = scalar_lea.sflag [#allocation4], %s336
        %s338 = sand.u32 %s186, 1
        %s339 = smul.addr %s338, 64
        %s340 = scalar_lea.vmem [#allocation10], %s339
        %s341 = smul.u32 16, %s26
        %s342 = smul.u32 16, %s26
        %v344 = vld [vmem:[%s298] sm:$0xf]
        %v345 = vld [vmem:[%s298 + $0x4] sm:$0xf]
        %v346 = vld [vmem:[%s298 + $0x8] sm:$0xf]
        %v347 = vld [vmem:[%s298 + $0xc] sm:$0xf]
        %v348 = vld [vmem:[%s298 + $0x10] sm:$0xf]
        %v349 = vld [vmem:[%s298 + $0x14] sm:$0xf]
        %v350 = vld [vmem:[%s298 + $0x18] sm:$0xf]
        %v351 = vld [vmem:[%s298 + $0x1c] sm:$0xf]
        %v352 = vld [vmem:[%s298 + $0x20] sm:$0xf]
        %v353 = vld [vmem:[%s298 + $0x24] sm:$0xf]
        %v354 = vld [vmem:[%s298 + $0x28] sm:$0xf]
        %v355 = vld [vmem:[%s298 + $0x2c] sm:$0xf]
        %v356 = vld [vmem:[%s298 + $0x30] sm:$0xf]
        %v357 = vld [vmem:[%s298 + $0x34] sm:$0xf]
        %v358 = vld [vmem:[%s298 + $0x38] sm:$0xf]
        %v359 = vld [vmem:[%s298 + $0x3c] sm:$0xf]
        %v360 = vld [vmem:[#allocation5] sm:$0xff]
        %v361 = vld [vmem:[#allocation5 + $0x8] sm:$0xff]
        %v362 = vld [vmem:[#allocation5 + $0x10] sm:$0xff]
        %v363 = vld [vmem:[#allocation5 + $0x18] sm:$0xff]
        %v364 = vld [vmem:[#allocation5 + $0x20] sm:$0xff]
        %v365 = vld [vmem:[#allocation5 + $0x28] sm:$0xff]
        %v366 = vld [vmem:[#allocation5 + $0x30] sm:$0xff]
        %v367 = vld [vmem:[#allocation5 + $0x38] sm:$0xff]
        %v368 = vld [vmem:[#allocation5 + $0x40] sm:$0xff]
        %v369 = vld [vmem:[#allocation5 + $0x48] sm:$0xff]
        %v370 = vld [vmem:[#allocation5 + $0x50] sm:$0xff]
        %v371 = vld [vmem:[#allocation5 + $0x58] sm:$0xff]
        %v372 = vld [vmem:[#allocation5 + $0x60] sm:$0xff]
        %v373 = vld [vmem:[#allocation5 + $0x68] sm:$0xff]
        %v374 = vld [vmem:[#allocation5 + $0x70] sm:$0xff]
        %v375 = vld [vmem:[#allocation5 + $0x78] sm:$0xff]
        %v376 = vld [vmem:[%s2] sm:$0x3]
        %v378 = vlaneseq
        %v379 = vshrl.u32 %v378, 7
        %v380 = vsub.s32 0, %v379
        %v381 = vrot.slane %v376, %v380
        %v382 = vlaneseq
        %v383 = vshrl.u32 %v382, 7
        %v384 = vsub.s32 1, %v383
        %v385 = vrot.slane %v376, %v384
        %v404 = vunpack.c.l.b16 %v344
        %v405 = vunpack.c.l.b16 %v345
        %v406 = vunpack.c.l.b16 %v346
        %v407 = vunpack.c.l.b16 %v347
        %v408 = vunpack.c.l.b16 %v348
        %v409 = vunpack.c.l.b16 %v349
        %v410 = vunpack.c.l.b16 %v350
        %v411 = vunpack.c.l.b16 %v351
        %v412 = vunpack.c.l.b16 %v352
        %v413 = vunpack.c.l.b16 %v353
        %v414 = vunpack.c.l.b16 %v354
        %v415 = vunpack.c.l.b16 %v355
        %v416 = vunpack.c.l.b16 %v356
        %v417 = vunpack.c.l.b16 %v357
        %v418 = vunpack.c.l.b16 %v358
        %v419 = vunpack.c.l.b16 %v359
        %v420 = vpack.c.b16 %v405, %v404
        %v421 = vpack.c.b16 %v407, %v406
        %v422 = vpack.c.b16 %v409, %v408
        %v423 = vpack.c.b16 %v411, %v410
        %v424 = vpack.c.b16 %v413, %v412
        %v425 = vpack.c.b16 %v415, %v414
        %v426 = vpack.c.b16 %v417, %v416
        %v427 = vpack.c.b16 %v419, %v418
        %v452 = vunpack.c.l.b16 %v360
        %v453 = vunpack.c.h.b16 %v360
        %v454 = vunpack.c.l.b16 %v361
        %v455 = vunpack.c.h.b16 %v361
        %v456 = vunpack.c.l.b16 %v362
        %v457 = vunpack.c.h.b16 %v362
        %v458 = vunpack.c.l.b16 %v363
        %v459 = vunpack.c.h.b16 %v363
        %v460 = vunpack.c.l.b16 %v364
        %v461 = vunpack.c.h.b16 %v364
        %v462 = vunpack.c.l.b16 %v365
        %v463 = vunpack.c.h.b16 %v365
        %v464 = vunpack.c.l.b16 %v366
        %v465 = vunpack.c.h.b16 %v366
        %v466 = vunpack.c.l.b16 %v367
        %v467 = vunpack.c.h.b16 %v367
        %v468 = vunpack.c.l.b16 %v368
        %v469 = vunpack.c.h.b16 %v368
        %v470 = vunpack.c.l.b16 %v369
        %v471 = vunpack.c.h.b16 %v369
        %v472 = vunpack.c.l.b16 %v370
        %v473 = vunpack.c.h.b16 %v370
        %v474 = vunpack.c.l.b16 %v371
        %v475 = vunpack.c.h.b16 %v371
        %v476 = vunpack.c.l.b16 %v372
        %v477 = vunpack.c.h.b16 %v372
        %v478 = vunpack.c.l.b16 %v373
        %v479 = vunpack.c.h.b16 %v373
        %v480 = vunpack.c.l.b16 %v374
        %v481 = vunpack.c.h.b16 %v374
        %v482 = vunpack.c.l.b16 %v375
        %v483 = vunpack.c.h.b16 %v375
        %v484 = vpack.c.b16 %v454, %v452
        %v485 = vpack.c.b16 %v455, %v453
        %v486 = vpack.c.b16 %v458, %v456
        %v487 = vpack.c.b16 %v459, %v457
        %v488 = vpack.c.b16 %v462, %v460
        %v489 = vpack.c.b16 %v463, %v461
        %v490 = vpack.c.b16 %v466, %v464
        %v491 = vpack.c.b16 %v467, %v465
        %v492 = vpack.c.b16 %v470, %v468
        %v493 = vpack.c.b16 %v471, %v469
        %v494 = vpack.c.b16 %v474, %v472
        %v495 = vpack.c.b16 %v475, %v473
        %v496 = vpack.c.b16 %v478, %v476
        %v497 = vpack.c.b16 %v479, %v477
        %v498 = vpack.c.b16 %v482, %v480
        %v499 = vpack.c.b16 %v483, %v481
        %516 = vmatprep.subr.bf16.mxu0 %v485
        %517 = vmatpush1.bf16.msra.mxu0 %v484
        %518 = vmatprep.subr.bf16.mxu0 %v487
        %519 = vmatpush1.bf16.msra.mxu0 %v486
        %520 = vmatprep.subr.bf16.mxu0 %v489
        %521 = vmatpush1.bf16.msra.mxu0 %v488
        %522 = vmatprep.subr.bf16.mxu0 %v491
        %523 = vmatpush1.bf16.msra.mxu0 %v490
        %524 = vmatprep.subr.bf16.mxu0 %v493
        %525 = vmatpush1.bf16.msra.mxu0 %v492
        %526 = vmatprep.subr.bf16.mxu0 %v495
        %527 = vmatpush1.bf16.msra.mxu0 %v494
        %528 = vmatprep.subr.bf16.mxu0 %v497
        %529 = vmatpush1.bf16.msra.mxu0 %v496
        %530 = vmatprep.subr.bf16.mxu0 %v499
        %531 = vmatpush1.bf16.msra.mxu0 %v498
        %532 = vmatprep.subr.bf16.mxu0 0
        %533 = vmatpush1.bf16.msra.mxu0 0
        %534 = vmatprep.subr.bf16.mxu0 0
        %535 = vmatpush1.bf16.msra.mxu0 0
        %536 = vmatprep.subr.bf16.mxu0 0
        %537 = vmatpush1.bf16.msra.mxu0 0
        %538 = vmatprep.subr.bf16.mxu0 0
        %539 = vmatpush1.bf16.msra.mxu0 0
        %540 = vmatprep.subr.bf16.mxu0 0
        %541 = vmatpush1.bf16.msra.mxu0 0
        %542 = vmatprep.subr.bf16.mxu0 0
        %543 = vmatpush1.bf16.msra.mxu0 0
        %544 = vmatprep.subr.bf16.mxu0 0
        %545 = vmatpush1.bf16.msra.mxu0 0
        %546 = vmatprep.subr.bf16.mxu0 0
        %547 = vmatpush1.bf16.msra.mxu0 0
        %548 = vmatprep.mubr.bf16.mxu0 0
        %549 = vmatmul.mubr.bf16.gmra.mrb[0].mxu0 %v420
        %v550 = vpop.f32.mrb[0].mxu0
        %v551 = vadd.f32 %v381, %v550
        %v552 = vpop.f32.mrb[0].mxu0
        %v553 = vadd.f32 %v385, %v552
        %v554 = vpop.f32.mrb[0].mxu0
        %v555 = vadd.f32 %v381, %v554
        %v556 = vpop.f32.mrb[0].mxu0
        %v557 = vadd.f32 %v385, %v556
        %558 = vmatprep.mubr.bf16.mxu0 0
        %559 = vmatmul.mubr.bf16.gmra.mrb[0].mxu0 %v421
        %v560 = vpop.f32.mrb[0].mxu0
        %v561 = vadd.f32 %v381, %v560
        %v562 = vpop.f32.mrb[0].mxu0
        %v563 = vadd.f32 %v385, %v562
        %v564 = vpop.f32.mrb[0].mxu0
        %v565 = vadd.f32 %v381, %v564
        %v566 = vpop.f32.mrb[0].mxu0
        %v567 = vadd.f32 %v385, %v566
        %568 = vmatprep.mubr.bf16.mxu0 0
        %569 = vmatmul.mubr.bf16.gmra.mrb[0].mxu0 %v422
        %v570 = vpop.f32.mrb[0].mxu0
        %v571 = vadd.f32 %v381, %v570
        %v572 = vpop.f32.mrb[0].mxu0
        %v573 = vadd.f32 %v385, %v572
        %v574 = vpop.f32.mrb[0].mxu0
        %v575 = vadd.f32 %v381, %v574
        %v576 = vpop.f32.mrb[0].mxu0
        %v577 = vadd.f32 %v385, %v576
        %578 = vmatprep.mubr.bf16.mxu0 0
        %579 = vmatmul.mubr.bf16.gmra.mrb[0].mxu0 %v423
        %v580 = vpop.f32.mrb[0].mxu0
        %v581 = vadd.f32 %v381, %v580
        %v582 = vpop.f32.mrb[0].mxu0
        %v583 = vadd.f32 %v385, %v582
        %v584 = vpop.f32.mrb[0].mxu0
        %v585 = vadd.f32 %v381, %v584
        %v586 = vpop.f32.mrb[0].mxu0
        %v587 = vadd.f32 %v385, %v586
        %588 = vmatprep.mubr.bf16.mxu0 0
        %589 = vmatmul.mubr.bf16.gmra.mrb[0].mxu0 %v424
        %v590 = vpop.f32.mrb[0].mxu0
        %v591 = vadd.f32 %v381, %v590
        %v592 = vpop.f32.mrb[0].mxu0
        %v593 = vadd.f32 %v385, %v592
        %v594 = vpop.f32.mrb[0].mxu0
        %v595 = vadd.f32 %v381, %v594
        %v596 = vpop.f32.mrb[0].mxu0
        %v597 = vadd.f32 %v385, %v596
        %598 = vmatprep.mubr.bf16.mxu0 0
        %599 = vmatmul.mubr.bf16.gmra.mrb[0].mxu0 %v425
        %v600 = vpop.f32.mrb[0].mxu0
        %v601 = vadd.f32 %v381, %v600
        %v602 = vpop.f32.mrb[0].mxu0
        %v603 = vadd.f32 %v385, %v602
        %v604 = vpop.f32.mrb[0].mxu0
        %v605 = vadd.f32 %v381, %v604
        %v606 = vpop.f32.mrb[0].mxu0
        %v607 = vadd.f32 %v385, %v606
        %608 = vmatprep.mubr.bf16.mxu0 0
        %609 = vmatmul.mubr.bf16.gmra.mrb[0].mxu0 %v426
        %v610 = vpop.f32.mrb[0].mxu0
        %v611 = vadd.f32 %v381, %v610
        %v612 = vpop.f32.mrb[0].mxu0
        %v613 = vadd.f32 %v385, %v612
        %v614 = vpop.f32.mrb[0].mxu0
        %v615 = vadd.f32 %v381, %v614
        %v616 = vpop.f32.mrb[0].mxu0
        %v617 = vadd.f32 %v385, %v616
        %618 = vmatprep.mubr.bf16.mxu0 0
        %619 = vmatmul.mubr.bf16.gmra.mrb[0].mxu0 %v427
        %v620 = vpop.f32.mrb[0].mxu0
        %v621 = vadd.f32 %v381, %v620
        %v622 = vpop.f32.mrb[0].mxu0
        %v623 = vadd.f32 %v385, %v622
        %v624 = vpop.f32.mrb[0].mxu0
        %v625 = vadd.f32 %v381, %v624
        %v626 = vpop.f32.mrb[0].mxu0
        %v627 = vadd.f32 %v385, %v626
        %628 = vdwg.mxu0
        %v629 = vmul.f32 %v551, 0.5
        %v630 = vmul.f32 %v553, 0.5
        %v631 = vmul.f32 %v555, 0.5
        %v632 = vmul.f32 %v557, 0.5
        %v633 = vmul.f32 %v561, 0.5
        %v634 = vmul.f32 %v563, 0.5
        %v635 = vmul.f32 %v565, 0.5
        %v636 = vmul.f32 %v567, 0.5
        %v637 = vmul.f32 %v571, 0.5
        %v638 = vmul.f32 %v573, 0.5
        %v639 = vmul.f32 %v575, 0.5
        %v640 = vmul.f32 %v577, 0.5
        %v641 = vmul.f32 %v581, 0.5
        %v642 = vmul.f32 %v583, 0.5
        %v643 = vmul.f32 %v585, 0.5
        %v644 = vmul.f32 %v587, 0.5
        %v645 = vmul.f32 %v591, 0.5
        %v646 = vmul.f32 %v593, 0.5
        %v647 = vmul.f32 %v595, 0.5
        %v648 = vmul.f32 %v597, 0.5
        %v649 = vmul.f32 %v601, 0.5
        %v650 = vmul.f32 %v603, 0.5
        %v651 = vmul.f32 %v605, 0.5
        %v652 = vmul.f32 %v607, 0.5
        %v653 = vmul.f32 %v611, 0.5
        %v654 = vmul.f32 %v613, 0.5
        %v655 = vmul.f32 %v615, 0.5
        %v656 = vmul.f32 %v617, 0.5
        %v657 = vmul.f32 %v621, 0.5
        %v658 = vmul.f32 %v623, 0.5
        %v659 = vmul.f32 %v625, 0.5
        %v660 = vmul.f32 %v627, 0.5
        %v661 = vmul.f32 %v551, 0.70710677
        %v662 = vmul.f32 %v553, 0.70710677
        %v663 = vmul.f32 %v555, 0.70710677
        %v664 = vmul.f32 %v557, 0.70710677
        %v665 = vmul.f32 %v561, 0.70710677
        %v666 = vmul.f32 %v563, 0.70710677
        %v667 = vmul.f32 %v565, 0.70710677
        %v668 = vmul.f32 %v567, 0.70710677
        %v669 = vmul.f32 %v571, 0.70710677
        %v670 = vmul.f32 %v573, 0.70710677
        %v671 = vmul.f32 %v575, 0.70710677
        %v672 = vmul.f32 %v577, 0.70710677
        %v673 = vmul.f32 %v581, 0.70710677
        %v674 = vmul.f32 %v583, 0.70710677
        %v675 = vmul.f32 %v585, 0.70710677
        %v676 = vmul.f32 %v587, 0.70710677
        %v677 = vmul.f32 %v591, 0.70710677
        %v678 = vmul.f32 %v593, 0.70710677
        %v679 = vmul.f32 %v595, 0.70710677
        %v680 = vmul.f32 %v597, 0.70710677
        %v681 = vmul.f32 %v601, 0.70710677
        %v682 = vmul.f32 %v603, 0.70710677
        %v683 = vmul.f32 %v605, 0.70710677
        %v684 = vmul.f32 %v607, 0.70710677
        %v685 = vmul.f32 %v611, 0.70710677
        %v686 = vmul.f32 %v613, 0.70710677
        %v687 = vmul.f32 %v615, 0.70710677
        %v688 = vmul.f32 %v617, 0.70710677
        %v689 = vmul.f32 %v621, 0.70710677
        %v690 = vmul.f32 %v623, 0.70710677
        %v691 = vmul.f32 %v625, 0.70710677
        %v692 = vmul.f32 %v627, 0.70710677
        %v693 = vand.u32 2147483647, %v661
        %v694 = vand.u32 2147483647, %v662
        %v695 = vand.u32 2147483647, %v663
        %v696 = vand.u32 2147483647, %v664
        %v697 = vand.u32 2147483647, %v665
        %v698 = vand.u32 2147483647, %v666
        %v699 = vand.u32 2147483647, %v667
        %v700 = vand.u32 2147483647, %v668
        %v701 = vand.u32 2147483647, %v669
        %v702 = vand.u32 2147483647, %v670
        %v703 = vand.u32 2147483647, %v671
        %v704 = vand.u32 2147483647, %v672
        %v705 = vand.u32 2147483647, %v673
        %v706 = vand.u32 2147483647, %v674
        %v707 = vand.u32 2147483647, %v675
        %v708 = vand.u32 2147483647, %v676
        %v709 = vand.u32 2147483647, %v677
        %v710 = vand.u32 2147483647, %v678
        %v711 = vand.u32 2147483647, %v679
        %v712 = vand.u32 2147483647, %v680
        %v713 = vand.u32 2147483647, %v681
        %v714 = vand.u32 2147483647, %v682
        %v715 = vand.u32 2147483647, %v683
        %v716 = vand.u32 2147483647, %v684
        %v717 = vand.u32 2147483647, %v685
        %v718 = vand.u32 2147483647, %v686
        %v719 = vand.u32 2147483647, %v687
        %v720 = vand.u32 2147483647, %v688
        %v721 = vand.u32 2147483647, %v689
        %v722 = vand.u32 2147483647, %v690
        %v723 = vand.u32 2147483647, %v691
        %v724 = vand.u32 2147483647, %v692
        %v725 = vmul.f32 %v693, 0.3275911
        %v726 = vmul.f32 %v694, 0.3275911
        %v727 = vmul.f32 %v695, 0.3275911
        %v728 = vmul.f32 %v696, 0.3275911
        %v729 = vmul.f32 %v697, 0.3275911
        %v730 = vmul.f32 %v698, 0.3275911
        %v731 = vmul.f32 %v699, 0.3275911
        %v732 = vmul.f32 %v700, 0.3275911
        %v733 = vmul.f32 %v701, 0.3275911
        %v734 = vmul.f32 %v702, 0.3275911
        %v735 = vmul.f32 %v703, 0.3275911
        %v736 = vmul.f32 %v704, 0.3275911
        %v737 = vmul.f32 %v705, 0.3275911
        %v738 = vmul.f32 %v706, 0.3275911
        %v739 = vmul.f32 %v707, 0.3275911
        %v740 = vmul.f32 %v708, 0.3275911
        %v741 = vmul.f32 %v709, 0.3275911
        %v742 = vmul.f32 %v710, 0.3275911
        %v743 = vmul.f32 %v711, 0.3275911
        %v744 = vmul.f32 %v712, 0.3275911
        %v745 = vmul.f32 %v713, 0.3275911
        %v746 = vmul.f32 %v714, 0.3275911
        %v747 = vmul.f32 %v715, 0.3275911
        %v748 = vmul.f32 %v716, 0.3275911
        %v749 = vmul.f32 %v717, 0.3275911
        %v750 = vmul.f32 %v718, 0.3275911
        %v751 = vmul.f32 %v719, 0.3275911
        %v752 = vmul.f32 %v720, 0.3275911
        %v753 = vmul.f32 %v721, 0.3275911
        %v754 = vmul.f32 %v722, 0.3275911
        %v755 = vmul.f32 %v723, 0.3275911
        %v756 = vmul.f32 %v724, 0.3275911
        %v757 = vadd.f32 %v725, 1.0
        %v758 = vadd.f32 %v726, 1.0
        %v759 = vadd.f32 %v727, 1.0
        %v760 = vadd.f32 %v728, 1.0
        %v761 = vadd.f32 %v729, 1.0
        %v762 = vadd.f32 %v730, 1.0
        %v763 = vadd.f32 %v731, 1.0
        %v764 = vadd.f32 %v732, 1.0
        %v765 = vadd.f32 %v733, 1.0
        %v766 = vadd.f32 %v734, 1.0
        %v767 = vadd.f32 %v735, 1.0
        %v768 = vadd.f32 %v736, 1.0
        %v769 = vadd.f32 %v737, 1.0
        %v770 = vadd.f32 %v738, 1.0
        %v771 = vadd.f32 %v739, 1.0
        %v772 = vadd.f32 %v740, 1.0
        %v773 = vadd.f32 %v741, 1.0
        %v774 = vadd.f32 %v742, 1.0
        %v775 = vadd.f32 %v743, 1.0
        %v776 = vadd.f32 %v744, 1.0
        %v777 = vadd.f32 %v745, 1.0
        %v778 = vadd.f32 %v746, 1.0
        %v779 = vadd.f32 %v747, 1.0
        %v780 = vadd.f32 %v748, 1.0
        %v781 = vadd.f32 %v749, 1.0
        %v782 = vadd.f32 %v750, 1.0
        %v783 = vadd.f32 %v751, 1.0
        %v784 = vadd.f32 %v752, 1.0
        %v785 = vadd.f32 %v753, 1.0
        %v786 = vadd.f32 %v754, 1.0
        %v787 = vadd.f32 %v755, 1.0
        %v788 = vadd.f32 %v756, 1.0
        %v789 = vrcp.pop %v757
        %v790 = vmul.f32 1.0, %v789
        %v791 = vrcp.pop %v758
        %v792 = vmul.f32 1.0, %v791
        %v793 = vrcp.pop %v759
        %v794 = vmul.f32 1.0, %v793
        %v795 = vrcp.pop %v760
        %v796 = vmul.f32 1.0, %v795
        %v797 = vrcp.pop %v761
        %v798 = vmul.f32 1.0, %v797
        %v799 = vrcp.pop %v762
        %v800 = vmul.f32 1.0, %v799
        %v801 = vrcp.pop %v763
        %v802 = vmul.f32 1.0, %v801
        %v803 = vrcp.pop %v764
        %v804 = vmul.f32 1.0, %v803
        %v805 = vrcp.pop %v765
        %v806 = vmul.f32 1.0, %v805
        %v807 = vrcp.pop %v766
        %v808 = vmul.f32 1.0, %v807
        %v809 = vrcp.pop %v767
        %v810 = vmul.f32 1.0, %v809
        %v811 = vrcp.pop %v768
        %v812 = vmul.f32 1.0, %v811
        %v813 = vrcp.pop %v769
        %v814 = vmul.f32 1.0, %v813
        %v815 = vrcp.pop %v770
        %v816 = vmul.f32 1.0, %v815
        %v817 = vrcp.pop %v771
        %v818 = vmul.f32 1.0, %v817
        %v819 = vrcp.pop %v772
        %v820 = vmul.f32 1.0, %v819
        %v821 = vrcp.pop %v773
        %v822 = vmul.f32 1.0, %v821
        %v823 = vrcp.pop %v774
        %v824 = vmul.f32 1.0, %v823
        %v825 = vrcp.pop %v775
        %v826 = vmul.f32 1.0, %v825
        %v827 = vrcp.pop %v776
        %v828 = vmul.f32 1.0, %v827
        %v829 = vrcp.pop %v777
        %v830 = vmul.f32 1.0, %v829
        %v831 = vrcp.pop %v778
        %v832 = vmul.f32 1.0, %v831
        %v833 = vrcp.pop %v779
        %v834 = vmul.f32 1.0, %v833
        %v835 = vrcp.pop %v780
        %v836 = vmul.f32 1.0, %v835
        %v837 = vrcp.pop %v781
        %v838 = vmul.f32 1.0, %v837
        %v839 = vrcp.pop %v782
        %v840 = vmul.f32 1.0, %v839
        %v841 = vrcp.pop %v783
        %v842 = vmul.f32 1.0, %v841
        %v843 = vrcp.pop %v784
        %v844 = vmul.f32 1.0, %v843
        %v845 = vrcp.pop %v785
        %v846 = vmul.f32 1.0, %v845
        %v847 = vrcp.pop %v786
        %v848 = vmul.f32 1.0, %v847
        %v849 = vrcp.pop %v787
        %v850 = vmul.f32 1.0, %v849
        %v851 = vrcp.pop %v788
        %v852 = vmul.f32 1.0, %v851
        %v853 = vmul.f32 %v790, 1.0614054
        %v854 = vmul.f32 %v792, 1.0614054
        %v855 = vmul.f32 %v794, 1.0614054
        %v856 = vmul.f32 %v796, 1.0614054
        %v857 = vmul.f32 %v798, 1.0614054
        %v858 = vmul.f32 %v800, 1.0614054
        %v859 = vmul.f32 %v802, 1.0614054
        %v860 = vmul.f32 %v804, 1.0614054
        %v861 = vmul.f32 %v806, 1.0614054
        %v862 = vmul.f32 %v808, 1.0614054
        %v863 = vmul.f32 %v810, 1.0614054
        %v864 = vmul.f32 %v812, 1.0614054
        %v865 = vmul.f32 %v814, 1.0614054
        %v866 = vmul.f32 %v816, 1.0614054
        %v867 = vmul.f32 %v818, 1.0614054
        %v868 = vmul.f32 %v820, 1.0614054
        %v869 = vmul.f32 %v822, 1.0614054
        %v870 = vmul.f32 %v824, 1.0614054
        %v871 = vmul.f32 %v826, 1.0614054
        %v872 = vmul.f32 %v828, 1.0614054
        %v873 = vmul.f32 %v830, 1.0614054
        %v874 = vmul.f32 %v832, 1.0614054
        %v875 = vmul.f32 %v834, 1.0614054
        %v876 = vmul.f32 %v836, 1.0614054
        %v877 = vmul.f32 %v838, 1.0614054
        %v878 = vmul.f32 %v840, 1.0614054
        %v879 = vmul.f32 %v842, 1.0614054
        %v880 = vmul.f32 %v844, 1.0614054
        %v881 = vmul.f32 %v846, 1.0614054
        %v882 = vmul.f32 %v848, 1.0614054
        %v883 = vmul.f32 %v850, 1.0614054
        %v884 = vmul.f32 %v852, 1.0614054
        %v885 = vadd.f32 %v853, -1.4531521
        %v886 = vadd.f32 %v854, -1.4531521
        %v887 = vadd.f32 %v855, -1.4531521
        %v888 = vadd.f32 %v856, -1.4531521
        %v889 = vadd.f32 %v857, -1.4531521
        %v890 = vadd.f32 %v858, -1.4531521
        %v891 = vadd.f32 %v859, -1.4531521
        %v892 = vadd.f32 %v860, -1.4531521
        %v893 = vadd.f32 %v861, -1.4531521
        %v894 = vadd.f32 %v862, -1.4531521
        %v895 = vadd.f32 %v863, -1.4531521
        %v896 = vadd.f32 %v864, -1.4531521
        %v897 = vadd.f32 %v865, -1.4531521
        %v898 = vadd.f32 %v866, -1.4531521
        %v899 = vadd.f32 %v867, -1.4531521
        %v900 = vadd.f32 %v868, -1.4531521
        %v901 = vadd.f32 %v869, -1.4531521
        %v902 = vadd.f32 %v870, -1.4531521
        %v903 = vadd.f32 %v871, -1.4531521
        %v904 = vadd.f32 %v872, -1.4531521
        %v905 = vadd.f32 %v873, -1.4531521
        %v906 = vadd.f32 %v874, -1.4531521
        %v907 = vadd.f32 %v875, -1.4531521
        %v908 = vadd.f32 %v876, -1.4531521
        %v909 = vadd.f32 %v877, -1.4531521
        %v910 = vadd.f32 %v878, -1.4531521
        %v911 = vadd.f32 %v879, -1.4531521
        %v912 = vadd.f32 %v880, -1.4531521
        %v913 = vadd.f32 %v881, -1.4531521
        %v914 = vadd.f32 %v882, -1.4531521
        %v915 = vadd.f32 %v883, -1.4531521
        %v916 = vadd.f32 %v884, -1.4531521
        %v917 = vmul.f32 %v790, %v885
        %v918 = vmul.f32 %v792, %v886
        %v919 = vmul.f32 %v794, %v887
        %v920 = vmul.f32 %v796, %v888
        %v921 = vmul.f32 %v798, %v889
        %v922 = vmul.f32 %v800, %v890
        %v923 = vmul.f32 %v802, %v891
        %v924 = vmul.f32 %v804, %v892
        %v925 = vmul.f32 %v806, %v893
        %v926 = vmul.f32 %v808, %v894
        %v927 = vmul.f32 %v810, %v895
        %v928 = vmul.f32 %v812, %v896
        %v929 = vmul.f32 %v814, %v897
        %v930 = vmul.f32 %v816, %v898
        %v931 = vmul.f32 %v818, %v899
        %v932 = vmul.f32 %v820, %v900
        %v933 = vmul.f32 %v822, %v901
        %v934 = vmul.f32 %v824, %v902
        %v935 = vmul.f32 %v826, %v903
        %v936 = vmul.f32 %v828, %v904
        %v937 = vmul.f32 %v830, %v905
        %v938 = vmul.f32 %v832, %v906
        %v939 = vmul.f32 %v834, %v907
        %v940 = vmul.f32 %v836, %v908
        %v941 = vmul.f32 %v838, %v909
        %v942 = vmul.f32 %v840, %v910
        %v943 = vmul.f32 %v842, %v911
        %v944 = vmul.f32 %v844, %v912
        %v945 = vmul.f32 %v846, %v913
        %v946 = vmul.f32 %v848, %v914
        %v947 = vmul.f32 %v850, %v915
        %v948 = vmul.f32 %v852, %v916
        %v949 = vadd.f32 %v917, 1.4214138
        %v950 = vadd.f32 %v918, 1.4214138
        %v951 = vadd.f32 %v919, 1.4214138
        %v952 = vadd.f32 %v920, 1.4214138
        %v953 = vadd.f32 %v921, 1.4214138
        %v954 = vadd.f32 %v922, 1.4214138
        %v955 = vadd.f32 %v923, 1.4214138
        %v956 = vadd.f32 %v924, 1.4214138
        %v957 = vadd.f32 %v925, 1.4214138
        %v958 = vadd.f32 %v926, 1.4214138
        %v959 = vadd.f32 %v927, 1.4214138
        %v960 = vadd.f32 %v928, 1.4214138
        %v961 = vadd.f32 %v929, 1.4214138
        %v962 = vadd.f32 %v930, 1.4214138
        %v963 = vadd.f32 %v931, 1.4214138
        %v964 = vadd.f32 %v932, 1.4214138
        %v965 = vadd.f32 %v933, 1.4214138
        %v966 = vadd.f32 %v934, 1.4214138
        %v967 = vadd.f32 %v935, 1.4214138
        %v968 = vadd.f32 %v936, 1.4214138
        %v969 = vadd.f32 %v937, 1.4214138
        %v970 = vadd.f32 %v938, 1.4214138
        %v971 = vadd.f32 %v939, 1.4214138
        %v972 = vadd.f32 %v940, 1.4214138
        %v973 = vadd.f32 %v941, 1.4214138
        %v974 = vadd.f32 %v942, 1.4214138
        %v975 = vadd.f32 %v943, 1.4214138
        %v976 = vadd.f32 %v944, 1.4214138
        %v977 = vadd.f32 %v945, 1.4214138
        %v978 = vadd.f32 %v946, 1.4214138
        %v979 = vadd.f32 %v947, 1.4214138
        %v980 = vadd.f32 %v948, 1.4214138
        %v981 = vmul.f32 %v790, %v949
        %v982 = vmul.f32 %v792, %v950
        %v983 = vmul.f32 %v794, %v951
        %v984 = vmul.f32 %v796, %v952
        %v985 = vmul.f32 %v798, %v953
        %v986 = vmul.f32 %v800, %v954
        %v987 = vmul.f32 %v802, %v955
        %v988 = vmul.f32 %v804, %v956
        %v989 = vmul.f32 %v806, %v957
        %v990 = vmul.f32 %v808, %v958
        %v991 = vmul.f32 %v810, %v959
        %v992 = vmul.f32 %v812, %v960
        %v993 = vmul.f32 %v814, %v961
        %v994 = vmul.f32 %v816, %v962
        %v995 = vmul.f32 %v818, %v963
        %v996 = vmul.f32 %v820, %v964
        %v997 = vmul.f32 %v822, %v965
        %v998 = vmul.f32 %v824, %v966
        %v999 = vmul.f32 %v826, %v967
        %v1000 = vmul.f32 %v828, %v968
        %v1001 = vmul.f32 %v830, %v969
        %v1002 = vmul.f32 %v832, %v970
        %v1003 = vmul.f32 %v834, %v971
        %v1004 = vmul.f32 %v836, %v972
        %v1005 = vmul.f32 %v838, %v973
        %v1006 = vmul.f32 %v840, %v974
        %v1007 = vmul.f32 %v842, %v975
        %v1008 = vmul.f32 %v844, %v976
        %v1009 = vmul.f32 %v846, %v977
        %v1010 = vmul.f32 %v848, %v978
        %v1011 = vmul.f32 %v850, %v979
        %v1012 = vmul.f32 %v852, %v980
        %v1013 = vadd.f32 %v981, -0.28449672
        %v1014 = vadd.f32 %v982, -0.28449672
        %v1015 = vadd.f32 %v983, -0.28449672
        %v1016 = vadd.f32 %v984, -0.28449672
        %v1017 = vadd.f32 %v985, -0.28449672
        %v1018 = vadd.f32 %v986, -0.28449672
        %v1019 = vadd.f32 %v987, -0.28449672
        %v1020 = vadd.f32 %v988, -0.28449672
        %v1021 = vadd.f32 %v989, -0.28449672
        %v1022 = vadd.f32 %v990, -0.28449672
        %v1023 = vadd.f32 %v991, -0.28449672
        %v1024 = vadd.f32 %v992, -0.28449672
        %v1025 = vadd.f32 %v993, -0.28449672
        %v1026 = vadd.f32 %v994, -0.28449672
        %v1027 = vadd.f32 %v995, -0.28449672
        %v1028 = vadd.f32 %v996, -0.28449672
        %v1029 = vadd.f32 %v997, -0.28449672
        %v1030 = vadd.f32 %v998, -0.28449672
        %v1031 = vadd.f32 %v999, -0.28449672
        %v1032 = vadd.f32 %v1000, -0.28449672
        %v1033 = vadd.f32 %v1001, -0.28449672
        %v1034 = vadd.f32 %v1002, -0.28449672
        %v1035 = vadd.f32 %v1003, -0.28449672
        %v1036 = vadd.f32 %v1004, -0.28449672
        %v1037 = vadd.f32 %v1005, -0.28449672
        %v1038 = vadd.f32 %v1006, -0.28449672
        %v1039 = vadd.f32 %v1007, -0.28449672
        %v1040 = vadd.f32 %v1008, -0.28449672
        %v1041 = vadd.f32 %v1009, -0.28449672
        %v1042 = vadd.f32 %v1010, -0.28449672
        %v1043 = vadd.f32 %v1011, -0.28449672
        %v1044 = vadd.f32 %v1012, -0.28449672
        %v1045 = vmul.f32 %v790, %v1013
        %v1046 = vmul.f32 %v792, %v1014
        %v1047 = vmul.f32 %v794, %v1015
        %v1048 = vmul.f32 %v796, %v1016
        %v1049 = vmul.f32 %v798, %v1017
        %v1050 = vmul.f32 %v800, %v1018
        %v1051 = vmul.f32 %v802, %v1019
        %v1052 = vmul.f32 %v804, %v1020
        %v1053 = vmul.f32 %v806, %v1021
        %v1054 = vmul.f32 %v808, %v1022
        %v1055 = vmul.f32 %v810, %v1023
        %v1056 = vmul.f32 %v812, %v1024
        %v1057 = vmul.f32 %v814, %v1025
        %v1058 = vmul.f32 %v816, %v1026
        %v1059 = vmul.f32 %v818, %v1027
        %v1060 = vmul.f32 %v820, %v1028
        %v1061 = vmul.f32 %v822, %v1029
        %v1062 = vmul.f32 %v824, %v1030
        %v1063 = vmul.f32 %v826, %v1031
        %v1064 = vmul.f32 %v828, %v1032
        %v1065 = vmul.f32 %v830, %v1033
        %v1066 = vmul.f32 %v832, %v1034
        %v1067 = vmul.f32 %v834, %v1035
        %v1068 = vmul.f32 %v836, %v1036
        %v1069 = vmul.f32 %v838, %v1037
        %v1070 = vmul.f32 %v840, %v1038
        %v1071 = vmul.f32 %v842, %v1039
        %v1072 = vmul.f32 %v844, %v1040
        %v1073 = vmul.f32 %v846, %v1041
        %v1074 = vmul.f32 %v848, %v1042
        %v1075 = vmul.f32 %v850, %v1043
        %v1076 = vmul.f32 %v852, %v1044
        %v1077 = vadd.f32 %v1045, 0.2548296
        %v1078 = vadd.f32 %v1046, 0.2548296
        %v1079 = vadd.f32 %v1047, 0.2548296
        %v1080 = vadd.f32 %v1048, 0.2548296
        %v1081 = vadd.f32 %v1049, 0.2548296
        %v1082 = vadd.f32 %v1050, 0.2548296
        %v1083 = vadd.f32 %v1051, 0.2548296
        %v1084 = vadd.f32 %v1052, 0.2548296
        %v1085 = vadd.f32 %v1053, 0.2548296
        %v1086 = vadd.f32 %v1054, 0.2548296
        %v1087 = vadd.f32 %v1055, 0.2548296
        %v1088 = vadd.f32 %v1056, 0.2548296
        %v1089 = vadd.f32 %v1057, 0.2548296
        %v1090 = vadd.f32 %v1058, 0.2548296
        %v1091 = vadd.f32 %v1059, 0.2548296
        %v1092 = vadd.f32 %v1060, 0.2548296
        %v1093 = vadd.f32 %v1061, 0.2548296
        %v1094 = vadd.f32 %v1062, 0.2548296
        %v1095 = vadd.f32 %v1063, 0.2548296
        %v1096 = vadd.f32 %v1064, 0.2548296
        %v1097 = vadd.f32 %v1065, 0.2548296
        %v1098 = vadd.f32 %v1066, 0.2548296
        %v1099 = vadd.f32 %v1067, 0.2548296
        %v1100 = vadd.f32 %v1068, 0.2548296
        %v1101 = vadd.f32 %v1069, 0.2548296
        %v1102 = vadd.f32 %v1070, 0.2548296
        %v1103 = vadd.f32 %v1071, 0.2548296
        %v1104 = vadd.f32 %v1072, 0.2548296
        %v1105 = vadd.f32 %v1073, 0.2548296
        %v1106 = vadd.f32 %v1074, 0.2548296
        %v1107 = vadd.f32 %v1075, 0.2548296
        %v1108 = vadd.f32 %v1076, 0.2548296
        %v1109 = vmul.f32 %v790, %v1077
        %v1110 = vmul.f32 %v792, %v1078
        %v1111 = vmul.f32 %v794, %v1079
        %v1112 = vmul.f32 %v796, %v1080
        %v1113 = vmul.f32 %v798, %v1081
        %v1114 = vmul.f32 %v800, %v1082
        %v1115 = vmul.f32 %v802, %v1083
        %v1116 = vmul.f32 %v804, %v1084
        %v1117 = vmul.f32 %v806, %v1085
        %v1118 = vmul.f32 %v808, %v1086
        %v1119 = vmul.f32 %v810, %v1087
        %v1120 = vmul.f32 %v812, %v1088
        %v1121 = vmul.f32 %v814, %v1089
        %v1122 = vmul.f32 %v816, %v1090
        %v1123 = vmul.f32 %v818, %v1091
        %v1124 = vmul.f32 %v820, %v1092
        %v1125 = vmul.f32 %v822, %v1093
        %v1126 = vmul.f32 %v824, %v1094
        %v1127 = vmul.f32 %v826, %v1095
        %v1128 = vmul.f32 %v828, %v1096
        %v1129 = vmul.f32 %v830, %v1097
        %v1130 = vmul.f32 %v832, %v1098
        %v1131 = vmul.f32 %v834, %v1099
        %v1132 = vmul.f32 %v836, %v1100
        %v1133 = vmul.f32 %v838, %v1101
        %v1134 = vmul.f32 %v840, %v1102
        %v1135 = vmul.f32 %v842, %v1103
        %v1136 = vmul.f32 %v844, %v1104
        %v1137 = vmul.f32 %v846, %v1105
        %v1138 = vmul.f32 %v848, %v1106
        %v1139 = vmul.f32 %v850, %v1107
        %v1140 = vmul.f32 %v852, %v1108
        %v1141 = vsub.f32 0.0, %v693
        %v1142 = vsub.f32 0.0, %v694
        %v1143 = vsub.f32 0.0, %v695
        %v1144 = vsub.f32 0.0, %v696
        %v1145 = vsub.f32 0.0, %v697
        %v1146 = vsub.f32 0.0, %v698
        %v1147 = vsub.f32 0.0, %v699
        %v1148 = vsub.f32 0.0, %v700
        %v1149 = vsub.f32 0.0, %v701
        %v1150 = vsub.f32 0.0, %v702
        %v1151 = vsub.f32 0.0, %v703
        %v1152 = vsub.f32 0.0, %v704
        %v1153 = vsub.f32 0.0, %v705
        %v1154 = vsub.f32 0.0, %v706
        %v1155 = vsub.f32 0.0, %v707
        %v1156 = vsub.f32 0.0, %v708
        %v1157 = vsub.f32 0.0, %v709
        %v1158 = vsub.f32 0.0, %v710
        %v1159 = vsub.f32 0.0, %v711
        %v1160 = vsub.f32 0.0, %v712
        %v1161 = vsub.f32 0.0, %v713
        %v1162 = vsub.f32 0.0, %v714
        %v1163 = vsub.f32 0.0, %v715
        %v1164 = vsub.f32 0.0, %v716
        %v1165 = vsub.f32 0.0, %v717
        %v1166 = vsub.f32 0.0, %v718
        %v1167 = vsub.f32 0.0, %v719
        %v1168 = vsub.f32 0.0, %v720
        %v1169 = vsub.f32 0.0, %v721
        %v1170 = vsub.f32 0.0, %v722
        %v1171 = vsub.f32 0.0, %v723
        %v1172 = vsub.f32 0.0, %v724
        %v1173 = vmul.f32 %v1141, %v693
        %v1174 = vmul.f32 %v1142, %v694
        %v1175 = vmul.f32 %v1143, %v695
        %v1176 = vmul.f32 %v1144, %v696
        %v1177 = vmul.f32 %v1145, %v697
        %v1178 = vmul.f32 %v1146, %v698
        %v1179 = vmul.f32 %v1147, %v699
        %v1180 = vmul.f32 %v1148, %v700
        %v1181 = vmul.f32 %v1149, %v701
        %v1182 = vmul.f32 %v1150, %v702
        %v1183 = vmul.f32 %v1151, %v703
        %v1184 = vmul.f32 %v1152, %v704
        %v1185 = vmul.f32 %v1153, %v705
        %v1186 = vmul.f32 %v1154, %v706
        %v1187 = vmul.f32 %v1155, %v707
        %v1188 = vmul.f32 %v1156, %v708
        %v1189 = vmul.f32 %v1157, %v709
        %v1190 = vmul.f32 %v1158, %v710
        %v1191 = vmul.f32 %v1159, %v711
        %v1192 = vmul.f32 %v1160, %v712
        %v1193 = vmul.f32 %v1161, %v713
        %v1194 = vmul.f32 %v1162, %v714
        %v1195 = vmul.f32 %v1163, %v715
        %v1196 = vmul.f32 %v1164, %v716
        %v1197 = vmul.f32 %v1165, %v717
        %v1198 = vmul.f32 %v1166, %v718
        %v1199 = vmul.f32 %v1167, %v719
        %v1200 = vmul.f32 %v1168, %v720
        %v1201 = vmul.f32 %v1169, %v721
        %v1202 = vmul.f32 %v1170, %v722
        %v1203 = vmul.f32 %v1171, %v723
        %v1204 = vmul.f32 %v1172, %v724
        %v1205 = vmul.f32 %v1173, 1.442695
        %v1206 = vpow.pop %v1205
        %v1207 = vmul.f32 %v1174, 1.442695
        %v1208 = vpow.pop %v1207
        %v1209 = vmul.f32 %v1175, 1.442695
        %v1210 = vpow.pop %v1209
        %v1211 = vmul.f32 %v1176, 1.442695
        %v1212 = vpow.pop %v1211
        %v1213 = vmul.f32 %v1177, 1.442695
        %v1214 = vpow.pop %v1213
        %v1215 = vmul.f32 %v1178, 1.442695
        %v1216 = vpow.pop %v1215
        %v1217 = vmul.f32 %v1179, 1.442695
        %v1218 = vpow.pop %v1217
        %v1219 = vmul.f32 %v1180, 1.442695
        %v1220 = vpow.pop %v1219
        %v1221 = vmul.f32 %v1181, 1.442695
        %v1222 = vpow.pop %v1221
        %v1223 = vmul.f32 %v1182, 1.442695
        %v1224 = vpow.pop %v1223
        %v1225 = vmul.f32 %v1183, 1.442695
        %v1226 = vpow.pop %v1225
        %v1227 = vmul.f32 %v1184, 1.442695
        %v1228 = vpow.pop %v1227
        %v1229 = vmul.f32 %v1185, 1.442695
        %v1230 = vpow.pop %v1229
        %v1231 = vmul.f32 %v1186, 1.442695
        %v1232 = vpow.pop %v1231
        %v1233 = vmul.f32 %v1187, 1.442695
        %v1234 = vpow.pop %v1233
        %v1235 = vmul.f32 %v1188, 1.442695
        %v1236 = vpow.pop %v1235
        %v1237 = vmul.f32 %v1189, 1.442695
        %v1238 = vpow.pop %v1237
        %v1239 = vmul.f32 %v1190, 1.442695
        %v1240 = vpow.pop %v1239
        %v1241 = vmul.f32 %v1191, 1.442695
        %v1242 = vpow.pop %v1241
        %v1243 = vmul.f32 %v1192, 1.442695
        %v1244 = vpow.pop %v1243
        %v1245 = vmul.f32 %v1193, 1.442695
        %v1246 = vpow.pop %v1245
        %v1247 = vmul.f32 %v1194, 1.442695
        %v1248 = vpow.pop %v1247
        %v1249 = vmul.f32 %v1195, 1.442695
        %v1250 = vpow.pop %v1249
        %v1251 = vmul.f32 %v1196, 1.442695
        %v1252 = vpow.pop %v1251
        %v1253 = vmul.f32 %v1197, 1.442695
        %v1254 = vpow.pop %v1253
        %v1255 = vmul.f32 %v1198, 1.442695
        %v1256 = vpow.pop %v1255
        %v1257 = vmul.f32 %v1199, 1.442695
        %v1258 = vpow.pop %v1257
        %v1259 = vmul.f32 %v1200, 1.442695
        %v1260 = vpow.pop %v1259
        %v1261 = vmul.f32 %v1201, 1.442695
        %v1262 = vpow.pop %v1261
        %v1263 = vmul.f32 %v1202, 1.442695
        %v1264 = vpow.pop %v1263
        %v1265 = vmul.f32 %v1203, 1.442695
        %v1266 = vpow.pop %v1265
        %v1267 = vmul.f32 %v1204, 1.442695
        %v1268 = vpow.pop %v1267
        %v1269 = vmul.f32 %v1109, %v1206
        %v1270 = vmul.f32 %v1110, %v1208
        %v1271 = vmul.f32 %v1111, %v1210
        %v1272 = vmul.f32 %v1112, %v1212
        %v1273 = vmul.f32 %v1113, %v1214
        %v1274 = vmul.f32 %v1114, %v1216
        %v1275 = vmul.f32 %v1115, %v1218
        %v1276 = vmul.f32 %v1116, %v1220
        %v1277 = vmul.f32 %v1117, %v1222
        %v1278 = vmul.f32 %v1118, %v1224
        %v1279 = vmul.f32 %v1119, %v1226
        %v1280 = vmul.f32 %v1120, %v1228
        %v1281 = vmul.f32 %v1121, %v1230
        %v1282 = vmul.f32 %v1122, %v1232
        %v1283 = vmul.f32 %v1123, %v1234
        %v1284 = vmul.f32 %v1124, %v1236
        %v1285 = vmul.f32 %v1125, %v1238
        %v1286 = vmul.f32 %v1126, %v1240
        %v1287 = vmul.f32 %v1127, %v1242
        %v1288 = vmul.f32 %v1128, %v1244
        %v1289 = vmul.f32 %v1129, %v1246
        %v1290 = vmul.f32 %v1130, %v1248
        %v1291 = vmul.f32 %v1131, %v1250
        %v1292 = vmul.f32 %v1132, %v1252
        %v1293 = vmul.f32 %v1133, %v1254
        %v1294 = vmul.f32 %v1134, %v1256
        %v1295 = vmul.f32 %v1135, %v1258
        %v1296 = vmul.f32 %v1136, %v1260
        %v1297 = vmul.f32 %v1137, %v1262
        %v1298 = vmul.f32 %v1138, %v1264
        %v1299 = vmul.f32 %v1139, %v1266
        %v1300 = vmul.f32 %v1140, %v1268
        %v1301 = vsub.f32 1.0, %v1269
        %v1302 = vsub.f32 1.0, %v1270
        %v1303 = vsub.f32 1.0, %v1271
        %v1304 = vsub.f32 1.0, %v1272
        %v1305 = vsub.f32 1.0, %v1273
        %v1306 = vsub.f32 1.0, %v1274
        %v1307 = vsub.f32 1.0, %v1275
        %v1308 = vsub.f32 1.0, %v1276
        %v1309 = vsub.f32 1.0, %v1277
        %v1310 = vsub.f32 1.0, %v1278
        %v1311 = vsub.f32 1.0, %v1279
        %v1312 = vsub.f32 1.0, %v1280
        %v1313 = vsub.f32 1.0, %v1281
        %v1314 = vsub.f32 1.0, %v1282
        %v1315 = vsub.f32 1.0, %v1283
        %v1316 = vsub.f32 1.0, %v1284
        %v1317 = vsub.f32 1.0, %v1285
        %v1318 = vsub.f32 1.0, %v1286
        %v1319 = vsub.f32 1.0, %v1287
        %v1320 = vsub.f32 1.0, %v1288
        %v1321 = vsub.f32 1.0, %v1289
        %v1322 = vsub.f32 1.0, %v1290
        %v1323 = vsub.f32 1.0, %v1291
        %v1324 = vsub.f32 1.0, %v1292
        %v1325 = vsub.f32 1.0, %v1293
        %v1326 = vsub.f32 1.0, %v1294
        %v1327 = vsub.f32 1.0, %v1295
        %v1328 = vsub.f32 1.0, %v1296
        %v1329 = vsub.f32 1.0, %v1297
        %v1330 = vsub.f32 1.0, %v1298
        %v1331 = vsub.f32 1.0, %v1299
        %v1332 = vsub.f32 1.0, %v1300
        %vm1333 = vcmp.ge.f32.partialorder %v661, 0.0
        %vm1334 = vcmp.ge.f32.partialorder %v662, 0.0
        %vm1335 = vcmp.ge.f32.partialorder %v663, 0.0
        %vm1336 = vcmp.ge.f32.partialorder %v664, 0.0
        %vm1337 = vcmp.ge.f32.partialorder %v665, 0.0
        %vm1338 = vcmp.ge.f32.partialorder %v666, 0.0
        %vm1339 = vcmp.ge.f32.partialorder %v667, 0.0
        %vm1340 = vcmp.ge.f32.partialorder %v668, 0.0
        %vm1341 = vcmp.ge.f32.partialorder %v669, 0.0
        %vm1342 = vcmp.ge.f32.partialorder %v670, 0.0
        %vm1343 = vcmp.ge.f32.partialorder %v671, 0.0
        %vm1344 = vcmp.ge.f32.partialorder %v672, 0.0
        %vm1345 = vcmp.ge.f32.partialorder %v673, 0.0
        %vm1346 = vcmp.ge.f32.partialorder %v674, 0.0
        %vm1347 = vcmp.ge.f32.partialorder %v675, 0.0
        %vm1348 = vcmp.ge.f32.partialorder %v676, 0.0
        %vm1349 = vcmp.ge.f32.partialorder %v677, 0.0
        %vm1350 = vcmp.ge.f32.partialorder %v678, 0.0
        %vm1351 = vcmp.ge.f32.partialorder %v679, 0.0
        %vm1352 = vcmp.ge.f32.partialorder %v680, 0.0
        %vm1353 = vcmp.ge.f32.partialorder %v681, 0.0
        %vm1354 = vcmp.ge.f32.partialorder %v682, 0.0
        %vm1355 = vcmp.ge.f32.partialorder %v683, 0.0
        %vm1356 = vcmp.ge.f32.partialorder %v684, 0.0
        %vm1357 = vcmp.ge.f32.partialorder %v685, 0.0
        %vm1358 = vcmp.ge.f32.partialorder %v686, 0.0
        %vm1359 = vcmp.ge.f32.partialorder %v687, 0.0
        %vm1360 = vcmp.ge.f32.partialorder %v688, 0.0
        %vm1361 = vcmp.ge.f32.partialorder %v689, 0.0
        %vm1362 = vcmp.ge.f32.partialorder %v690, 0.0
        %vm1363 = vcmp.ge.f32.partialorder %v691, 0.0
        %vm1364 = vcmp.ge.f32.partialorder %v692, 0.0
        %v1365 = vsub.f32 0.0, %v1301
        %v1366 = vsub.f32 0.0, %v1302
        %v1367 = vsub.f32 0.0, %v1303
        %v1368 = vsub.f32 0.0, %v1304
        %v1369 = vsub.f32 0.0, %v1305
        %v1370 = vsub.f32 0.0, %v1306
        %v1371 = vsub.f32 0.0, %v1307
        %v1372 = vsub.f32 0.0, %v1308
        %v1373 = vsub.f32 0.0, %v1309
        %v1374 = vsub.f32 0.0, %v1310
        %v1375 = vsub.f32 0.0, %v1311
        %v1376 = vsub.f32 0.0, %v1312
        %v1377 = vsub.f32 0.0, %v1313
        %v1378 = vsub.f32 0.0, %v1314
        %v1379 = vsub.f32 0.0, %v1315
        %v1380 = vsub.f32 0.0, %v1316
        %v1381 = vsub.f32 0.0, %v1317
        %v1382 = vsub.f32 0.0, %v1318
        %v1383 = vsub.f32 0.0, %v1319
        %v1384 = vsub.f32 0.0, %v1320
        %v1385 = vsub.f32 0.0, %v1321
        %v1386 = vsub.f32 0.0, %v1322
        %v1387 = vsub.f32 0.0, %v1323
        %v1388 = vsub.f32 0.0, %v1324
        %v1389 = vsub.f32 0.0, %v1325
        %v1390 = vsub.f32 0.0, %v1326
        %v1391 = vsub.f32 0.0, %v1327
        %v1392 = vsub.f32 0.0, %v1328
        %v1393 = vsub.f32 0.0, %v1329
        %v1394 = vsub.f32 0.0, %v1330
        %v1395 = vsub.f32 0.0, %v1331
        %v1396 = vsub.f32 0.0, %v1332
        %v1397 = vsel %vm1333, %v1301, %v1365
        %v1398 = vsel %vm1334, %v1302, %v1366
        %v1399 = vsel %vm1335, %v1303, %v1367
        %v1400 = vsel %vm1336, %v1304, %v1368
        %v1401 = vsel %vm1337, %v1305, %v1369
        %v1402 = vsel %vm1338, %v1306, %v1370
        %v1403 = vsel %vm1339, %v1307, %v1371
        %v1404 = vsel %vm1340, %v1308, %v1372
        %v1405 = vsel %vm1341, %v1309, %v1373
        %v1406 = vsel %vm1342, %v1310, %v1374
        %v1407 = vsel %vm1343, %v1311, %v1375
        %v1408 = vsel %vm1344, %v1312, %v1376
        %v1409 = vsel %vm1345, %v1313, %v1377
        %v1410 = vsel %vm1346, %v1314, %v1378
        %v1411 = vsel %vm1347, %v1315, %v1379
        %v1412 = vsel %vm1348, %v1316, %v1380
        %v1413 = vsel %vm1349, %v1317, %v1381
        %v1414 = vsel %vm1350, %v1318, %v1382
        %v1415 = vsel %vm1351, %v1319, %v1383
        %v1416 = vsel %vm1352, %v1320, %v1384
        %v1417 = vsel %vm1353, %v1321, %v1385
        %v1418 = vsel %vm1354, %v1322, %v1386
        %v1419 = vsel %vm1355, %v1323, %v1387
        %v1420 = vsel %vm1356, %v1324, %v1388
        %v1421 = vsel %vm1357, %v1325, %v1389
        %v1422 = vsel %vm1358, %v1326, %v1390
        %v1423 = vsel %vm1359, %v1327, %v1391
        %v1424 = vsel %vm1360, %v1328, %v1392
        %v1425 = vsel %vm1361, %v1329, %v1393
        %v1426 = vsel %vm1362, %v1330, %v1394
        %v1427 = vsel %vm1363, %v1331, %v1395
        %v1428 = vsel %vm1364, %v1332, %v1396
        %v1429 = vadd.f32 %v1397, 1.0
        %v1430 = vadd.f32 %v1398, 1.0
        %v1431 = vadd.f32 %v1399, 1.0
        %v1432 = vadd.f32 %v1400, 1.0
        %v1433 = vadd.f32 %v1401, 1.0
        %v1434 = vadd.f32 %v1402, 1.0
        %v1435 = vadd.f32 %v1403, 1.0
        %v1436 = vadd.f32 %v1404, 1.0
        %v1437 = vadd.f32 %v1405, 1.0
        %v1438 = vadd.f32 %v1406, 1.0
        %v1439 = vadd.f32 %v1407, 1.0
        %v1440 = vadd.f32 %v1408, 1.0
        %v1441 = vadd.f32 %v1409, 1.0
        %v1442 = vadd.f32 %v1410, 1.0
        %v1443 = vadd.f32 %v1411, 1.0
        %v1444 = vadd.f32 %v1412, 1.0
        %v1445 = vadd.f32 %v1413, 1.0
        %v1446 = vadd.f32 %v1414, 1.0
        %v1447 = vadd.f32 %v1415, 1.0
        %v1448 = vadd.f32 %v1416, 1.0
        %v1449 = vadd.f32 %v1417, 1.0
        %v1450 = vadd.f32 %v1418, 1.0
        %v1451 = vadd.f32 %v1419, 1.0
        %v1452 = vadd.f32 %v1420, 1.0
        %v1453 = vadd.f32 %v1421, 1.0
        %v1454 = vadd.f32 %v1422, 1.0
        %v1455 = vadd.f32 %v1423, 1.0
        %v1456 = vadd.f32 %v1424, 1.0
        %v1457 = vadd.f32 %v1425, 1.0
        %v1458 = vadd.f32 %v1426, 1.0
        %v1459 = vadd.f32 %v1427, 1.0
        %v1460 = vadd.f32 %v1428, 1.0
        %v1461 = vmul.f32 %v629, %v1429
        %v1462 = vmul.f32 %v630, %v1430
        %v1463 = vmul.f32 %v631, %v1431
        %v1464 = vmul.f32 %v632, %v1432
        %v1465 = vmul.f32 %v633, %v1433
        %v1466 = vmul.f32 %v634, %v1434
        %v1467 = vmul.f32 %v635, %v1435
        %v1468 = vmul.f32 %v636, %v1436
        %v1469 = vmul.f32 %v637, %v1437
        %v1470 = vmul.f32 %v638, %v1438
        %v1471 = vmul.f32 %v639, %v1439
        %v1472 = vmul.f32 %v640, %v1440
        %v1473 = vmul.f32 %v641, %v1441
        %v1474 = vmul.f32 %v642, %v1442
        %v1475 = vmul.f32 %v643, %v1443
        %v1476 = vmul.f32 %v644, %v1444
        %v1477 = vmul.f32 %v645, %v1445
        %v1478 = vmul.f32 %v646, %v1446
        %v1479 = vmul.f32 %v647, %v1447
        %v1480 = vmul.f32 %v648, %v1448
        %v1481 = vmul.f32 %v649, %v1449
        %v1482 = vmul.f32 %v650, %v1450
        %v1483 = vmul.f32 %v651, %v1451
        %v1484 = vmul.f32 %v652, %v1452
        %v1485 = vmul.f32 %v653, %v1453
        %v1486 = vmul.f32 %v654, %v1454
        %v1487 = vmul.f32 %v655, %v1455
        %v1488 = vmul.f32 %v656, %v1456
        %v1489 = vmul.f32 %v657, %v1457
        %v1490 = vmul.f32 %v658, %v1458
        %v1491 = vmul.f32 %v659, %v1459
        %v1492 = vmul.f32 %v660, %v1460
        %v1493 = vpack.c.bf16 %v1463, %v1461
        %v1494 = vpack.c.bf16 %v1464, %v1462
        %v1495 = vpack.c.bf16 %v1467, %v1465
        %v1496 = vpack.c.bf16 %v1468, %v1466
        %v1497 = vpack.c.bf16 %v1471, %v1469
        %v1498 = vpack.c.bf16 %v1472, %v1470
        %v1499 = vpack.c.bf16 %v1475, %v1473
        %v1500 = vpack.c.bf16 %v1476, %v1474
        %v1501 = vpack.c.bf16 %v1479, %v1477
        %v1502 = vpack.c.bf16 %v1480, %v1478
        %v1503 = vpack.c.bf16 %v1483, %v1481
        %v1504 = vpack.c.bf16 %v1484, %v1482
        %v1505 = vpack.c.bf16 %v1487, %v1485
        %v1506 = vpack.c.bf16 %v1488, %v1486
        %v1507 = vpack.c.bf16 %v1491, %v1489
        %v1508 = vpack.c.bf16 %v1492, %v1490
        %v1509 = vld [vmem:[#allocation7] sm:$0xff]
        %v1510 = vld [vmem:[#allocation7 + $0x8] sm:$0xff]
        %v1511 = vld [vmem:[#allocation7 + $0x10] sm:$0xff]
        %v1512 = vld [vmem:[#allocation7 + $0x18] sm:$0xff]
        %v1513 = vld [vmem:[#allocation7 + $0x20] sm:$0xff]
        %v1514 = vld [vmem:[#allocation7 + $0x28] sm:$0xff]
        %v1515 = vld [vmem:[#allocation7 + $0x30] sm:$0xff]
        %v1516 = vld [vmem:[#allocation7 + $0x38] sm:$0xff]
        %v1517 = vld [vmem:[#allocation7 + $0x40] sm:$0xff]
        %v1518 = vld [vmem:[#allocation7 + $0x48] sm:$0xff]
        %v1519 = vld [vmem:[#allocation7 + $0x50] sm:$0xff]
        %v1520 = vld [vmem:[#allocation7 + $0x58] sm:$0xff]
        %v1521 = vld [vmem:[#allocation7 + $0x60] sm:$0xff]
        %v1522 = vld [vmem:[#allocation7 + $0x68] sm:$0xff]
        %v1523 = vld [vmem:[#allocation7 + $0x70] sm:$0xff]
        %v1524 = vld [vmem:[#allocation7 + $0x78] sm:$0xff]
        %v1525 = vld [vmem:[#allocation7 + $0x80] sm:$0xff]
        %v1526 = vld [vmem:[#allocation7 + $0x88] sm:$0xff]
        %v1527 = vld [vmem:[#allocation7 + $0x90] sm:$0xff]
        %v1528 = vld [vmem:[#allocation7 + $0x98] sm:$0xff]
        %v1529 = vld [vmem:[#allocation7 + $0xa0] sm:$0xff]
        %v1530 = vld [vmem:[#allocation7 + $0xa8] sm:$0xff]
        %v1531 = vld [vmem:[#allocation7 + $0xb0] sm:$0xff]
        %v1532 = vld [vmem:[#allocation7 + $0xb8] sm:$0xff]
        %v1533 = vld [vmem:[#allocation7 + $0xc0] sm:$0xff]
        %v1534 = vld [vmem:[#allocation7 + $0xc8] sm:$0xff]
        %v1535 = vld [vmem:[#allocation7 + $0xd0] sm:$0xff]
        %v1536 = vld [vmem:[#allocation7 + $0xd8] sm:$0xff]
        %v1537 = vld [vmem:[#allocation7 + $0xe0] sm:$0xff]
        %v1538 = vld [vmem:[#allocation7 + $0xe8] sm:$0xff]
        %v1539 = vld [vmem:[#allocation7 + $0xf0] sm:$0xff]
        %v1540 = vld [vmem:[#allocation7 + $0xf8] sm:$0xff]
        %v1541 = vld [vmem:[%s4] sm:$0x3]
        %v1543 = vlaneseq
        %v1544 = vshrl.u32 %v1543, 7
        %v1545 = vsub.s32 0, %v1544
        %v1546 = vrot.slane %v1541, %v1545
        %v1547 = vlaneseq
        %v1548 = vshrl.u32 %v1547, 7
        %v1549 = vsub.s32 1, %v1548
        %v1550 = vrot.slane %v1541, %v1549
        %v1585 = vunpack.c.l.b16 %v1509
        %v1586 = vunpack.c.h.b16 %v1509
        %v1587 = vunpack.c.l.b16 %v1510
        %v1588 = vunpack.c.h.b16 %v1510
        %v1589 = vunpack.c.l.b16 %v1511
        %v1590 = vunpack.c.h.b16 %v1511
        %v1591 = vunpack.c.l.b16 %v1512
        %v1592 = vunpack.c.h.b16 %v1512
        %v1593 = vunpack.c.l.b16 %v1513
        %v1594 = vunpack.c.h.b16 %v1513
        %v1595 = vunpack.c.l.b16 %v1514
        %v1596 = vunpack.c.h.b16 %v1514
        %v1597 = vunpack.c.l.b16 %v1515
        %v1598 = vunpack.c.h.b16 %v1515
        %v1599 = vunpack.c.l.b16 %v1516
        %v1600 = vunpack.c.h.b16 %v1516
        %v1601 = vunpack.c.l.b16 %v1517
        %v1602 = vunpack.c.h.b16 %v1517
        %v1603 = vunpack.c.l.b16 %v1518
        %v1604 = vunpack.c.h.b16 %v1518
        %v1605 = vunpack.c.l.b16 %v1519
        %v1606 = vunpack.c.h.b16 %v1519
        %v1607 = vunpack.c.l.b16 %v1520
        %v1608 = vunpack.c.h.b16 %v1520
        %v1609 = vunpack.c.l.b16 %v1521
        %v1610 = vunpack.c.h.b16 %v1521
        %v1611 = vunpack.c.l.b16 %v1522
        %v1612 = vunpack.c.h.b16 %v1522
        %v1613 = vunpack.c.l.b16 %v1523
        %v1614 = vunpack.c.h.b16 %v1523
        %v1615 = vunpack.c.l.b16 %v1524
        %v1616 = vunpack.c.h.b16 %v1524
        %v1617 = vunpack.c.l.b16 %v1525
        %v1618 = vunpack.c.h.b16 %v1525
        %v1619 = vunpack.c.l.b16 %v1526
        %v1620 = vunpack.c.h.b16 %v1526
        %v1621 = vunpack.c.l.b16 %v1527
        %v1622 = vunpack.c.h.b16 %v1527
        %v1623 = vunpack.c.l.b16 %v1528
        %v1624 = vunpack.c.h.b16 %v1528
        %v1625 = vunpack.c.l.b16 %v1529
        %v1626 = vunpack.c.h.b16 %v1529
        %v1627 = vunpack.c.l.b16 %v1530
        %v1628 = vunpack.c.h.b16 %v1530
        %v1629 = vunpack.c.l.b16 %v1531
        %v1630 = vunpack.c.h.b16 %v1531
        %v1631 = vunpack.c.l.b16 %v1532
        %v1632 = vunpack.c.h.b16 %v1532
        %v1633 = vunpack.c.l.b16 %v1533
        %v1634 = vunpack.c.h.b16 %v1533
        %v1635 = vunpack.c.l.b16 %v1534
        %v1636 = vunpack.c.h.b16 %v1534
        %v1637 = vunpack.c.l.b16 %v1535
        %v1638 = vunpack.c.h.b16 %v1535
        %v1639 = vunpack.c.l.b16 %v1536
        %v1640 = vunpack.c.h.b16 %v1536
        %v1641 = vunpack.c.l.b16 %v1537
        %v1642 = vunpack.c.h.b16 %v1537
        %v1643 = vunpack.c.l.b16 %v1538
        %v1644 = vunpack.c.h.b16 %v1538
        %v1645 = vunpack.c.l.b16 %v1539
        %v1646 = vunpack.c.h.b16 %v1539
        %v1647 = vunpack.c.l.b16 %v1540
        %v1648 = vunpack.c.h.b16 %v1540
        %v1649 = vpack.c.b16 %v1587, %v1585
        %v1650 = vpack.c.b16 %v1588, %v1586
        %v1651 = vpack.c.b16 %v1591, %v1589
        %v1652 = vpack.c.b16 %v1592, %v1590
        %v1653 = vpack.c.b16 %v1595, %v1593
        %v1654 = vpack.c.b16 %v1596, %v1594
        %v1655 = vpack.c.b16 %v1599, %v1597
        %v1656 = vpack.c.b16 %v1600, %v1598
        %v1657 = vpack.c.b16 %v1603, %v1601
        %v1658 = vpack.c.b16 %v1604, %v1602
        %v1659 = vpack.c.b16 %v1607, %v1605
        %v1660 = vpack.c.b16 %v1608, %v1606
        %v1661 = vpack.c.b16 %v1611, %v1609
        %v1662 = vpack.c.b16 %v1612, %v1610
        %v1663 = vpack.c.b16 %v1615, %v1613
        %v1664 = vpack.c.b16 %v1616, %v1614
        %v1665 = vpack.c.b16 %v1619, %v1617
        %v1666 = vpack.c.b16 %v1620, %v1618
        %v1667 = vpack.c.b16 %v1623, %v1621
        %v1668 = vpack.c.b16 %v1624, %v1622
        %v1669 = vpack.c.b16 %v1627, %v1625
        %v1670 = vpack.c.b16 %v1628, %v1626
        %v1671 = vpack.c.b16 %v1631, %v1629
        %v1672 = vpack.c.b16 %v1632, %v1630
        %v1673 = vpack.c.b16 %v1635, %v1633
        %v1674 = vpack.c.b16 %v1636, %v1634
        %v1675 = vpack.c.b16 %v1639, %v1637
        %v1676 = vpack.c.b16 %v1640, %v1638
        %v1677 = vpack.c.b16 %v1643, %v1641
        %v1678 = vpack.c.b16 %v1644, %v1642
        %v1679 = vpack.c.b16 %v1647, %v1645
        %v1680 = vpack.c.b16 %v1648, %v1646
        %1713 = vmatprep.subr.bf16.mxu0 %v1650
        %1714 = vmatpush1.bf16.msra.mxu0 %v1649
        %1715 = vmatprep.subr.bf16.mxu0 %v1652
        %1716 = vmatpush1.bf16.msra.mxu0 %v1651
        %1717 = vmatprep.subr.bf16.mxu0 %v1654
        %1718 = vmatpush1.bf16.msra.mxu0 %v1653
        %1719 = vmatprep.subr.bf16.mxu0 %v1656
        %1720 = vmatpush1.bf16.msra.mxu0 %v1655
        %1721 = vmatprep.subr.bf16.mxu0 %v1658
        %1722 = vmatpush1.bf16.msra.mxu0 %v1657
        %1723 = vmatprep.subr.bf16.mxu0 %v1660
        %1724 = vmatpush1.bf16.msra.mxu0 %v1659
        %1725 = vmatprep.subr.bf16.mxu0 %v1662
        %1726 = vmatpush1.bf16.msra.mxu0 %v1661
        %1727 = vmatprep.subr.bf16.mxu0 %v1664
        %1728 = vmatpush1.bf16.msra.mxu0 %v1663
        %1729 = vmatprep.subr.bf16.mxu0 %v1666
        %1730 = vmatpush1.bf16.msra.mxu0 %v1665
        %1731 = vmatprep.subr.bf16.mxu0 %v1668
        %1732 = vmatpush1.bf16.msra.mxu0 %v1667
        %1733 = vmatprep.subr.bf16.mxu0 %v1670
        %1734 = vmatpush1.bf16.msra.mxu0 %v1669
        %1735 = vmatprep.subr.bf16.mxu0 %v1672
        %1736 = vmatpush1.bf16.msra.mxu0 %v1671
        %1737 = vmatprep.subr.bf16.mxu0 %v1674
        %1738 = vmatpush1.bf16.msra.mxu0 %v1673
        %1739 = vmatprep.subr.bf16.mxu0 %v1676
        %1740 = vmatpush1.bf16.msra.mxu0 %v1675
        %1741 = vmatprep.subr.bf16.mxu0 %v1678
        %1742 = vmatpush1.bf16.msra.mxu0 %v1677
        %1743 = vmatprep.subr.bf16.mxu0 %v1680
        %1744 = vmatpush1.bf16.msra.mxu0 %v1679
        %1745 = vmatprep.mubr.bf16.mxu0 %v1494
        %1746 = vmatmul.mubr.bf16.gmra.mrb[0].mxu0 %v1493
        %v1747 = vpop.f32.mrb[0].mxu0
        %v1748 = vadd.f32 %v1546, %v1747
        %v1749 = vpop.f32.mrb[0].mxu0
        %v1750 = vadd.f32 %v1550, %v1749
        %v1751 = vpop.f32.mrb[0].mxu0
        %v1752 = vadd.f32 %v1546, %v1751
        %v1753 = vpop.f32.mrb[0].mxu0
        %v1754 = vadd.f32 %v1550, %v1753
        %1755 = vmatprep.mubr.bf16.mxu0 %v1496
        %1756 = vmatmul.mubr.bf16.gmra.mrb[0].mxu0 %v1495
        %v1757 = vpop.f32.mrb[0].mxu0
        %v1758 = vadd.f32 %v1546, %v1757
        %v1759 = vpop.f32.mrb[0].mxu0
        %v1760 = vadd.f32 %v1550, %v1759
        %v1761 = vpop.f32.mrb[0].mxu0
        %v1762 = vadd.f32 %v1546, %v1761
        %v1763 = vpop.f32.mrb[0].mxu0
        %v1764 = vadd.f32 %v1550, %v1763
        %1765 = vmatprep.mubr.bf16.mxu0 %v1498
        %1766 = vmatmul.mubr.bf16.gmra.mrb[0].mxu0 %v1497
        %v1767 = vpop.f32.mrb[0].mxu0
        %v1768 = vadd.f32 %v1546, %v1767
        %v1769 = vpop.f32.mrb[0].mxu0
        %v1770 = vadd.f32 %v1550, %v1769
        %v1771 = vpop.f32.mrb[0].mxu0
        %v1772 = vadd.f32 %v1546, %v1771
        %v1773 = vpop.f32.mrb[0].mxu0
        %v1774 = vadd.f32 %v1550, %v1773
        %1775 = vmatprep.mubr.bf16.mxu0 %v1500
        %1776 = vmatmul.mubr.bf16.gmra.mrb[0].mxu0 %v1499
        %v1777 = vpop.f32.mrb[0].mxu0
        %v1778 = vadd.f32 %v1546, %v1777
        %v1779 = vpop.f32.mrb[0].mxu0
        %v1780 = vadd.f32 %v1550, %v1779
        %v1781 = vpop.f32.mrb[0].mxu0
        %v1782 = vadd.f32 %v1546, %v1781
        %v1783 = vpop.f32.mrb[0].mxu0
        %v1784 = vadd.f32 %v1550, %v1783
        %1785 = vmatprep.mubr.bf16.mxu0 %v1502
        %1786 = vmatmul.mubr.bf16.gmra.mrb[0].mxu0 %v1501
        %v1787 = vpop.f32.mrb[0].mxu0
        %v1788 = vadd.f32 %v1546, %v1787
        %v1789 = vpop.f32.mrb[0].mxu0
        %v1790 = vadd.f32 %v1550, %v1789
        %v1791 = vpop.f32.mrb[0].mxu0
        %v1792 = vadd.f32 %v1546, %v1791
        %v1793 = vpop.f32.mrb[0].mxu0
        %v1794 = vadd.f32 %v1550, %v1793
        %1795 = vmatprep.mubr.bf16.mxu0 %v1504
        %1796 = vmatmul.mubr.bf16.gmra.mrb[0].mxu0 %v1503
        %v1797 = vpop.f32.mrb[0].mxu0
        %v1798 = vadd.f32 %v1546, %v1797
        %v1799 = vpop.f32.mrb[0].mxu0
        %v1800 = vadd.f32 %v1550, %v1799
        %v1801 = vpop.f32.mrb[0].mxu0
        %v1802 = vadd.f32 %v1546, %v1801
        %v1803 = vpop.f32.mrb[0].mxu0
        %v1804 = vadd.f32 %v1550, %v1803
        %1805 = vmatprep.mubr.bf16.mxu0 %v1506
        %1806 = vmatmul.mubr.bf16.gmra.mrb[0].mxu0 %v1505
        %v1807 = vpop.f32.mrb[0].mxu0
        %v1808 = vadd.f32 %v1546, %v1807
        %v1809 = vpop.f32.mrb[0].mxu0
        %v1810 = vadd.f32 %v1550, %v1809
        %v1811 = vpop.f32.mrb[0].mxu0
        %v1812 = vadd.f32 %v1546, %v1811
        %v1813 = vpop.f32.mrb[0].mxu0
        %v1814 = vadd.f32 %v1550, %v1813
        %1815 = vmatprep.mubr.bf16.mxu0 %v1508
        %1816 = vmatmul.mubr.bf16.gmra.mrb[0].mxu0 %v1507
        %v1817 = vpop.f32.mrb[0].mxu0
        %v1818 = vadd.f32 %v1546, %v1817
        %v1819 = vpop.f32.mrb[0].mxu0
        %v1820 = vadd.f32 %v1550, %v1819
        %v1821 = vpop.f32.mrb[0].mxu0
        %v1822 = vadd.f32 %v1546, %v1821
        %v1823 = vpop.f32.mrb[0].mxu0
        %v1824 = vadd.f32 %v1550, %v1823
        %1825 = vdwg.mxu0
        %v1826 = vmul.f32 %v1748, 0.5
        %v1827 = vmul.f32 %v1750, 0.5
        %v1828 = vmul.f32 %v1752, 0.5
        %v1829 = vmul.f32 %v1754, 0.5
        %v1830 = vmul.f32 %v1758, 0.5
        %v1831 = vmul.f32 %v1760, 0.5
        %v1832 = vmul.f32 %v1762, 0.5
        %v1833 = vmul.f32 %v1764, 0.5
        %v1834 = vmul.f32 %v1768, 0.5
        %v1835 = vmul.f32 %v1770, 0.5
        %v1836 = vmul.f32 %v1772, 0.5
        %v1837 = vmul.f32 %v1774, 0.5
        %v1838 = vmul.f32 %v1778, 0.5
        %v1839 = vmul.f32 %v1780, 0.5
        %v1840 = vmul.f32 %v1782, 0.5
        %v1841 = vmul.f32 %v1784, 0.5
        %v1842 = vmul.f32 %v1788, 0.5
        %v1843 = vmul.f32 %v1790, 0.5
        %v1844 = vmul.f32 %v1792, 0.5
        %v1845 = vmul.f32 %v1794, 0.5
        %v1846 = vmul.f32 %v1798, 0.5
        %v1847 = vmul.f32 %v1800, 0.5
        %v1848 = vmul.f32 %v1802, 0.5
        %v1849 = vmul.f32 %v1804, 0.5
        %v1850 = vmul.f32 %v1808, 0.5
        %v1851 = vmul.f32 %v1810, 0.5
        %v1852 = vmul.f32 %v1812, 0.5
        %v1853 = vmul.f32 %v1814, 0.5
        %v1854 = vmul.f32 %v1818, 0.5
        %v1855 = vmul.f32 %v1820, 0.5
        %v1856 = vmul.f32 %v1822, 0.5
        %v1857 = vmul.f32 %v1824, 0.5
        %v1858 = vmul.f32 %v1748, 0.70710677
        %v1859 = vmul.f32 %v1750, 0.70710677
        %v1860 = vmul.f32 %v1752, 0.70710677
        %v1861 = vmul.f32 %v1754, 0.70710677
        %v1862 = vmul.f32 %v1758, 0.70710677
        %v1863 = vmul.f32 %v1760, 0.70710677
        %v1864 = vmul.f32 %v1762, 0.70710677
        %v1865 = vmul.f32 %v1764, 0.70710677
        %v1866 = vmul.f32 %v1768, 0.70710677
        %v1867 = vmul.f32 %v1770, 0.70710677
        %v1868 = vmul.f32 %v1772, 0.70710677
        %v1869 = vmul.f32 %v1774, 0.70710677
        %v1870 = vmul.f32 %v1778, 0.70710677
        %v1871 = vmul.f32 %v1780, 0.70710677
        %v1872 = vmul.f32 %v1782, 0.70710677
        %v1873 = vmul.f32 %v1784, 0.70710677
        %v1874 = vmul.f32 %v1788, 0.70710677
        %v1875 = vmul.f32 %v1790, 0.70710677
        %v1876 = vmul.f32 %v1792, 0.70710677
        %v1877 = vmul.f32 %v1794, 0.70710677
        %v1878 = vmul.f32 %v1798, 0.70710677
        %v1879 = vmul.f32 %v1800, 0.70710677
        %v1880 = vmul.f32 %v1802, 0.70710677
        %v1881 = vmul.f32 %v1804, 0.70710677
        %v1882 = vmul.f32 %v1808, 0.70710677
        %v1883 = vmul.f32 %v1810, 0.70710677
        %v1884 = vmul.f32 %v1812, 0.70710677
        %v1885 = vmul.f32 %v1814, 0.70710677
        %v1886 = vmul.f32 %v1818, 0.70710677
        %v1887 = vmul.f32 %v1820, 0.70710677
        %v1888 = vmul.f32 %v1822, 0.70710677
        %v1889 = vmul.f32 %v1824, 0.70710677
        %v1890 = vand.u32 2147483647, %v1858
        %v1891 = vand.u32 2147483647, %v1859
        %v1892 = vand.u32 2147483647, %v1860
        %v1893 = vand.u32 2147483647, %v1861
        %v1894 = vand.u32 2147483647, %v1862
        %v1895 = vand.u32 2147483647, %v1863
        %v1896 = vand.u32 2147483647, %v1864
        %v1897 = vand.u32 2147483647, %v1865
        %v1898 = vand.u32 2147483647, %v1866
        %v1899 = vand.u32 2147483647, %v1867
        %v1900 = vand.u32 2147483647, %v1868
        %v1901 = vand.u32 2147483647, %v1869
        %v1902 = vand.u32 2147483647, %v1870
        %v1903 = vand.u32 2147483647, %v1871
        %v1904 = vand.u32 2147483647, %v1872
        %v1905 = vand.u32 2147483647, %v1873
        %v1906 = vand.u32 2147483647, %v1874
        %v1907 = vand.u32 2147483647, %v1875
        %v1908 = vand.u32 2147483647, %v1876
        %v1909 = vand.u32 2147483647, %v1877
        %v1910 = vand.u32 2147483647, %v1878
        %v1911 = vand.u32 2147483647, %v1879
        %v1912 = vand.u32 2147483647, %v1880
        %v1913 = vand.u32 2147483647, %v1881
        %v1914 = vand.u32 2147483647, %v1882
        %v1915 = vand.u32 2147483647, %v1883
        %v1916 = vand.u32 2147483647, %v1884
        %v1917 = vand.u32 2147483647, %v1885
        %v1918 = vand.u32 2147483647, %v1886
        %v1919 = vand.u32 2147483647, %v1887
        %v1920 = vand.u32 2147483647, %v1888
        %v1921 = vand.u32 2147483647, %v1889
        %v1922 = vmul.f32 %v1890, 0.3275911
        %v1923 = vmul.f32 %v1891, 0.3275911
        %v1924 = vmul.f32 %v1892, 0.3275911
        %v1925 = vmul.f32 %v1893, 0.3275911
        %v1926 = vmul.f32 %v1894, 0.3275911
        %v1927 = vmul.f32 %v1895, 0.3275911
        %v1928 = vmul.f32 %v1896, 0.3275911
        %v1929 = vmul.f32 %v1897, 0.3275911
        %v1930 = vmul.f32 %v1898, 0.3275911
        %v1931 = vmul.f32 %v1899, 0.3275911
        %v1932 = vmul.f32 %v1900, 0.3275911
        %v1933 = vmul.f32 %v1901, 0.3275911
        %v1934 = vmul.f32 %v1902, 0.3275911
        %v1935 = vmul.f32 %v1903, 0.3275911
        %v1936 = vmul.f32 %v1904, 0.3275911
        %v1937 = vmul.f32 %v1905, 0.3275911
        %v1938 = vmul.f32 %v1906, 0.3275911
        %v1939 = vmul.f32 %v1907, 0.3275911
        %v1940 = vmul.f32 %v1908, 0.3275911
        %v1941 = vmul.f32 %v1909, 0.3275911
        %v1942 = vmul.f32 %v1910, 0.3275911
        %v1943 = vmul.f32 %v1911, 0.3275911
        %v1944 = vmul.f32 %v1912, 0.3275911
        %v1945 = vmul.f32 %v1913, 0.3275911
        %v1946 = vmul.f32 %v1914, 0.3275911
        %v1947 = vmul.f32 %v1915, 0.3275911
        %v1948 = vmul.f32 %v1916, 0.3275911
        %v1949 = vmul.f32 %v1917, 0.3275911
        %v1950 = vmul.f32 %v1918, 0.3275911
        %v1951 = vmul.f32 %v1919, 0.3275911
        %v1952 = vmul.f32 %v1920, 0.3275911
        %v1953 = vmul.f32 %v1921, 0.3275911
        %v1954 = vadd.f32 %v1922, 1.0
        %v1955 = vadd.f32 %v1923, 1.0
        %v1956 = vadd.f32 %v1924, 1.0
        %v1957 = vadd.f32 %v1925, 1.0
        %v1958 = vadd.f32 %v1926, 1.0
        %v1959 = vadd.f32 %v1927, 1.0
        %v1960 = vadd.f32 %v1928, 1.0
        %v1961 = vadd.f32 %v1929, 1.0
        %v1962 = vadd.f32 %v1930, 1.0
        %v1963 = vadd.f32 %v1931, 1.0
        %v1964 = vadd.f32 %v1932, 1.0
        %v1965 = vadd.f32 %v1933, 1.0
        %v1966 = vadd.f32 %v1934, 1.0
        %v1967 = vadd.f32 %v1935, 1.0
        %v1968 = vadd.f32 %v1936, 1.0
        %v1969 = vadd.f32 %v1937, 1.0
        %v1970 = vadd.f32 %v1938, 1.0
        %v1971 = vadd.f32 %v1939, 1.0
        %v1972 = vadd.f32 %v1940, 1.0
        %v1973 = vadd.f32 %v1941, 1.0
        %v1974 = vadd.f32 %v1942, 1.0
        %v1975 = vadd.f32 %v1943, 1.0
        %v1976 = vadd.f32 %v1944, 1.0
        %v1977 = vadd.f32 %v1945, 1.0
        %v1978 = vadd.f32 %v1946, 1.0
        %v1979 = vadd.f32 %v1947, 1.0
        %v1980 = vadd.f32 %v1948, 1.0
        %v1981 = vadd.f32 %v1949, 1.0
        %v1982 = vadd.f32 %v1950, 1.0
        %v1983 = vadd.f32 %v1951, 1.0
        %v1984 = vadd.f32 %v1952, 1.0
        %v1985 = vadd.f32 %v1953, 1.0
        %v1986 = vrcp.pop %v1954
        %v1987 = vmul.f32 1.0, %v1986
        %v1988 = vrcp.pop %v1955
        %v1989 = vmul.f32 1.0, %v1988
        %v1990 = vrcp.pop %v1956
        %v1991 = vmul.f32 1.0, %v1990
        %v1992 = vrcp.pop %v1957
        %v1993 = vmul.f32 1.0, %v1992
        %v1994 = vrcp.pop %v1958
        %v1995 = vmul.f32 1.0, %v1994
        %v1996 = vrcp.pop %v1959
        %v1997 = vmul.f32 1.0, %v1996
        %v1998 = vrcp.pop %v1960
        %v1999 = vmul.f32 1.0, %v1998
        %v2000 = vrcp.pop %v1961
        %v2001 = vmul.f32 1.0, %v2000
        %v2002 = vrcp.pop %v1962
        %v2003 = vmul.f32 1.0, %v2002
        %v2004 = vrcp.pop %v1963
        %v2005 = vmul.f32 1.0, %v2004
        %v2006 = vrcp.pop %v1964
        %v2007 = vmul.f32 1.0, %v2006
        %v2008 = vrcp.pop %v1965
        %v2009 = vmul.f32 1.0, %v2008
        %v2010 = vrcp.pop %v1966
        %v2011 = vmul.f32 1.0, %v2010
        %v2012 = vrcp.pop %v1967
        %v2013 = vmul.f32 1.0, %v2012
        %v2014 = vrcp.pop %v1968
        %v2015 = vmul.f32 1.0, %v2014
        %v2016 = vrcp.pop %v1969
        %v2017 = vmul.f32 1.0, %v2016
        %v2018 = vrcp.pop %v1970
        %v2019 = vmul.f32 1.0, %v2018
        %v2020 = vrcp.pop %v1971
        %v2021 = vmul.f32 1.0, %v2020
        %v2022 = vrcp.pop %v1972
        %v2023 = vmul.f32 1.0, %v2022
        %v2024 = vrcp.pop %v1973
        %v2025 = vmul.f32 1.0, %v2024
        %v2026 = vrcp.pop %v1974
        %v2027 = vmul.f32 1.0, %v2026
        %v2028 = vrcp.pop %v1975
        %v2029 = vmul.f32 1.0, %v2028
        %v2030 = vrcp.pop %v1976
        %v2031 = vmul.f32 1.0, %v2030
        %v2032 = vrcp.pop %v1977
        %v2033 = vmul.f32 1.0, %v2032
        %v2034 = vrcp.pop %v1978
        %v2035 = vmul.f32 1.0, %v2034
        %v2036 = vrcp.pop %v1979
        %v2037 = vmul.f32 1.0, %v2036
        %v2038 = vrcp.pop %v1980
        %v2039 = vmul.f32 1.0, %v2038
        %v2040 = vrcp.pop %v1981
        %v2041 = vmul.f32 1.0, %v2040
        %v2042 = vrcp.pop %v1982
        %v2043 = vmul.f32 1.0, %v2042
        %v2044 = vrcp.pop %v1983
        %v2045 = vmul.f32 1.0, %v2044
        %v2046 = vrcp.pop %v1984
        %v2047 = vmul.f32 1.0, %v2046
        %v2048 = vrcp.pop %v1985
        %v2049 = vmul.f32 1.0, %v2048
        %v2050 = vmul.f32 %v1987, 1.0614054
        %v2051 = vmul.f32 %v1989, 1.0614054
        %v2052 = vmul.f32 %v1991, 1.0614054
        %v2053 = vmul.f32 %v1993, 1.0614054
        %v2054 = vmul.f32 %v1995, 1.0614054
        %v2055 = vmul.f32 %v1997, 1.0614054
        %v2056 = vmul.f32 %v1999, 1.0614054
        %v2057 = vmul.f32 %v2001, 1.0614054
        %v2058 = vmul.f32 %v2003, 1.0614054
        %v2059 = vmul.f32 %v2005, 1.0614054
        %v2060 = vmul.f32 %v2007, 1.0614054
        %v2061 = vmul.f32 %v2009, 1.0614054
        %v2062 = vmul.f32 %v2011, 1.0614054
        %v2063 = vmul.f32 %v2013, 1.0614054
        %v2064 = vmul.f32 %v2015, 1.0614054
        %v2065 = vmul.f32 %v2017, 1.0614054
        %v2066 = vmul.f32 %v2019, 1.0614054
        %v2067 = vmul.f32 %v2021, 1.0614054
        %v2068 = vmul.f32 %v2023, 1.0614054
        %v2069 = vmul.f32 %v2025, 1.0614054
        %v2070 = vmul.f32 %v2027, 1.0614054
        %v2071 = vmul.f32 %v2029, 1.0614054
        %v2072 = vmul.f32 %v2031, 1.0614054
        %v2073 = vmul.f32 %v2033, 1.0614054
        %v2074 = vmul.f32 %v2035, 1.0614054
        %v2075 = vmul.f32 %v2037, 1.0614054
        %v2076 = vmul.f32 %v2039, 1.0614054
        %v2077 = vmul.f32 %v2041, 1.0614054
        %v2078 = vmul.f32 %v2043, 1.0614054
        %v2079 = vmul.f32 %v2045, 1.0614054
        %v2080 = vmul.f32 %v2047, 1.0614054
        %v2081 = vmul.f32 %v2049, 1.0614054
        %v2082 = vadd.f32 %v2050, -1.4531521
        %v2083 = vadd.f32 %v2051, -1.4531521
        %v2084 = vadd.f32 %v2052, -1.4531521
        %v2085 = vadd.f32 %v2053, -1.4531521
        %v2086 = vadd.f32 %v2054, -1.4531521
        %v2087 = vadd.f32 %v2055, -1.4531521
        %v2088 = vadd.f32 %v2056, -1.4531521
        %v2089 = vadd.f32 %v2057, -1.4531521
        %v2090 = vadd.f32 %v2058, -1.4531521
        %v2091 = vadd.f32 %v2059, -1.4531521
        %v2092 = vadd.f32 %v2060, -1.4531521
        %v2093 = vadd.f32 %v2061, -1.4531521
        %v2094 = vadd.f32 %v2062, -1.4531521
        %v2095 = vadd.f32 %v2063, -1.4531521
        %v2096 = vadd.f32 %v2064, -1.4531521
        %v2097 = vadd.f32 %v2065, -1.4531521
        %v2098 = vadd.f32 %v2066, -1.4531521
        %v2099 = vadd.f32 %v2067, -1.4531521
        %v2100 = vadd.f32 %v2068, -1.4531521
        %v2101 = vadd.f32 %v2069, -1.4531521
        %v2102 = vadd.f32 %v2070, -1.4531521
        %v2103 = vadd.f32 %v2071, -1.4531521
        %v2104 = vadd.f32 %v2072, -1.4531521
        %v2105 = vadd.f32 %v2073, -1.4531521
        %v2106 = vadd.f32 %v2074, -1.4531521
        %v2107 = vadd.f32 %v2075, -1.4531521
        %v2108 = vadd.f32 %v2076, -1.4531521
        %v2109 = vadd.f32 %v2077, -1.4531521
        %v2110 = vadd.f32 %v2078, -1.4531521
        %v2111 = vadd.f32 %v2079, -1.4531521
        %v2112 = vadd.f32 %v2080, -1.4531521
        %v2113 = vadd.f32 %v2081, -1.4531521
        %v2114 = vmul.f32 %v1987, %v2082
        %v2115 = vmul.f32 %v1989, %v2083
        %v2116 = vmul.f32 %v1991, %v2084
        %v2117 = vmul.f32 %v1993, %v2085
        %v2118 = vmul.f32 %v1995, %v2086
        %v2119 = vmul.f32 %v1997, %v2087
        %v2120 = vmul.f32 %v1999, %v2088
        %v2121 = vmul.f32 %v2001, %v2089
        %v2122 = vmul.f32 %v2003, %v2090
        %v2123 = vmul.f32 %v2005, %v2091
        %v2124 = vmul.f32 %v2007, %v2092
        %v2125 = vmul.f32 %v2009, %v2093
        %v2126 = vmul.f32 %v2011, %v2094
        %v2127 = vmul.f32 %v2013, %v2095
        %v2128 = vmul.f32 %v2015, %v2096
        %v2129 = vmul.f32 %v2017, %v2097
        %v2130 = vmul.f32 %v2019, %v2098
        %v2131 = vmul.f32 %v2021, %v2099
        %v2132 = vmul.f32 %v2023, %v2100
        %v2133 = vmul.f32 %v2025, %v2101
        %v2134 = vmul.f32 %v2027, %v2102
        %v2135 = vmul.f32 %v2029, %v2103
        %v2136 = vmul.f32 %v2031, %v2104
        %v2137 = vmul.f32 %v2033, %v2105
        %v2138 = vmul.f32 %v2035, %v2106
        %v2139 = vmul.f32 %v2037, %v2107
        %v2140 = vmul.f32 %v2039, %v2108
        %v2141 = vmul.f32 %v2041, %v2109
        %v2142 = vmul.f32 %v2043, %v2110
        %v2143 = vmul.f32 %v2045, %v2111
        %v2144 = vmul.f32 %v2047, %v2112
        %v2145 = vmul.f32 %v2049, %v2113
        %v2146 = vadd.f32 %v2114, 1.4214138
        %v2147 = vadd.f32 %v2115, 1.4214138
        %v2148 = vadd.f32 %v2116, 1.4214138
        %v2149 = vadd.f32 %v2117, 1.4214138
        %v2150 = vadd.f32 %v2118, 1.4214138
        %v2151 = vadd.f32 %v2119, 1.4214138
        %v2152 = vadd.f32 %v2120, 1.4214138
        %v2153 = vadd.f32 %v2121, 1.4214138
        %v2154 = vadd.f32 %v2122, 1.4214138
        %v2155 = vadd.f32 %v2123, 1.4214138
        %v2156 = vadd.f32 %v2124, 1.4214138
        %v2157 = vadd.f32 %v2125, 1.4214138
        %v2158 = vadd.f32 %v2126, 1.4214138
        %v2159 = vadd.f32 %v2127, 1.4214138
        %v2160 = vadd.f32 %v2128, 1.4214138
        %v2161 = vadd.f32 %v2129, 1.4214138
        %v2162 = vadd.f32 %v2130, 1.4214138
        %v2163 = vadd.f32 %v2131, 1.4214138
        %v2164 = vadd.f32 %v2132, 1.4214138
        %v2165 = vadd.f32 %v2133, 1.4214138
        %v2166 = vadd.f32 %v2134, 1.4214138
        %v2167 = vadd.f32 %v2135, 1.4214138
        %v2168 = vadd.f32 %v2136, 1.4214138
        %v2169 = vadd.f32 %v2137, 1.4214138
        %v2170 = vadd.f32 %v2138, 1.4214138
        %v2171 = vadd.f32 %v2139, 1.4214138
        %v2172 = vadd.f32 %v2140, 1.4214138
        %v2173 = vadd.f32 %v2141, 1.4214138
        %v2174 = vadd.f32 %v2142, 1.4214138
        %v2175 = vadd.f32 %v2143, 1.4214138
        %v2176 = vadd.f32 %v2144, 1.4214138
        %v2177 = vadd.f32 %v2145, 1.4214138
        %v2178 = vmul.f32 %v1987, %v2146
        %v2179 = vmul.f32 %v1989, %v2147
        %v2180 = vmul.f32 %v1991, %v2148
        %v2181 = vmul.f32 %v1993, %v2149
        %v2182 = vmul.f32 %v1995, %v2150
        %v2183 = vmul.f32 %v1997, %v2151
        %v2184 = vmul.f32 %v1999, %v2152
        %v2185 = vmul.f32 %v2001, %v2153
        %v2186 = vmul.f32 %v2003, %v2154
        %v2187 = vmul.f32 %v2005, %v2155
        %v2188 = vmul.f32 %v2007, %v2156
        %v2189 = vmul.f32 %v2009, %v2157
        %v2190 = vmul.f32 %v2011, %v2158
        %v2191 = vmul.f32 %v2013, %v2159
        %v2192 = vmul.f32 %v2015, %v2160
        %v2193 = vmul.f32 %v2017, %v2161
        %v2194 = vmul.f32 %v2019, %v2162
        %v2195 = vmul.f32 %v2021, %v2163
        %v2196 = vmul.f32 %v2023, %v2164
        %v2197 = vmul.f32 %v2025, %v2165
        %v2198 = vmul.f32 %v2027, %v2166
        %v2199 = vmul.f32 %v2029, %v2167
        %v2200 = vmul.f32 %v2031, %v2168
        %v2201 = vmul.f32 %v2033, %v2169
        %v2202 = vmul.f32 %v2035, %v2170
        %v2203 = vmul.f32 %v2037, %v2171
        %v2204 = vmul.f32 %v2039, %v2172
        %v2205 = vmul.f32 %v2041, %v2173
        %v2206 = vmul.f32 %v2043, %v2174
        %v2207 = vmul.f32 %v2045, %v2175
        %v2208 = vmul.f32 %v2047, %v2176
        %v2209 = vmul.f32 %v2049, %v2177
        %v2210 = vadd.f32 %v2178, -0.28449672
        %v2211 = vadd.f32 %v2179, -0.28449672
        %v2212 = vadd.f32 %v2180, -0.28449672
        %v2213 = vadd.f32 %v2181, -0.28449672
        %v2214 = vadd.f32 %v2182, -0.28449672
        %v2215 = vadd.f32 %v2183, -0.28449672
        %v2216 = vadd.f32 %v2184, -0.28449672
        %v2217 = vadd.f32 %v2185, -0.28449672
        %v2218 = vadd.f32 %v2186, -0.28449672
        %v2219 = vadd.f32 %v2187, -0.28449672
        %v2220 = vadd.f32 %v2188, -0.28449672
        %v2221 = vadd.f32 %v2189, -0.28449672
        %v2222 = vadd.f32 %v2190, -0.28449672
        %v2223 = vadd.f32 %v2191, -0.28449672
        %v2224 = vadd.f32 %v2192, -0.28449672
        %v2225 = vadd.f32 %v2193, -0.28449672
        %v2226 = vadd.f32 %v2194, -0.28449672
        %v2227 = vadd.f32 %v2195, -0.28449672
        %v2228 = vadd.f32 %v2196, -0.28449672
        %v2229 = vadd.f32 %v2197, -0.28449672
        %v2230 = vadd.f32 %v2198, -0.28449672
        %v2231 = vadd.f32 %v2199, -0.28449672
        %v2232 = vadd.f32 %v2200, -0.28449672
        %v2233 = vadd.f32 %v2201, -0.28449672
        %v2234 = vadd.f32 %v2202, -0.28449672
        %v2235 = vadd.f32 %v2203, -0.28449672
        %v2236 = vadd.f32 %v2204, -0.28449672
        %v2237 = vadd.f32 %v2205, -0.28449672
        %v2238 = vadd.f32 %v2206, -0.28449672
        %v2239 = vadd.f32 %v2207, -0.28449672
        %v2240 = vadd.f32 %v2208, -0.28449672
        %v2241 = vadd.f32 %v2209, -0.28449672
        %v2242 = vmul.f32 %v1987, %v2210
        %v2243 = vmul.f32 %v1989, %v2211
        %v2244 = vmul.f32 %v1991, %v2212
        %v2245 = vmul.f32 %v1993, %v2213
        %v2246 = vmul.f32 %v1995, %v2214
        %v2247 = vmul.f32 %v1997, %v2215
        %v2248 = vmul.f32 %v1999, %v2216
        %v2249 = vmul.f32 %v2001, %v2217
        %v2250 = vmul.f32 %v2003, %v2218
        %v2251 = vmul.f32 %v2005, %v2219
        %v2252 = vmul.f32 %v2007, %v2220
        %v2253 = vmul.f32 %v2009, %v2221
        %v2254 = vmul.f32 %v2011, %v2222
        %v2255 = vmul.f32 %v2013, %v2223
        %v2256 = vmul.f32 %v2015, %v2224
        %v2257 = vmul.f32 %v2017, %v2225
        %v2258 = vmul.f32 %v2019, %v2226
        %v2259 = vmul.f32 %v2021, %v2227
        %v2260 = vmul.f32 %v2023, %v2228
        %v2261 = vmul.f32 %v2025, %v2229
        %v2262 = vmul.f32 %v2027, %v2230
        %v2263 = vmul.f32 %v2029, %v2231
        %v2264 = vmul.f32 %v2031, %v2232
        %v2265 = vmul.f32 %v2033, %v2233
        %v2266 = vmul.f32 %v2035, %v2234
        %v2267 = vmul.f32 %v2037, %v2235
        %v2268 = vmul.f32 %v2039, %v2236
        %v2269 = vmul.f32 %v2041, %v2237
        %v2270 = vmul.f32 %v2043, %v2238
        %v2271 = vmul.f32 %v2045, %v2239
        %v2272 = vmul.f32 %v2047, %v2240
        %v2273 = vmul.f32 %v2049, %v2241
        %v2274 = vadd.f32 %v2242, 0.2548296
        %v2275 = vadd.f32 %v2243, 0.2548296
        %v2276 = vadd.f32 %v2244, 0.2548296
        %v2277 = vadd.f32 %v2245, 0.2548296
        %v2278 = vadd.f32 %v2246, 0.2548296
        %v2279 = vadd.f32 %v2247, 0.2548296
        %v2280 = vadd.f32 %v2248, 0.2548296
        %v2281 = vadd.f32 %v2249, 0.2548296
        %v2282 = vadd.f32 %v2250, 0.2548296
        %v2283 = vadd.f32 %v2251, 0.2548296
        %v2284 = vadd.f32 %v2252, 0.2548296
        %v2285 = vadd.f32 %v2253, 0.2548296
        %v2286 = vadd.f32 %v2254, 0.2548296
        %v2287 = vadd.f32 %v2255, 0.2548296
        %v2288 = vadd.f32 %v2256, 0.2548296
        %v2289 = vadd.f32 %v2257, 0.2548296
        %v2290 = vadd.f32 %v2258, 0.2548296
        %v2291 = vadd.f32 %v2259, 0.2548296
        %v2292 = vadd.f32 %v2260, 0.2548296
        %v2293 = vadd.f32 %v2261, 0.2548296
        %v2294 = vadd.f32 %v2262, 0.2548296
        %v2295 = vadd.f32 %v2263, 0.2548296
        %v2296 = vadd.f32 %v2264, 0.2548296
        %v2297 = vadd.f32 %v2265, 0.2548296
        %v2298 = vadd.f32 %v2266, 0.2548296
        %v2299 = vadd.f32 %v2267, 0.2548296
        %v2300 = vadd.f32 %v2268, 0.2548296
        %v2301 = vadd.f32 %v2269, 0.2548296
        %v2302 = vadd.f32 %v2270, 0.2548296
        %v2303 = vadd.f32 %v2271, 0.2548296
        %v2304 = vadd.f32 %v2272, 0.2548296
        %v2305 = vadd.f32 %v2273, 0.2548296
        %v2306 = vmul.f32 %v1987, %v2274
        %v2307 = vmul.f32 %v1989, %v2275
        %v2308 = vmul.f32 %v1991, %v2276
        %v2309 = vmul.f32 %v1993, %v2277
        %v2310 = vmul.f32 %v1995, %v2278
        %v2311 = vmul.f32 %v1997, %v2279
        %v2312 = vmul.f32 %v1999, %v2280
        %v2313 = vmul.f32 %v2001, %v2281
        %v2314 = vmul.f32 %v2003, %v2282
        %v2315 = vmul.f32 %v2005, %v2283
        %v2316 = vmul.f32 %v2007, %v2284
        %v2317 = vmul.f32 %v2009, %v2285
        %v2318 = vmul.f32 %v2011, %v2286
        %v2319 = vmul.f32 %v2013, %v2287
        %v2320 = vmul.f32 %v2015, %v2288
        %v2321 = vmul.f32 %v2017, %v2289
        %v2322 = vmul.f32 %v2019, %v2290
        %v2323 = vmul.f32 %v2021, %v2291
        %v2324 = vmul.f32 %v2023, %v2292
        %v2325 = vmul.f32 %v2025, %v2293
        %v2326 = vmul.f32 %v2027, %v2294
        %v2327 = vmul.f32 %v2029, %v2295
        %v2328 = vmul.f32 %v2031, %v2296
        %v2329 = vmul.f32 %v2033, %v2297
        %v2330 = vmul.f32 %v2035, %v2298
        %v2331 = vmul.f32 %v2037, %v2299
        %v2332 = vmul.f32 %v2039, %v2300
        %v2333 = vmul.f32 %v2041, %v2301
        %v2334 = vmul.f32 %v2043, %v2302
        %v2335 = vmul.f32 %v2045, %v2303
        %v2336 = vmul.f32 %v2047, %v2304
        %v2337 = vmul.f32 %v2049, %v2305
        %v2338 = vsub.f32 0.0, %v1890
        %v2339 = vsub.f32 0.0, %v1891
        %v2340 = vsub.f32 0.0, %v1892
        %v2341 = vsub.f32 0.0, %v1893
        %v2342 = vsub.f32 0.0, %v1894
        %v2343 = vsub.f32 0.0, %v1895
        %v2344 = vsub.f32 0.0, %v1896
        %v2345 = vsub.f32 0.0, %v1897
        %v2346 = vsub.f32 0.0, %v1898
        %v2347 = vsub.f32 0.0, %v1899
        %v2348 = vsub.f32 0.0, %v1900
        %v2349 = vsub.f32 0.0, %v1901
        %v2350 = vsub.f32 0.0, %v1902
        %v2351 = vsub.f32 0.0, %v1903
        %v2352 = vsub.f32 0.0, %v1904
        %v2353 = vsub.f32 0.0, %v1905
        %v2354 = vsub.f32 0.0, %v1906
        %v2355 = vsub.f32 0.0, %v1907
        %v2356 = vsub.f32 0.0, %v1908
        %v2357 = vsub.f32 0.0, %v1909
        %v2358 = vsub.f32 0.0, %v1910
        %v2359 = vsub.f32 0.0, %v1911
        %v2360 = vsub.f32 0.0, %v1912
        %v2361 = vsub.f32 0.0, %v1913
        %v2362 = vsub.f32 0.0, %v1914
        %v2363 = vsub.f32 0.0, %v1915
        %v2364 = vsub.f32 0.0, %v1916
        %v2365 = vsub.f32 0.0, %v1917
        %v2366 = vsub.f32 0.0, %v1918
        %v2367 = vsub.f32 0.0, %v1919
        %v2368 = vsub.f32 0.0, %v1920
        %v2369 = vsub.f32 0.0, %v1921
        %v2370 = vmul.f32 %v2338, %v1890
        %v2371 = vmul.f32 %v2339, %v1891
        %v2372 = vmul.f32 %v2340, %v1892
        %v2373 = vmul.f32 %v2341, %v1893
        %v2374 = vmul.f32 %v2342, %v1894
        %v2375 = vmul.f32 %v2343, %v1895
        %v2376 = vmul.f32 %v2344, %v1896
        %v2377 = vmul.f32 %v2345, %v1897
        %v2378 = vmul.f32 %v2346, %v1898
        %v2379 = vmul.f32 %v2347, %v1899
        %v2380 = vmul.f32 %v2348, %v1900
        %v2381 = vmul.f32 %v2349, %v1901
        %v2382 = vmul.f32 %v2350, %v1902
        %v2383 = vmul.f32 %v2351, %v1903
        %v2384 = vmul.f32 %v2352, %v1904
        %v2385 = vmul.f32 %v2353, %v1905
        %v2386 = vmul.f32 %v2354, %v1906
        %v2387 = vmul.f32 %v2355, %v1907
        %v2388 = vmul.f32 %v2356, %v1908
        %v2389 = vmul.f32 %v2357, %v1909
        %v2390 = vmul.f32 %v2358, %v1910
        %v2391 = vmul.f32 %v2359, %v1911
        %v2392 = vmul.f32 %v2360, %v1912
        %v2393 = vmul.f32 %v2361, %v1913
        %v2394 = vmul.f32 %v2362, %v1914
        %v2395 = vmul.f32 %v2363, %v1915
        %v2396 = vmul.f32 %v2364, %v1916
        %v2397 = vmul.f32 %v2365, %v1917
        %v2398 = vmul.f32 %v2366, %v1918
        %v2399 = vmul.f32 %v2367, %v1919
        %v2400 = vmul.f32 %v2368, %v1920
        %v2401 = vmul.f32 %v2369, %v1921
        %v2402 = vmul.f32 %v2370, 1.442695
        %v2403 = vpow.pop %v2402
        %v2404 = vmul.f32 %v2371, 1.442695
        %v2405 = vpow.pop %v2404
        %v2406 = vmul.f32 %v2372, 1.442695
        %v2407 = vpow.pop %v2406
        %v2408 = vmul.f32 %v2373, 1.442695
        %v2409 = vpow.pop %v2408
        %v2410 = vmul.f32 %v2374, 1.442695
        %v2411 = vpow.pop %v2410
        %v2412 = vmul.f32 %v2375, 1.442695
        %v2413 = vpow.pop %v2412
        %v2414 = vmul.f32 %v2376, 1.442695
        %v2415 = vpow.pop %v2414
        %v2416 = vmul.f32 %v2377, 1.442695
        %v2417 = vpow.pop %v2416
        %v2418 = vmul.f32 %v2378, 1.442695
        %v2419 = vpow.pop %v2418
        %v2420 = vmul.f32 %v2379, 1.442695
        %v2421 = vpow.pop %v2420
        %v2422 = vmul.f32 %v2380, 1.442695
        %v2423 = vpow.pop %v2422
        %v2424 = vmul.f32 %v2381, 1.442695
        %v2425 = vpow.pop %v2424
        %v2426 = vmul.f32 %v2382, 1.442695
        %v2427 = vpow.pop %v2426
        %v2428 = vmul.f32 %v2383, 1.442695
        %v2429 = vpow.pop %v2428
        %v2430 = vmul.f32 %v2384, 1.442695
        %v2431 = vpow.pop %v2430
        %v2432 = vmul.f32 %v2385, 1.442695
        %v2433 = vpow.pop %v2432
        %v2434 = vmul.f32 %v2386, 1.442695
        %v2435 = vpow.pop %v2434
        %v2436 = vmul.f32 %v2387, 1.442695
        %v2437 = vpow.pop %v2436
        %v2438 = vmul.f32 %v2388, 1.442695
        %v2439 = vpow.pop %v2438
        %v2440 = vmul.f32 %v2389, 1.442695
        %v2441 = vpow.pop %v2440
        %v2442 = vmul.f32 %v2390, 1.442695
        %v2443 = vpow.pop %v2442
        %v2444 = vmul.f32 %v2391, 1.442695
        %v2445 = vpow.pop %v2444
        %v2446 = vmul.f32 %v2392, 1.442695
        %v2447 = vpow.pop %v2446
        %v2448 = vmul.f32 %v2393, 1.442695
        %v2449 = vpow.pop %v2448
        %v2450 = vmul.f32 %v2394, 1.442695
        %v2451 = vpow.pop %v2450
        %v2452 = vmul.f32 %v2395, 1.442695
        %v2453 = vpow.pop %v2452
        %v2454 = vmul.f32 %v2396, 1.442695
        %v2455 = vpow.pop %v2454
        %v2456 = vmul.f32 %v2397, 1.442695
        %v2457 = vpow.pop %v2456
        %v2458 = vmul.f32 %v2398, 1.442695
        %v2459 = vpow.pop %v2458
        %v2460 = vmul.f32 %v2399, 1.442695
        %v2461 = vpow.pop %v2460
        %v2462 = vmul.f32 %v2400, 1.442695
        %v2463 = vpow.pop %v2462
        %v2464 = vmul.f32 %v2401, 1.442695
        %v2465 = vpow.pop %v2464
        %v2466 = vmul.f32 %v2306, %v2403
        %v2467 = vmul.f32 %v2307, %v2405
        %v2468 = vmul.f32 %v2308, %v2407
        %v2469 = vmul.f32 %v2309, %v2409
        %v2470 = vmul.f32 %v2310, %v2411
        %v2471 = vmul.f32 %v2311, %v2413
        %v2472 = vmul.f32 %v2312, %v2415
        %v2473 = vmul.f32 %v2313, %v2417
        %v2474 = vmul.f32 %v2314, %v2419
        %v2475 = vmul.f32 %v2315, %v2421
        %v2476 = vmul.f32 %v2316, %v2423
        %v2477 = vmul.f32 %v2317, %v2425
        %v2478 = vmul.f32 %v2318, %v2427
        %v2479 = vmul.f32 %v2319, %v2429
        %v2480 = vmul.f32 %v2320, %v2431
        %v2481 = vmul.f32 %v2321, %v2433
        %v2482 = vmul.f32 %v2322, %v2435
        %v2483 = vmul.f32 %v2323, %v2437
        %v2484 = vmul.f32 %v2324, %v2439
        %v2485 = vmul.f32 %v2325, %v2441
        %v2486 = vmul.f32 %v2326, %v2443
        %v2487 = vmul.f32 %v2327, %v2445
        %v2488 = vmul.f32 %v2328, %v2447
        %v2489 = vmul.f32 %v2329, %v2449
        %v2490 = vmul.f32 %v2330, %v2451
        %v2491 = vmul.f32 %v2331, %v2453
        %v2492 = vmul.f32 %v2332, %v2455
        %v2493 = vmul.f32 %v2333, %v2457
        %v2494 = vmul.f32 %v2334, %v2459
        %v2495 = vmul.f32 %v2335, %v2461
        %v2496 = vmul.f32 %v2336, %v2463
        %v2497 = vmul.f32 %v2337, %v2465
        %v2498 = vsub.f32 1.0, %v2466
        %v2499 = vsub.f32 1.0, %v2467
        %v2500 = vsub.f32 1.0, %v2468
        %v2501 = vsub.f32 1.0, %v2469
        %v2502 = vsub.f32 1.0, %v2470
        %v2503 = vsub.f32 1.0, %v2471
        %v2504 = vsub.f32 1.0, %v2472
        %v2505 = vsub.f32 1.0, %v2473
        %v2506 = vsub.f32 1.0, %v2474
        %v2507 = vsub.f32 1.0, %v2475
        %v2508 = vsub.f32 1.0, %v2476
        %v2509 = vsub.f32 1.0, %v2477
        %v2510 = vsub.f32 1.0, %v2478
        %v2511 = vsub.f32 1.0, %v2479
        %v2512 = vsub.f32 1.0, %v2480
        %v2513 = vsub.f32 1.0, %v2481
        %v2514 = vsub.f32 1.0, %v2482
        %v2515 = vsub.f32 1.0, %v2483
        %v2516 = vsub.f32 1.0, %v2484
        %v2517 = vsub.f32 1.0, %v2485
        %v2518 = vsub.f32 1.0, %v2486
        %v2519 = vsub.f32 1.0, %v2487
        %v2520 = vsub.f32 1.0, %v2488
        %v2521 = vsub.f32 1.0, %v2489
        %v2522 = vsub.f32 1.0, %v2490
        %v2523 = vsub.f32 1.0, %v2491
        %v2524 = vsub.f32 1.0, %v2492
        %v2525 = vsub.f32 1.0, %v2493
        %v2526 = vsub.f32 1.0, %v2494
        %v2527 = vsub.f32 1.0, %v2495
        %v2528 = vsub.f32 1.0, %v2496
        %v2529 = vsub.f32 1.0, %v2497
        %vm2530 = vcmp.ge.f32.partialorder %v1858, 0.0
        %vm2531 = vcmp.ge.f32.partialorder %v1859, 0.0
        %vm2532 = vcmp.ge.f32.partialorder %v1860, 0.0
        %vm2533 = vcmp.ge.f32.partialorder %v1861, 0.0
        %vm2534 = vcmp.ge.f32.partialorder %v1862, 0.0
        %vm2535 = vcmp.ge.f32.partialorder %v1863, 0.0
        %vm2536 = vcmp.ge.f32.partialorder %v1864, 0.0
        %vm2537 = vcmp.ge.f32.partialorder %v1865, 0.0
        %vm2538 = vcmp.ge.f32.partialorder %v1866, 0.0
        %vm2539 = vcmp.ge.f32.partialorder %v1867, 0.0
        %vm2540 = vcmp.ge.f32.partialorder %v1868, 0.0
        %vm2541 = vcmp.ge.f32.partialorder %v1869, 0.0
        %vm2542 = vcmp.ge.f32.partialorder %v1870, 0.0
        %vm2543 = vcmp.ge.f32.partialorder %v1871, 0.0
        %vm2544 = vcmp.ge.f32.partialorder %v1872, 0.0
        %vm2545 = vcmp.ge.f32.partialorder %v1873, 0.0
        %vm2546 = vcmp.ge.f32.partialorder %v1874, 0.0
        %vm2547 = vcmp.ge.f32.partialorder %v1875, 0.0
        %vm2548 = vcmp.ge.f32.partialorder %v1876, 0.0
        %vm2549 = vcmp.ge.f32.partialorder %v1877, 0.0
        %vm2550 = vcmp.ge.f32.partialorder %v1878, 0.0
        %vm2551 = vcmp.ge.f32.partialorder %v1879, 0.0
        %vm2552 = vcmp.ge.f32.partialorder %v1880, 0.0
        %vm2553 = vcmp.ge.f32.partialorder %v1881, 0.0
        %vm2554 = vcmp.ge.f32.partialorder %v1882, 0.0
        %vm2555 = vcmp.ge.f32.partialorder %v1883, 0.0
        %vm2556 = vcmp.ge.f32.partialorder %v1884, 0.0
        %vm2557 = vcmp.ge.f32.partialorder %v1885, 0.0
        %vm2558 = vcmp.ge.f32.partialorder %v1886, 0.0
        %vm2559 = vcmp.ge.f32.partialorder %v1887, 0.0
        %vm2560 = vcmp.ge.f32.partialorder %v1888, 0.0
        %vm2561 = vcmp.ge.f32.partialorder %v1889, 0.0
        %v2562 = vsub.f32 0.0, %v2498
        %v2563 = vsub.f32 0.0, %v2499
        %v2564 = vsub.f32 0.0, %v2500
        %v2565 = vsub.f32 0.0, %v2501
        %v2566 = vsub.f32 0.0, %v2502
        %v2567 = vsub.f32 0.0, %v2503
        %v2568 = vsub.f32 0.0, %v2504
        %v2569 = vsub.f32 0.0, %v2505
        %v2570 = vsub.f32 0.0, %v2506
        %v2571 = vsub.f32 0.0, %v2507
        %v2572 = vsub.f32 0.0, %v2508
        %v2573 = vsub.f32 0.0, %v2509
        %v2574 = vsub.f32 0.0, %v2510
        %v2575 = vsub.f32 0.0, %v2511
        %v2576 = vsub.f32 0.0, %v2512
        %v2577 = vsub.f32 0.0, %v2513
        %v2578 = vsub.f32 0.0, %v2514
        %v2579 = vsub.f32 0.0, %v2515
        %v2580 = vsub.f32 0.0, %v2516
        %v2581 = vsub.f32 0.0, %v2517
        %v2582 = vsub.f32 0.0, %v2518
        %v2583 = vsub.f32 0.0, %v2519
        %v2584 = vsub.f32 0.0, %v2520
        %v2585 = vsub.f32 0.0, %v2521
        %v2586 = vsub.f32 0.0, %v2522
        %v2587 = vsub.f32 0.0, %v2523
        %v2588 = vsub.f32 0.0, %v2524
        %v2589 = vsub.f32 0.0, %v2525
        %v2590 = vsub.f32 0.0, %v2526
        %v2591 = vsub.f32 0.0, %v2527
        %v2592 = vsub.f32 0.0, %v2528
        %v2593 = vsub.f32 0.0, %v2529
        %v2594 = vsel %vm2530, %v2498, %v2562
        %v2595 = vsel %vm2531, %v2499, %v2563
        %v2596 = vsel %vm2532, %v2500, %v2564
        %v2597 = vsel %vm2533, %v2501, %v2565
        %v2598 = vsel %vm2534, %v2502, %v2566
        %v2599 = vsel %vm2535, %v2503, %v2567
        %v2600 = vsel %vm2536, %v2504, %v2568
        %v2601 = vsel %vm2537, %v2505, %v2569
        %v2602 = vsel %vm2538, %v2506, %v2570
        %v2603 = vsel %vm2539, %v2507, %v2571
        %v2604 = vsel %vm2540, %v2508, %v2572
        %v2605 = vsel %vm2541, %v2509, %v2573
        %v2606 = vsel %vm2542, %v2510, %v2574
        %v2607 = vsel %vm2543, %v2511, %v2575
        %v2608 = vsel %vm2544, %v2512, %v2576
        %v2609 = vsel %vm2545, %v2513, %v2577
        %v2610 = vsel %vm2546, %v2514, %v2578
        %v2611 = vsel %vm2547, %v2515, %v2579
        %v2612 = vsel %vm2548, %v2516, %v2580
        %v2613 = vsel %vm2549, %v2517, %v2581
        %v2614 = vsel %vm2550, %v2518, %v2582
        %v2615 = vsel %vm2551, %v2519, %v2583
        %v2616 = vsel %vm2552, %v2520, %v2584
        %v2617 = vsel %vm2553, %v2521, %v2585
        %v2618 = vsel %vm2554, %v2522, %v2586
        %v2619 = vsel %vm2555, %v2523, %v2587
        %v2620 = vsel %vm2556, %v2524, %v2588
        %v2621 = vsel %vm2557, %v2525, %v2589
        %v2622 = vsel %vm2558, %v2526, %v2590
        %v2623 = vsel %vm2559, %v2527, %v2591
        %v2624 = vsel %vm2560, %v2528, %v2592
        %v2625 = vsel %vm2561, %v2529, %v2593
        %v2626 = vadd.f32 %v2594, 1.0
        %v2627 = vadd.f32 %v2595, 1.0
        %v2628 = vadd.f32 %v2596, 1.0
        %v2629 = vadd.f32 %v2597, 1.0
        %v2630 = vadd.f32 %v2598, 1.0
        %v2631 = vadd.f32 %v2599, 1.0
        %v2632 = vadd.f32 %v2600, 1.0
        %v2633 = vadd.f32 %v2601, 1.0
        %v2634 = vadd.f32 %v2602, 1.0
        %v2635 = vadd.f32 %v2603, 1.0
        %v2636 = vadd.f32 %v2604, 1.0
        %v2637 = vadd.f32 %v2605, 1.0
        %v2638 = vadd.f32 %v2606, 1.0
        %v2639 = vadd.f32 %v2607, 1.0
        %v2640 = vadd.f32 %v2608, 1.0
        %v2641 = vadd.f32 %v2609, 1.0
        %v2642 = vadd.f32 %v2610, 1.0
        %v2643 = vadd.f32 %v2611, 1.0
        %v2644 = vadd.f32 %v2612, 1.0
        %v2645 = vadd.f32 %v2613, 1.0
        %v2646 = vadd.f32 %v2614, 1.0
        %v2647 = vadd.f32 %v2615, 1.0
        %v2648 = vadd.f32 %v2616, 1.0
        %v2649 = vadd.f32 %v2617, 1.0
        %v2650 = vadd.f32 %v2618, 1.0
        %v2651 = vadd.f32 %v2619, 1.0
        %v2652 = vadd.f32 %v2620, 1.0
        %v2653 = vadd.f32 %v2621, 1.0
        %v2654 = vadd.f32 %v2622, 1.0
        %v2655 = vadd.f32 %v2623, 1.0
        %v2656 = vadd.f32 %v2624, 1.0
        %v2657 = vadd.f32 %v2625, 1.0
        %v2658 = vmul.f32 %v1826, %v2626
        %v2659 = vmul.f32 %v1827, %v2627
        %v2660 = vmul.f32 %v1828, %v2628
        %v2661 = vmul.f32 %v1829, %v2629
        %v2662 = vmul.f32 %v1830, %v2630
        %v2663 = vmul.f32 %v1831, %v2631
        %v2664 = vmul.f32 %v1832, %v2632
        %v2665 = vmul.f32 %v1833, %v2633
        %v2666 = vmul.f32 %v1834, %v2634
        %v2667 = vmul.f32 %v1835, %v2635
        %v2668 = vmul.f32 %v1836, %v2636
        %v2669 = vmul.f32 %v1837, %v2637
        %v2670 = vmul.f32 %v1838, %v2638
        %v2671 = vmul.f32 %v1839, %v2639
        %v2672 = vmul.f32 %v1840, %v2640
        %v2673 = vmul.f32 %v1841, %v2641
        %v2674 = vmul.f32 %v1842, %v2642
        %v2675 = vmul.f32 %v1843, %v2643
        %v2676 = vmul.f32 %v1844, %v2644
        %v2677 = vmul.f32 %v1845, %v2645
        %v2678 = vmul.f32 %v1846, %v2646
        %v2679 = vmul.f32 %v1847, %v2647
        %v2680 = vmul.f32 %v1848, %v2648
        %v2681 = vmul.f32 %v1849, %v2649
        %v2682 = vmul.f32 %v1850, %v2650
        %v2683 = vmul.f32 %v1851, %v2651
        %v2684 = vmul.f32 %v1852, %v2652
        %v2685 = vmul.f32 %v1853, %v2653
        %v2686 = vmul.f32 %v1854, %v2654
        %v2687 = vmul.f32 %v1855, %v2655
        %v2688 = vmul.f32 %v1856, %v2656
        %v2689 = vmul.f32 %v1857, %v2657
        %v2690 = vpack.c.bf16 %v2660, %v2658
        %v2691 = vpack.c.bf16 %v2661, %v2659
        %v2692 = vpack.c.bf16 %v2664, %v2662
        %v2693 = vpack.c.bf16 %v2665, %v2663
        %v2694 = vpack.c.bf16 %v2668, %v2666
        %v2695 = vpack.c.bf16 %v2669, %v2667
        %v2696 = vpack.c.bf16 %v2672, %v2670
        %v2697 = vpack.c.bf16 %v2673, %v2671
        %v2698 = vpack.c.bf16 %v2676, %v2674
        %v2699 = vpack.c.bf16 %v2677, %v2675
        %v2700 = vpack.c.bf16 %v2680, %v2678
        %v2701 = vpack.c.bf16 %v2681, %v2679
        %v2702 = vpack.c.bf16 %v2684, %v2682
        %v2703 = vpack.c.bf16 %v2685, %v2683
        %v2704 = vpack.c.bf16 %v2688, %v2686
        %v2705 = vpack.c.bf16 %v2689, %v2687
        %v2706 = vld [vmem:[#allocation8] sm:$0xf]
        %v2707 = vld [vmem:[#allocation8 + $0x4] sm:$0xf]
        %v2708 = vld [vmem:[#allocation8 + $0x8] sm:$0xf]
        %v2709 = vld [vmem:[#allocation8 + $0xc] sm:$0xf]
        %v2710 = vld [vmem:[#allocation8 + $0x10] sm:$0xf]
        %v2711 = vld [vmem:[#allocation8 + $0x14] sm:$0xf]
        %v2712 = vld [vmem:[#allocation8 + $0x18] sm:$0xf]
        %v2713 = vld [vmem:[#allocation8 + $0x1c] sm:$0xf]
        %v2714 = vld [vmem:[#allocation8 + $0x20] sm:$0xf]
        %v2715 = vld [vmem:[#allocation8 + $0x24] sm:$0xf]
        %v2716 = vld [vmem:[#allocation8 + $0x28] sm:$0xf]
        %v2717 = vld [vmem:[#allocation8 + $0x2c] sm:$0xf]
        %v2718 = vld [vmem:[#allocation8 + $0x30] sm:$0xf]
        %v2719 = vld [vmem:[#allocation8 + $0x34] sm:$0xf]
        %v2720 = vld [vmem:[#allocation8 + $0x38] sm:$0xf]
        %v2721 = vld [vmem:[#allocation8 + $0x3c] sm:$0xf]
        %v2722 = vld [vmem:[#allocation8 + $0x40] sm:$0xf]
        %v2723 = vld [vmem:[#allocation8 + $0x44] sm:$0xf]
        %v2724 = vld [vmem:[#allocation8 + $0x48] sm:$0xf]
        %v2725 = vld [vmem:[#allocation8 + $0x4c] sm:$0xf]
        %v2726 = vld [vmem:[#allocation8 + $0x50] sm:$0xf]
        %v2727 = vld [vmem:[#allocation8 + $0x54] sm:$0xf]
        %v2728 = vld [vmem:[#allocation8 + $0x58] sm:$0xf]
        %v2729 = vld [vmem:[#allocation8 + $0x5c] sm:$0xf]
        %v2730 = vld [vmem:[#allocation8 + $0x60] sm:$0xf]
        %v2731 = vld [vmem:[#allocation8 + $0x64] sm:$0xf]
        %v2732 = vld [vmem:[#allocation8 + $0x68] sm:$0xf]
        %v2733 = vld [vmem:[#allocation8 + $0x6c] sm:$0xf]
        %v2734 = vld [vmem:[#allocation8 + $0x70] sm:$0xf]
        %v2735 = vld [vmem:[#allocation8 + $0x74] sm:$0xf]
        %v2736 = vld [vmem:[#allocation8 + $0x78] sm:$0xf]
        %v2737 = vld [vmem:[#allocation8 + $0x7c] sm:$0xf]
        %v2738 = vld [vmem:[%s6] sm:$0x1]
        %v2740 = vlaneseq
        %v2741 = vshrl.u32 %v2740, 7
        %v2742 = vsub.s32 0, %v2741
        %v2743 = vrot.slane %v2738, %v2742
        %v2777 = vunpack.c.l.b16 %v2706
        %v2778 = vunpack.c.l.b16 %v2707
        %v2779 = vunpack.c.l.b16 %v2708
        %v2780 = vunpack.c.l.b16 %v2709
        %v2781 = vunpack.c.l.b16 %v2710
        %v2782 = vunpack.c.l.b16 %v2711
        %v2783 = vunpack.c.l.b16 %v2712
        %v2784 = vunpack.c.l.b16 %v2713
        %v2785 = vunpack.c.l.b16 %v2714
        %v2786 = vunpack.c.l.b16 %v2715
        %v2787 = vunpack.c.l.b16 %v2716
        %v2788 = vunpack.c.l.b16 %v2717
        %v2789 = vunpack.c.l.b16 %v2718
        %v2790 = vunpack.c.l.b16 %v2719
        %v2791 = vunpack.c.l.b16 %v2720
        %v2792 = vunpack.c.l.b16 %v2721
        %v2793 = vunpack.c.l.b16 %v2722
        %v2794 = vunpack.c.l.b16 %v2723
        %v2795 = vunpack.c.l.b16 %v2724
        %v2796 = vunpack.c.l.b16 %v2725
        %v2797 = vunpack.c.l.b16 %v2726
        %v2798 = vunpack.c.l.b16 %v2727
        %v2799 = vunpack.c.l.b16 %v2728
        %v2800 = vunpack.c.l.b16 %v2729
        %v2801 = vunpack.c.l.b16 %v2730
        %v2802 = vunpack.c.l.b16 %v2731
        %v2803 = vunpack.c.l.b16 %v2732
        %v2804 = vunpack.c.l.b16 %v2733
        %v2805 = vunpack.c.l.b16 %v2734
        %v2806 = vunpack.c.l.b16 %v2735
        %v2807 = vunpack.c.l.b16 %v2736
        %v2808 = vunpack.c.l.b16 %v2737
        %v2809 = vpack.c.b16 %v2778, %v2777
        %v2810 = vpack.c.b16 %v2780, %v2779
        %v2811 = vpack.c.b16 %v2782, %v2781
        %v2812 = vpack.c.b16 %v2784, %v2783
        %v2813 = vpack.c.b16 %v2786, %v2785
        %v2814 = vpack.c.b16 %v2788, %v2787
        %v2815 = vpack.c.b16 %v2790, %v2789
        %v2816 = vpack.c.b16 %v2792, %v2791
        %v2817 = vpack.c.b16 %v2794, %v2793
        %v2818 = vpack.c.b16 %v2796, %v2795
        %v2819 = vpack.c.b16 %v2798, %v2797
        %v2820 = vpack.c.b16 %v2800, %v2799
        %v2821 = vpack.c.b16 %v2802, %v2801
        %v2822 = vpack.c.b16 %v2804, %v2803
        %v2823 = vpack.c.b16 %v2806, %v2805
        %v2824 = vpack.c.b16 %v2808, %v2807
        %2841 = vmatprep.subr.bf16.mxu0 0
        %2842 = vmatpush1.bf16.msra.mxu0 %v2809
        %2843 = vmatprep.subr.bf16.mxu0 0
        %2844 = vmatpush1.bf16.msra.mxu0 %v2810
        %2845 = vmatprep.subr.bf16.mxu0 0
        %2846 = vmatpush1.bf16.msra.mxu0 %v2811
        %2847 = vmatprep.subr.bf16.mxu0 0
        %2848 = vmatpush1.bf16.msra.mxu0 %v2812
        %2849 = vmatprep.subr.bf16.mxu0 0
        %2850 = vmatpush1.bf16.msra.mxu0 %v2813
        %2851 = vmatprep.subr.bf16.mxu0 0
        %2852 = vmatpush1.bf16.msra.mxu0 %v2814
        %2853 = vmatprep.subr.bf16.mxu0 0
        %2854 = vmatpush1.bf16.msra.mxu0 %v2815
        %2855 = vmatprep.subr.bf16.mxu0 0
        %2856 = vmatpush1.bf16.msra.mxu0 %v2816
        %2857 = vmatprep.subr.bf16.mxu0 0
        %2858 = vmatpush1.bf16.msra.mxu0 %v2817
        %2859 = vmatprep.subr.bf16.mxu0 0
        %2860 = vmatpush1.bf16.msra.mxu0 %v2818
        %2861 = vmatprep.subr.bf16.mxu0 0
        %2862 = vmatpush1.bf16.msra.mxu0 %v2819
        %2863 = vmatprep.subr.bf16.mxu0 0
        %2864 = vmatpush1.bf16.msra.mxu0 %v2820
        %2865 = vmatprep.subr.bf16.mxu0 0
        %2866 = vmatpush1.bf16.msra.mxu0 %v2821
        %2867 = vmatprep.subr.bf16.mxu0 0
        %2868 = vmatpush1.bf16.msra.mxu0 %v2822
        %2869 = vmatprep.subr.bf16.mxu0 0
        %2870 = vmatpush1.bf16.msra.mxu0 %v2823
        %2871 = vmatprep.subr.bf16.mxu0 0
        %2872 = vmatpush1.bf16.msra.mxu0 %v2824
        %2873 = vmatprep.mubr.bf16.mxu0 %v2691
        %2874 = vmatmul.mubr.bf16.gmra.mrb[0].mxu0 %v2690
        %v2875 = vpop.f32.mrb[0].mxu0
        %v2876 = vadd.f32 %v2743, %v2875
        %v2877 = vpop.f32.mrb[0].mxu0
        %v2878 = vpop.f32.mrb[0].mxu0
        %v2879 = vadd.f32 %v2743, %v2878
        %v2880 = vpop.f32.mrb[0].mxu0
        %2881 = vmatprep.mubr.bf16.mxu0 %v2693
        %2882 = vmatmul.mubr.bf16.gmra.mrb[0].mxu0 %v2692
        %v2883 = vpop.f32.mrb[0].mxu0
        %v2884 = vadd.f32 %v2743, %v2883
        %v2885 = vpop.f32.mrb[0].mxu0
        %v2886 = vpop.f32.mrb[0].mxu0
        %v2887 = vadd.f32 %v2743, %v2886
        %v2888 = vpop.f32.mrb[0].mxu0
        %2889 = vmatprep.mubr.bf16.mxu0 %v2695
        %2890 = vmatmul.mubr.bf16.gmra.mrb[0].mxu0 %v2694
        %v2891 = vpop.f32.mrb[0].mxu0
        %v2892 = vadd.f32 %v2743, %v2891
        %v2893 = vpop.f32.mrb[0].mxu0
        %v2894 = vpop.f32.mrb[0].mxu0
        %v2895 = vadd.f32 %v2743, %v2894
        %v2896 = vpop.f32.mrb[0].mxu0
        %2897 = vmatprep.mubr.bf16.mxu0 %v2697
        %2898 = vmatmul.mubr.bf16.gmra.mrb[0].mxu0 %v2696
        %v2899 = vpop.f32.mrb[0].mxu0
        %v2900 = vadd.f32 %v2743, %v2899
        %v2901 = vpop.f32.mrb[0].mxu0
        %v2902 = vpop.f32.mrb[0].mxu0
        %v2903 = vadd.f32 %v2743, %v2902
        %v2904 = vpop.f32.mrb[0].mxu0
        %2905 = vmatprep.mubr.bf16.mxu0 %v2699
        %2906 = vmatmul.mubr.bf16.gmra.mrb[0].mxu0 %v2698
        %v2907 = vpop.f32.mrb[0].mxu0
        %v2908 = vadd.f32 %v2743, %v2907
        %v2909 = vpop.f32.mrb[0].mxu0
        %v2910 = vpop.f32.mrb[0].mxu0
        %v2911 = vadd.f32 %v2743, %v2910
        %v2912 = vpop.f32.mrb[0].mxu0
        %2913 = vmatprep.mubr.bf16.mxu0 %v2701
        %2914 = vmatmul.mubr.bf16.gmra.mrb[0].mxu0 %v2700
        %v2915 = vpop.f32.mrb[0].mxu0
        %v2916 = vadd.f32 %v2743, %v2915
        %v2917 = vpop.f32.mrb[0].mxu0
        %v2918 = vpop.f32.mrb[0].mxu0
        %v2919 = vadd.f32 %v2743, %v2918
        %v2920 = vpop.f32.mrb[0].mxu0
        %2921 = vmatprep.mubr.bf16.mxu0 %v2703
        %2922 = vmatmul.mubr.bf16.gmra.mrb[0].mxu0 %v2702
        %v2923 = vpop.f32.mrb[0].mxu0
        %v2924 = vadd.f32 %v2743, %v2923
        %v2925 = vpop.f32.mrb[0].mxu0
        %v2926 = vpop.f32.mrb[0].mxu0
        %v2927 = vadd.f32 %v2743, %v2926
        %v2928 = vpop.f32.mrb[0].mxu0
        %2929 = vmatprep.mubr.bf16.mxu0 %v2705
        %2930 = vmatmul.mubr.bf16.gmra.mrb[0].mxu0 %v2704
        %v2931 = vpop.f32.mrb[0].mxu0
        %v2932 = vadd.f32 %v2743, %v2931
        %v2933 = vpop.f32.mrb[0].mxu0
        %v2934 = vpop.f32.mrb[0].mxu0
        %v2935 = vadd.f32 %v2743, %v2934
        %v2936 = vpop.f32.mrb[0].mxu0
        %2937 = vdwg.mxu0
        %v2938 = vmul.f32 %v2876, %v2876
        %v2939 = vmul.f32 %v2879, %v2879
        %v2940 = vmul.f32 %v2884, %v2884
        %v2941 = vmul.f32 %v2887, %v2887
        %v2942 = vmul.f32 %v2892, %v2892
        %v2943 = vmul.f32 %v2895, %v2895
        %v2944 = vmul.f32 %v2900, %v2900
        %v2945 = vmul.f32 %v2903, %v2903
        %v2946 = vmul.f32 %v2908, %v2908
        %v2947 = vmul.f32 %v2911, %v2911
        %v2948 = vmul.f32 %v2916, %v2916
        %v2949 = vmul.f32 %v2919, %v2919
        %v2950 = vmul.f32 %v2924, %v2924
        %v2951 = vmul.f32 %v2927, %v2927
        %v2952 = vmul.f32 %v2932, %v2932
        %v2953 = vmul.f32 %v2935, %v2935
        %2954 = vadd.xlane.f32.xlu0 %v2938
        %v2955 = vpop.xlane.xlu0 %2954
        %2956 = vadd.xlane.f32.xlu0 %v2939
        %v2957 = vpop.xlane.xlu0 %2956
        %2958 = vadd.xlane.f32.xlu0 %v2940
        %v2959 = vpop.xlane.xlu0 %2958
        %2960 = vadd.xlane.f32.xlu0 %v2941
        %v2961 = vpop.xlane.xlu0 %2960
        %2962 = vadd.xlane.f32.xlu0 %v2942
        %v2963 = vpop.xlane.xlu0 %2962
        %2964 = vadd.xlane.f32.xlu0 %v2943
        %v2965 = vpop.xlane.xlu0 %2964
        %2966 = vadd.xlane.f32.xlu0 %v2944
        %v2967 = vpop.xlane.xlu0 %2966
        %2968 = vadd.xlane.f32.xlu0 %v2945
        %v2969 = vpop.xlane.xlu0 %2968
        %2970 = vadd.xlane.f32.xlu0 %v2946
        %v2971 = vpop.xlane.xlu0 %2970
        %2972 = vadd.xlane.f32.xlu0 %v2947
        %v2973 = vpop.xlane.xlu0 %2972
        %2974 = vadd.xlane.f32.xlu0 %v2948
        %v2975 = vpop.xlane.xlu0 %2974
        %2976 = vadd.xlane.f32.xlu0 %v2949
        %v2977 = vpop.xlane.xlu0 %2976
        %2978 = vadd.xlane.f32.xlu0 %v2950
        %v2979 = vpop.xlane.xlu0 %2978
        %2980 = vadd.xlane.f32.xlu0 %v2951
        %v2981 = vpop.xlane.xlu0 %2980
        %2982 = vadd.xlane.f32.xlu0 %v2952
        %v2983 = vpop.xlane.xlu0 %2982
        %2984 = vadd.xlane.f32.xlu0 %v2953
        %v2985 = vpop.xlane.xlu0 %2984
        %v2986 = vmax.f32 %v2955, 1e-24
        %v2987 = vmax.f32 %v2957, 1e-24
        %v2988 = vmax.f32 %v2959, 1e-24
        %v2989 = vmax.f32 %v2961, 1e-24
        %v2990 = vmax.f32 %v2963, 1e-24
        %v2991 = vmax.f32 %v2965, 1e-24
        %v2992 = vmax.f32 %v2967, 1e-24
        %v2993 = vmax.f32 %v2969, 1e-24
        %v2994 = vmax.f32 %v2971, 1e-24
        %v2995 = vmax.f32 %v2973, 1e-24
        %v2996 = vmax.f32 %v2975, 1e-24
        %v2997 = vmax.f32 %v2977, 1e-24
        %v2998 = vmax.f32 %v2979, 1e-24
        %v2999 = vmax.f32 %v2981, 1e-24
        %v3000 = vmax.f32 %v2983, 1e-24
        %v3001 = vmax.f32 %v2985, 1e-24
        %v3002 = vrsqrt.pop %v2986
        %v3003 = vrsqrt.pop %v2987
        %v3004 = vrsqrt.pop %v2988
        %v3005 = vrsqrt.pop %v2989
        %v3006 = vrsqrt.pop %v2990
        %v3007 = vrsqrt.pop %v2991
        %v3008 = vrsqrt.pop %v2992
        %v3009 = vrsqrt.pop %v2993
        %v3010 = vrsqrt.pop %v2994
        %v3011 = vrsqrt.pop %v2995
        %v3012 = vrsqrt.pop %v2996
        %v3013 = vrsqrt.pop %v2997
        %v3014 = vrsqrt.pop %v2998
        %v3015 = vrsqrt.pop %v2999
        %v3016 = vrsqrt.pop %v3000
        %v3017 = vrsqrt.pop %v3001
        %v3018 = vmul.f32 %v2876, %v3002
        %v3019 = vmul.f32 %v2879, %v3003
        %v3020 = vmul.f32 %v2884, %v3004
        %v3021 = vmul.f32 %v2887, %v3005
        %v3022 = vmul.f32 %v2892, %v3006
        %v3023 = vmul.f32 %v2895, %v3007
        %v3024 = vmul.f32 %v2900, %v3008
        %v3025 = vmul.f32 %v2903, %v3009
        %v3026 = vmul.f32 %v2908, %v3010
        %v3027 = vmul.f32 %v2911, %v3011
        %v3028 = vmul.f32 %v2916, %v3012
        %v3029 = vmul.f32 %v2919, %v3013
        %v3030 = vmul.f32 %v2924, %v3014
        %v3031 = vmul.f32 %v2927, %v3015
        %v3032 = vmul.f32 %v2932, %v3016
        %v3033 = vmul.f32 %v2935, %v3017
        %v3034 = vpack.c.bf16 %v3019, %v3018
        %v3035 = vpack.c.bf16 %v3021, %v3020
        %v3036 = vpack.c.bf16 %v3023, %v3022
        %v3037 = vpack.c.bf16 %v3025, %v3024
        %v3038 = vpack.c.bf16 %v3027, %v3026
        %v3039 = vpack.c.bf16 %v3029, %v3028
        %v3040 = vpack.c.bf16 %v3031, %v3030
        %v3041 = vpack.c.bf16 %v3033, %v3032
        %v3050 = vunpack.c.l.b16 %v3034
        %v3051 = vunpack.c.h.b16 %v3034
        %v3052 = vunpack.c.l.b16 %v3035
        %v3053 = vunpack.c.h.b16 %v3035
        %v3054 = vunpack.c.l.b16 %v3036
        %v3055 = vunpack.c.h.b16 %v3036
        %v3056 = vunpack.c.l.b16 %v3037
        %v3057 = vunpack.c.h.b16 %v3037
        %v3058 = vunpack.c.l.b16 %v3038
        %v3059 = vunpack.c.h.b16 %v3038
        %v3060 = vunpack.c.l.b16 %v3039
        %v3061 = vunpack.c.h.b16 %v3039
        %v3062 = vunpack.c.l.b16 %v3040
        %v3063 = vunpack.c.h.b16 %v3040
        %v3064 = vunpack.c.l.b16 %v3041
        %v3065 = vunpack.c.h.b16 %v3041
        %v3066 = vpack.c.b16 %v3050, %v3050
        %v3067 = vpack.c.b16 %v3051, %v3051
        %v3068 = vpack.c.b16 %v3052, %v3052
        %v3069 = vpack.c.b16 %v3053, %v3053
        %v3070 = vpack.c.b16 %v3054, %v3054
        %v3071 = vpack.c.b16 %v3055, %v3055
        %v3072 = vpack.c.b16 %v3056, %v3056
        %v3073 = vpack.c.b16 %v3057, %v3057
        %v3074 = vpack.c.b16 %v3058, %v3058
        %v3075 = vpack.c.b16 %v3059, %v3059
        %v3076 = vpack.c.b16 %v3060, %v3060
        %v3077 = vpack.c.b16 %v3061, %v3061
        %v3078 = vpack.c.b16 %v3062, %v3062
        %v3079 = vpack.c.b16 %v3063, %v3063
        %v3080 = vpack.c.b16 %v3064, %v3064
        %v3081 = vpack.c.b16 %v3065, %v3065
        %3098 = vst [vmem:[%s340] sm:$0xf] %v3066
        %3099 = vst [vmem:[%s340 + $0x4] sm:$0xf] %v3067
        %3100 = vst [vmem:[%s340 + $0x8] sm:$0xf] %v3068
        %3101 = vst [vmem:[%s340 + $0xc] sm:$0xf] %v3069
        %3102 = vst [vmem:[%s340 + $0x10] sm:$0xf] %v3070
        %3103 = vst [vmem:[%s340 + $0x14] sm:$0xf] %v3071
        %3104 = vst [vmem:[%s340 + $0x18] sm:$0xf] %v3072
        %3105 = vst [vmem:[%s340 + $0x1c] sm:$0xf] %v3073
        %3106 = vst [vmem:[%s340 + $0x20] sm:$0xf] %v3074
        %3107 = vst [vmem:[%s340 + $0x24] sm:$0xf] %v3075
        %3108 = vst [vmem:[%s340 + $0x28] sm:$0xf] %v3076
        %3109 = vst [vmem:[%s340 + $0x2c] sm:$0xf] %v3077
        %3110 = vst [vmem:[%s340 + $0x30] sm:$0xf] %v3078
        %3111 = vst [vmem:[%s340 + $0x34] sm:$0xf] %v3079
        %3112 = vst [vmem:[%s340 + $0x38] sm:$0xf] %v3080
        %3113 = vst [vmem:[%s340 + $0x3c] sm:$0xf] %v3081
        %s3114 = sand.u32 %s186, 1
        %s3115 = scalar_lea.sflag [#allocation4], %s3114
        %s3116 = sand.u32 %s186, 1
        %s3117 = smul.addr %s3116, 64
        %s3118 = scalar_lea.vmem [#allocation10], %s3117
        // Predicated region
        $region65: #{tpu_custom_call.1} parent=47 // pred_check
          %p3119 = pneg %p196
        $region66: #{tpu_custom_call.1} parent=47 // pred_check_branch
          %3121 = sbr.rel (%p3119) target = $region68
        $region67: #{tpu_custom_call.1} parent=47 // pred_region
          %s3122 = smul.u32 16, %s26
          %s3124 = ssub.s32 1024, 1024
          %3125 = vsyncadd %s3115, %s3124
          %s3126 = smul.addr %s3122, 64
          %s3127 = scalar_lea.hbm %s7, %s3126
          %s3128 = sshll.u32 %s3118, 4
          %s3129 = int_to_ptr.vmem [resolvable:$true] %s3128
          %3134 = dma.vmem_to_hbm [thread:$0]  %s3129, 1024, %s3127, %s3115, 64, 64, 4
        $region68: #{tpu_custom_call.1} parent=47 // pred_fallthru
          _
      $region48: #{tpu_custom_call.1} parent=5 // pred_fallthru
        _
      %p3135 = scmp.le.s32.totalorder 2, %s21
      // Predicated region
      $region69: #{tpu_custom_call.1} parent=5 // pred_check
        %p3136 = pneg %p3135
      $region70: #{tpu_custom_call.1} parent=5 // pred_check_branch
        %3138 = sbr.rel (%p3136) target = $region72
      $region71: #{tpu_custom_call.1} parent=5 // pred_region
        %s3139 = ssub.s32 %s21, 2
        // Predicated region
        $region73: #{tpu_custom_call.1} parent=71 // pred_check
          %p3140 = pneg %p202
        $region74: #{tpu_custom_call.1} parent=71 // pred_check_branch
          %3142 = sbr.rel (%p3140) target = $region76
        $region75: #{tpu_custom_call.1} parent=71 // pred_region
          %s3143 = sand.u32 %s187, 1
          %s3144 = scalar_lea.sflag [#allocation4], %s3143
          %s3145 = sand.u32 %s187, 1
          %s3146 = smul.addr %s3145, 64
          %s3147 = scalar_lea.vmem [#allocation10], %s3146
          %3148 = dma.done %s3144, 1024
        $region76: #{tpu_custom_call.1} parent=71 // pred_fallthru
          _
      $region72: #{tpu_custom_call.1} parent=5 // pred_fallthru
        _
    $region6: #{tpu_custom_call.1} parent=1 // loop_footer
      %s25 = sadd.s32 1, %s21
    $region7: #{tpu_custom_call.1} parent=1 // loop_footer_branch
      %20 = sbr.rel target = $region3
    $region8: #{tpu_custom_call.1} parent=1 // loop_exit
      _
    %3149 = vsyncpa [#allocation3], 1
    %s3150 = scalar_lea.sflag [#allocation3], 1
    %3151 = vsyncpa %s3150, 1
    %3152 = vsyncpa [#allocation6], 1
    %3153 = vsyncpa [#allocation9], 1
    %3154 = vsyncpa [#allocation4], 1
    %s3155 = scalar_lea.sflag [#allocation4], 1
    %3156 = vsyncpa %s3155, 1

</llo_original>
